<compile_context>
chip_gen: v6e
topology: v6e:2x2x1
jax: 0.10.0
libtpu: 0.0.40
codegen_flags: <defaults>
</compile_context>

<pallas_src>
import functools
import math

import jax
import jax.numpy as jnp
from jax.experimental import pallas as pl
from jax.experimental.pallas import tpu as pltpu

_INV_SQRT2 = 0.7071067811865476
_LN_EPS = 1e-5
_COMPUTE_DTYPE = jnp.bfloat16     # MXU inputs; accumulation stays f32


def _round_up(x, m):
    return (x + m - 1) // m * m


def _tile_prefs():
    """Per-generation tile preferences derived from VMEM capacity."""
    try:
        vmem = int(pltpu.get_tpu_info().vmem_capacity_bytes)
    except Exception:
        vmem = 64 * 1024 * 1024          # be conservative (v7x-sized)
    if vmem >= 100 * 1024 * 1024:        # v5e / v6e: 128 MiB VMEM
        return 512, 1024
    return 256, 512                      # v7x: 64 MiB per-TC VMEM


_TM_PREF, _TN_PREF = _tile_prefs()


def _pick_tile(dim, pref, align=128):
    """Largest lane-aligned tile <= pref dividing dim (dim itself if small).
    Falls back to `align` (caller pads) instead of a huge full-dim block."""
    if dim <= pref:
        return dim
    t = (pref // align) * align
    while t > align:
        if dim % t == 0:
            return t
        t -= align
    return align


def _pad_rows(x2d, mp):
    m = x2d.shape[0]
    return x2d if mp == m else jnp.pad(x2d, ((0, mp - m), (0, 0)))


def _vmem_limit_bytes(block_bytes):
    """Double-buffered per-step working set + headroom, clamped for all gens."""
    total = 2 * int(block_bytes) + (4 << 20)
    return int(min(max(total, 16 << 20), 56 << 20))


# ---------------------------------------------------------------------------
# Kernels
# ---------------------------------------------------------------------------
def _ln_matmul_kernel(*refs, apply_ln, add_residual):
    """out = [LN(x)] @ W + bias [+ residual].  K untiled; grid = (M, N) tiles."""
    idx = 0
    x_ref = refs[idx]; idx += 1
    if apply_ln:
        g_ref = refs[idx]; b_ref = refs[idx + 1]; idx += 2
    w_ref = refs[idx]; bias_ref = refs[idx + 1]; idx += 2
    if add_residual:
        res_ref = refs[idx]; idx += 1
    o_ref = refs[idx]

    if apply_ln:
        xf = x_ref[...].astype(jnp.float32)          # f32 LN statistics
        mu = jnp.mean(xf, axis=-1, keepdims=True)
        xc = xf - mu
        var = jnp.mean(xc * xc, axis=-1, keepdims=True)
        y = xc * jax.lax.rsqrt(var + _LN_EPS)
        y = y * g_ref[...].astype(jnp.float32) + b_ref[...].astype(jnp.float32)
        xin = y.astype(w_ref.dtype)                  # bf16 into the MXU
    else:
        xin = x_ref[...].astype(w_ref.dtype)

    acc = jnp.dot(xin, w_ref[...], preferred_element_type=jnp.float32)
    acc = acc + bias_ref[...].astype(jnp.float32)
    if add_residual:
        acc = acc + res_ref[...].astype(jnp.float32)  # fused residual epilogue
    o_ref[...] = acc.astype(o_ref.dtype)


def _ln_geglu_kernel(x_ref, g_ref, b_ref, w_ref, bias_ref, o_ref):
    """LN3 + GEGLU projection with [Wx_j | Wg_j] packed per N-tile."""
    xf = x_ref[...].astype(jnp.float32)
    mu = jnp.mean(xf, axis=-1, keepdims=True)
    xc = xf - mu
    var = jnp.mean(xc * xc, axis=-1, keepdims=True)
    y = xc * jax.lax.rsqrt(var + _LN_EPS)
    y = y * g_ref[...].astype(jnp.float32) + b_ref[...].astype(jnp.float32)

    acc = jnp.dot(y.astype(w_ref.dtype), w_ref[...],
                  preferred_element_type=jnp.float32)
    acc = acc + bias_ref[...].astype(jnp.float32)

    tn = o_ref.shape[-1]
    h = acc[:, :tn]
    g = acc[:, tn:]
    gelu_g = 0.5 * g * (1.0 + jax.lax.erf(g * _INV_SQRT2))   # exact GELU (f32)
    o_ref[...] = (h * gelu_g).astype(o_ref.dtype)


def _attn_heads(q, k, v, heads):
    """All heads of one batch; q is pre-scaled (scale folded into Wq)."""
    sq, inner = q.shape
    dh = inner // heads
    dn = (((1,), (1,)), ((), ()))        # contract last dims -> q @ k^T, no transpose
    outs = []
    for h in range(heads):               # unrolled; heads is small & static
        sl = slice(h * dh, (h + 1) * dh)
        qh, kh, vh = q[:, sl], k[:, sl], v[:, sl]
        s = jax.lax.dot_general(qh, kh, dn, preferred_element_type=jnp.float32)
        m = jnp.max(s, axis=-1, keepdims=True)
        p = jnp.exp(s - m)
        l = jnp.sum(p, axis=-1, keepdims=True)
        p = p * pl.reciprocal(l, approx=True)          # EUP, not VPU divide
        outs.append(jnp.dot(p.astype(vh.dtype), vh,
                            preferred_element_type=jnp.float32))
    return jnp.concatenate(outs, axis=-1)


def _self_attn_kernel(qkv_ref, o_ref, *, heads, inner):
    qkv = qkv_ref[...]
    q = qkv[:, :inner]
    k = qkv[:, inner:2 * inner]
    v = qkv[:, 2 * inner:3 * inner]
    o_ref[...] = _attn_heads(q, k, v, heads).astype(o_ref.dtype)


def _cross_attn_kernel(q_ref, kv_ref, o_ref, *, heads, inner):
    q = q_ref[...]
    kv = kv_ref[...]
    k = kv[:, :inner]
    v = kv[:, inner:2 * inner]
    o_ref[...] = _attn_heads(q, k, v, heads).astype(o_ref.dtype)


# ---------------------------------------------------------------------------
# pallas_call wrappers
# ---------------------------------------------------------------------------
def ln_linear(x2d, w, bias, *, gamma=None, beta=None, residual=None, out_dtype=None):
    """out = [LN(x)] @ w + bias [+ residual].  w: (K, N) bf16, bias: (1, N) f32."""
    m, kdim = x2d.shape
    n = w.shape[1]
    out_dtype = x2d.dtype if out_dtype is None else out_dtype
    apply_ln = gamma is not None
    add_res = residual is not None

    tm = min(_TM_PREF, _round_up(m, 8))
    mp = _round_up(m, tm)
    tn = _pick_tile(n, _TN_PREF)
    npad = _round_up(n, tn)

    xp = _pad_rows(x2d, mp)
    if npad != n:                          # pathological N: pad, slice afterwards
        w = jnp.pad(w, ((0, 0), (0, npad - n)))
        bias = jnp.pad(bias, ((0, 0), (0, npad - n)))

    inputs = [xp]
    in_specs = [pl.BlockSpec((tm, kdim), lambda i, j: (i, 0))]
    if apply_ln:
        inputs += [gamma, beta]
        in_specs += [pl.BlockSpec((1, kdim), lambda i, j: (0, 0)),
                     pl.BlockSpec((1, kdim), lambda i, j: (0, 0))]
    inputs += [w, bias]
    in_specs += [pl.BlockSpec((kdim, tn), lambda i, j: (0, j)),
                 pl.BlockSpec((1, tn), lambda i, j: (0, j))]
    if add_res:
        resp = _pad_rows(residual, mp)
        if npad != n:
            resp = jnp.pad(resp, ((0, 0), (0, npad - n)))
        inputs.append(resp)
        in_specs.append(pl.BlockSpec((tm, tn), lambda i, j: (i, j)))

    osz = jnp.dtype(out_dtype).itemsize
    blk = (tm * kdim * xp.dtype.itemsize + kdim * tn * w.dtype.itemsize
           + tn * 4 + tm * tn * osz
           + (tm * tn * 4 if add_res else 0) + (2 * kdim * 4 if apply_ln else 0))
    cost = pl.CostEstimate(
        flops=int(2 * mp * kdim * npad + 2 * mp * npad),
        transcendentals=int(mp if apply_ln else 0),
        bytes_accessed=int(mp * kdim * xp.dtype.itemsize
                           + kdim * npad * w.dtype.itemsize
                           + mp * npad * osz
                           + (mp * npad * 4 if add_res else 0)))

    kern = functools.partial(_ln_matmul_kernel, apply_ln=apply_ln, add_residual=add_res)
    out = pl.pallas_call(
        kern,
        out_shape=jax.ShapeDtypeStruct((mp, npad), out_dtype),
        grid_spec=pltpu.PrefetchScalarGridSpec(
            num_scalar_prefetch=0,
            grid=(mp // tm, npad // tn),
            in_specs=in_specs,
            out_specs=pl.BlockSpec((tm, tn), lambda i, j: (i, j)),
        ),
        compiler_params=pltpu.CompilerParams(
            dimension_semantics=("parallel", "parallel"),
            vmem_limit_bytes=_vmem_limit_bytes(blk)),
        cost_estimate=cost,
    )(*inputs)
    out = out[:m] if mp != m else out
    return out[:, :n] if npad != n else out


def ln_geglu(x2d, gamma, beta, w_packed, b_packed, n_true, *, out_dtype):
    """LN3 + GEGLU.  w_packed: (K, 2*Npad) with per-tile [Wx_j | Wg_j] layout."""
    m, kdim = x2d.shape
    tn = _pick_tile(n_true, _TN_PREF)
    npad = _round_up(n_true, tn)
    assert 2 * npad == w_packed.shape[1]
    tm = min(_TM_PREF, _round_up(m, 8))
    mp = _round_up(m, tm)
    xp = _pad_rows(x2d, mp)

    osz = jnp.dtype(out_dtype).itemsize
    blk = (tm * kdim * xp.dtype.itemsize + 2 * kdim * 4
           + kdim * 2 * tn * w_packed.dtype.itemsize + 2 * tn * 4 + tm * tn * osz)
    cost = pl.CostEstimate(
        flops=int(4 * mp * kdim * npad + 8 * mp * npad),
        transcendentals=int(mp * npad + mp),
        bytes_accessed=int(mp * kdim * xp.dtype.itemsize
                           + 2 * kdim * npad * w_packed.dtype.itemsize
                           + mp * npad * osz))

    out = pl.pallas_call(
        _ln_geglu_kernel,
        out_shape=jax.ShapeDtypeStruct((mp, npad), out_dtype),
        grid_spec=pltpu.PrefetchScalarGridSpec(
            num_scalar_prefetch=0,
            grid=(mp // tm, npad // tn),
            in_specs=[pl.BlockSpec((tm, kdim), lambda i, j: (i, 0)),
                      pl.BlockSpec((1, kdim), lambda i, j: (0, 0)),
                      pl.BlockSpec((1, kdim), lambda i, j: (0, 0)),
                      pl.BlockSpec((kdim, 2 * tn), lambda i, j: (0, j)),
                      pl.BlockSpec((1, 2 * tn), lambda i, j: (0, j))],
            out_specs=pl.BlockSpec((tm, tn), lambda i, j: (i, j)),
        ),
        compiler_params=pltpu.CompilerParams(
            dimension_semantics=("parallel", "parallel"),
            vmem_limit_bytes=_vmem_limit_bytes(blk)),
        cost_estimate=cost,
    )(xp, gamma, beta, w_packed, b_packed)
    out = out[:m] if mp != m else out
    return out[:, :n_true] if npad != n_true else out


def self_attention(qkv, heads, inner, out_dtype):
    """qkv: (B, S, 3*inner) packed [q|k|v]; q pre-scaled.  grid=(B,), all heads/step."""
    b, s, width = qkv.shape
    kern = functools.partial(_self_attn_kernel, heads=heads, inner=inner)
    blk = (s * width + s * inner) * qkv.dtype.itemsize + heads * s * s * 4
    return pl.pallas_call(
        kern,
        out_shape=jax.ShapeDtypeStruct((b, s, inner), out_dtype),
        grid_spec=pltpu.PrefetchScalarGridSpec(
            num_scalar_prefetch=0, grid=(b,),
            in_specs=[pl.BlockSpec((None, s, width), lambda i: (i, 0, 0))],
            out_specs=pl.BlockSpec((None, s, inner), lambda i: (i, 0, 0))),
        compiler_params=pltpu.CompilerParams(
            dimension_semantics=("parallel",),
            vmem_limit_bytes=_vmem_limit_bytes(blk)),
    )(qkv)


def cross_attention_attn(q, kv, heads, inner, out_dtype):
    """q: (B, S, inner) pre-scaled; kv: (B, Sc, 2*inner) packed [k|v]."""
    b, sq, _ = q.shape
    _, sk, kvw = kv.shape
    kern = functools.partial(_cross_attn_kernel, heads=heads, inner=inner)
    blk = (sq * inner + sk * kvw + sq * inner) * q.dtype.itemsize + heads * sq * sk * 4
    return pl.pallas_call(
        kern,
        out_shape=jax.ShapeDtypeStruct((b, sq, inner), out_dtype),
        grid_spec=pltpu.PrefetchScalarGridSpec(
            num_scalar_prefetch=0, grid=(b,),
            in_specs=[pl.BlockSpec((None, sq, inner), lambda i: (i, 0, 0)),
                      pl.BlockSpec((None, sk, kvw), lambda i: (i, 0, 0))],
            out_specs=pl.BlockSpec((None, sq, inner), lambda i: (i, 0, 0))),
        compiler_params=pltpu.CompilerParams(
            dimension_semantics=("parallel",),
            vmem_limit_bytes=_vmem_limit_bytes(blk)),
    )(q, kv)


# ---------------------------------------------------------------------------
# Module forward (composition of the fused kernels)
# ---------------------------------------------------------------------------
def block_forward(params, x, context, *, heads):
    # Gradient checkpointing only affects the backward pass; Dropout(p=0.0) is identity.
    b, s, d = x.shape
    m = b * s
    cd = _COMPUTE_DTYPE
    x2d = x.reshape(m, d)

    # --- self-attention:  x = to_out(attn(LN1(x))) + x ----------------------
    a1 = params["attn1"]
    inner = a1["w_o"].shape[0]
    qkv = ln_linear(x2d, a1["w_qkv"], a1["b_qkv"],
                    gamma=params["ln1_g"], beta=params["ln1_b"], out_dtype=cd)
    o = self_attention(qkv.reshape(b, s, 3 * inner), heads, inner, cd)
    x2d = ln_linear(o.reshape(m, inner), a1["w_o"], a1["b_o"],
                    residual=x2d, out_dtype=x.dtype)

    # --- cross-attention: x = to_out(attn(LN2(x), context)) + x -------------
    a2 = params["attn2"]
    inner = a2["w_o"].shape[0]
    q = ln_linear(x2d, a2["w_q"], a2["b_q"],
                  gamma=params["ln2_g"], beta=params["ln2_b"], out_dtype=cd)
    if context is None:
        # context defaults to the *normalized* hidden state in the module
        kv = ln_linear(x2d, a2["w_kv"], a2["b_kv"],
                       gamma=params["ln2_g"], beta=params["ln2_b"], out_dtype=cd)
        bc, sc = b, s
    else:
        bc, sc, dc = context.shape
        kv = ln_linear(context.reshape(bc * sc, dc), a2["w_kv"], a2["b_kv"],
                       out_dtype=cd)
    o = cross_attention_attn(q.reshape(b, s, inner), kv.reshape(bc, sc, 2 * inner),
                             heads, inner, cd)
    x2d = ln_linear(o.reshape(m, inner), a2["w_o"], a2["b_o"],
                    residual=x2d, out_dtype=x.dtype)

    # --- feed-forward: x = W2(GEGLU(LN3(x))) + x -----------------------------
    ffp = params["ff"]
    n1 = ffp["w2"].shape[0]
    h = ln_geglu(x2d, params["ln3_g"], params["ln3_b"],
                 ffp["w1_packed"], ffp["b1_packed"], n1, out_dtype=cd)
    x2d = ln_linear(h, ffp["w2"], ffp["b2"], residual=x2d, out_dtype=x.dtype)
    return x2d.reshape(b, s, d)


def prepare_params(raw, heads):
    """One-time transpose / fusion / bf16 packing of PyTorch-layout weights."""
    cd = _COMPUTE_DTYPE
    f32 = jnp.float32

    def attn_params(a, self_attn):
        wq = jnp.asarray(a["wq"], f32).T          # (Dq, inner)
        wk = jnp.asarray(a["wk"], f32).T          # (Dc, inner)
        wv = jnp.asarray(a["wv"], f32).T
        wo = jnp.asarray(a["wo"], f32).T          # (inner, Dq)
        bo = jnp.asarray(a["bo"], f32).reshape(1, -1)
        inner = wq.shape[1]
        scale = float(inner // heads) ** -0.5
        wq = wq * scale                           # fold softmax scale into Wq
        p = dict(w_o=wo.astype(cd), b_o=bo)
        if self_attn:
            p["w_qkv"] = jnp.concatenate([wq, wk, wv], axis=1).astype(cd)
            p["b_qkv"] = jnp.zeros((1, 3 * inner), f32)
        else:
            p["w_q"] = wq.astype(cd)
            p["b_q"] = jnp.zeros((1, inner), f32)
            p["w_kv"] = jnp.concatenate([wk, wv], axis=1).astype(cd)
            p["b_kv"] = jnp.zeros((1, 2 * inner), f32)
        return p

    def pack_geglu(w1, b1):
        w1 = jnp.asarray(w1, f32)
        b1 = jnp.asarray(b1, f32)
        two_n, kdim = w1.shape
        n = two_n // 2
        wt = w1.T                                  # (K, 2n): [x-proj | gate]
        wx, wg = wt[:, :n], wt[:, n:]
        bx, bg = b1[:n], b1[n:]
        tn = _pick_tile(n, _TN_PREF)
        npad = _round_up(n, tn)
        if npad != n:
            pc = npad - n
            wx = jnp.pad(wx, ((0, 0), (0, pc)))
            wg = jnp.pad(wg, ((0, 0), (0, pc)))
            bx = jnp.pad(bx, (0, pc))
            bg = jnp.pad(bg, (0, pc))
        nt = npad // tn
        w_packed = jnp.concatenate(
            [wx.reshape(kdim, nt, tn), wg.reshape(kdim, nt, tn)],
            axis=-1).reshape(kdim, nt * 2 * tn)
        b_packed = jnp.concatenate(
            [bx.reshape(nt, tn), bg.reshape(nt, tn)],
            axis=-1).reshape(1, nt * 2 * tn)
        return dict(w1_packed=w_packed.astype(cd), b1_packed=b_packed)

    ff = pack_geglu(raw["ff"]["w1"], raw["ff"]["b1"])
    ff["w2"] = jnp.asarray(raw["ff"]["w2"], f32).T.astype(cd)
    ff["b2"] = jnp.asarray(raw["ff"]["b2"], f32).reshape(1, -1)

    out = {"attn1": attn_params(raw["attn1"], True),
           "attn2": attn_params(raw["attn2"], False),
           "ff": ff}
    for i in (1, 2, 3):
        out[f"ln{i}_g"] = jnp.asarray(raw[f"ln{i}_g"], f32).reshape(1, -1)
        out[f"ln{i}_b"] = jnp.asarray(raw[f"ln{i}_b"], f32).reshape(1, -1)
    return out


# ---------------------------------------------------------------------------
# Pure-JAX f32 reference (mirrors the PyTorch module)
# ---------------------------------------------------------------------------
def _reference_block(raw, x, context, heads):
    def ln(t, g, b):
        mu = t.mean(-1, keepdims=True)
        var = ((t - mu) ** 2).mean(-1, keepdims=True)
        return (t - mu) / jnp.sqrt(var + _LN_EPS) * g + b

    def attn(xq, ctx, a):
        q = xq @ a["wq"].T
        k = ctx @ a["wk"].T
        v = ctx @ a["wv"].T
        b, s, inner = q.shape
        dh = inner // heads

        def sp(t):
            bb, nn, _ = t.shape
            return t.reshape(bb, nn, heads, dh).transpose(0, 2, 1, 3).reshape(bb * heads, nn, dh)

        qh, kh, vh = sp(q), sp(k), sp(v)
        sim = jnp.einsum("bid,bjd->bij", qh, kh) * (dh ** -0.5)
        p = jax.nn.softmax(sim, axis=-1)
        o = jnp.einsum("bij,bjd->bid", p, vh)
        o = o.reshape(b, heads, s, dh).transpose(0, 2, 1, 3).reshape(b, s, inner)
        return o @ a["wo"].T + a["bo"]

    def ff(t):
        y = t @ raw["ff"]["w1"].T + raw["ff"]["b1"]
        n = raw["ff"]["w1"].shape[0] // 2
        h, g = y[..., :n], y[..., n:]
        h = h * jax.nn.gelu(g, approximate=False)
        return h @ raw["ff"]["w2"].T + raw["ff"]["b2"]

    h1 = ln(x, raw["ln1_g"], raw["ln1_b"])
    x = x + attn(h1, h1, raw["attn1"])
    h2 = ln(x, raw["ln2_g"], raw["ln2_b"])
    x = x + attn(h2, h2 if context is None else context, raw["attn2"])
    h3 = ln(x, raw["ln3_g"], raw["ln3_b"])
    return x + ff(h3)


if __name__ == "__main__":
    B, S, DIM = 2, 8, 64
    N_HEADS, D_HEAD = 4, 16          # inner_dim = 64
    CTX_S, CTX_DIM = 16, 48          # cross-attention context
    FF_MULT = 4                      # GEGLU inner = 256

    key = jax.random.PRNGKey(0)
    keys = iter(jax.random.split(key, 32))

    def lin_w(out_dim, in_dim):
        bound = 1.0 / math.sqrt(in_dim)
        return jax.random.uniform(next(keys), (out_dim, in_dim),
                                  minval=-bound, maxval=bound, dtype=jnp.float32)

    def lin_b(out_dim, in_dim):
        bound = 1.0 / math.sqrt(in_dim)
        return jax.random.uniform(next(keys), (out_dim,),
                                  minval=-bound, maxval=bound, dtype=jnp.float32)

    inner = N_HEADS * D_HEAD
    ff_inner = FF_MULT * DIM

    def make_attn(ctx_dim):
        return {"wq": lin_w(inner, DIM), "wk": lin_w(inner, ctx_dim),
                "wv": lin_w(inner, ctx_dim), "wo": lin_w(DIM, inner),
                "bo": lin_b(DIM, inner)}

    raw = {
        "attn1": make_attn(DIM),
        "attn2": make_attn(CTX_DIM),
        "ff": {"w1": lin_w(2 * ff_inner, DIM), "b1": lin_b(2 * ff_inner, DIM),
               "w2": lin_w(DIM, ff_inner), "b2": lin_b(DIM, ff_inner)},
    }
    for i in (1, 2, 3):
        raw[f"ln{i}_g"] = 1.0 + 0.1 * jax.random.normal(next(keys), (DIM,), dtype=jnp.float32)
        raw[f"ln{i}_b"] = 0.1 * jax.random.normal(next(keys), (DIM,), dtype=jnp.float32)

    x = jax.random.normal(next(keys), (B, S, DIM), dtype=jnp.float32)
    context = jax.random.normal(next(keys), (B, CTX_S, CTX_DIM), dtype=jnp.float32)

    params = prepare_params(raw, N_HEADS)     # one-time packing, outside the hot path
    fwd = jax.jit(functools.partial(block_forward, heads=N_HEADS))

    out = fwd(params, x, context)
    jax.block_until_ready(out)

    ref = _reference_block(raw, x, context, N_HEADS)
    assert out.shape == (B, S, DIM), out.shape
    max_err = float(jnp.max(jnp.abs(out - ref)))
    mean_err = float(jnp.mean(jnp.abs(out - ref)))
    # bf16 MXU inputs with f32 accumulation: tolerance loosened accordingly.
    assert max_err < 5e-2, f"mismatch vs reference: max abs err {max_err}"
    assert mean_err < 1e-2, f"mismatch vs reference: mean abs err {mean_err}"

    print("KERNEL_OK")
</pallas_src>

<mosaic_0001>
module attributes {stable_mosaic.version = 11 : i64} {
  func.func @_self_attn_kernel(%arg0: i32, %arg1: memref<1x8x192xbf16, #tpu.memory_space<vmem>>, %arg2: memref<1x8x64xbf16, #tpu.memory_space<vmem>>) attributes {dimension_semantics = [#tpu.dimension_semantics<parallel>], iteration_bounds = array<i64: 2>, scalar_prefetch = 0 : i64, scratch_operands = 0 : i64, tpu.core_type = #tpu.core_type<tc>, window_params = [{transform_indices = @transform_0, window_bounds = array<i64: 1, 8, 192>}, {transform_indices = @transform_1, window_bounds = array<i64: 1, 8, 64>}]} {
    %c0 = arith.constant 0 : index
    %c0_0 = arith.constant 0 : index
    %c0_1 = arith.constant 0 : index
    %0 = vector.load %arg1[%c0, %c0_0, %c0_1] : memref<1x8x192xbf16, #tpu.memory_space<vmem>>, vector<1x8x192xbf16>
    %1 = vector.shape_cast %0 : vector<1x8x192xbf16> to vector<8x192xbf16>
    %2 = vector.extract_strided_slice %1 {offsets = [0, 0], sizes = [8, 64], strides = [1, 1]} : vector<8x192xbf16> to vector<8x64xbf16>
    %3 = vector.extract_strided_slice %1 {offsets = [0, 64], sizes = [8, 64], strides = [1, 1]} : vector<8x192xbf16> to vector<8x64xbf16>
    %4 = vector.extract_strided_slice %1 {offsets = [0, 128], sizes = [8, 64], strides = [1, 1]} : vector<8x192xbf16> to vector<8x64xbf16>
    %5 = vector.extract_strided_slice %2 {offsets = [0, 0], sizes = [8, 16], strides = [1, 1]} : vector<8x64xbf16> to vector<8x16xbf16>
    %6 = vector.extract_strided_slice %3 {offsets = [0, 0], sizes = [8, 16], strides = [1, 1]} : vector<8x64xbf16> to vector<8x16xbf16>
    %7 = vector.extract_strided_slice %4 {offsets = [0, 0], sizes = [8, 16], strides = [1, 1]} : vector<8x64xbf16> to vector<8x16xbf16>
    %cst = arith.constant dense<0.000000e+00> : vector<8x8xf32>
    %8 = tpu.matmul %5, %6, %cst {dimension_numbers = #tpu.dot_dimension_numbers<[1], [1], [0], [0], [0, 0, 1, 0], [], []>} : vector<8x16xbf16>, vector<8x16xbf16>, vector<8x8xf32> -> vector<8x8xf32>
    %cst_2 = arith.constant dense<0xFF800000> : vector<8xf32>
    %9 = vector.multi_reduction <maximumf>, %8, %cst_2 [1] : vector<8x8xf32> to vector<8xf32>
    %10 = vector.shape_cast %9 : vector<8xf32> to vector<8x1xf32>
    %11 = vector.broadcast %10 : vector<8x1xf32> to vector<8x8xf32>
    %12 = arith.subf %8, %11 : vector<8x8xf32>
    %13 = math.exp %12 : vector<8x8xf32>
    %cst_3 = arith.constant dense<0.000000e+00> : vector<8xf32>
    %14 = vector.multi_reduction <add>, %13, %cst_3 [1] : vector<8x8xf32> to vector<8xf32>
    %15 = vector.shape_cast %14 : vector<8xf32> to vector<8x1xf32>
    %16 = tpu.reciprocal %15 {approx = true} : vector<8x1xf32> -> vector<8x1xf32>
    %17 = vector.broadcast %16 : vector<8x1xf32> to vector<8x8xf32>
    %18 = arith.mulf %13, %17 : vector<8x8xf32>
    %19 = arith.truncf %18 : vector<8x8xf32> to vector<8x8xbf16>
    %cst_4 = arith.constant dense<0.000000e+00> : vector<8x16xf32>
    %20 = tpu.matmul %19, %7, %cst_4 {dimension_numbers = #tpu.dot_dimension_numbers<[1], [0], [0], [1], [0, 0, 1, 1], [], []>} : vector<8x8xbf16>, vector<8x16xbf16>, vector<8x16xf32> -> vector<8x16xf32>
    %21 = vector.extract_strided_slice %2 {offsets = [0, 16], sizes = [8, 16], strides = [1, 1]} : vector<8x64xbf16> to vector<8x16xbf16>
    %22 = vector.extract_strided_slice %3 {offsets = [0, 16], sizes = [8, 16], strides = [1, 1]} : vector<8x64xbf16> to vector<8x16xbf16>
    %23 = vector.extract_strided_slice %4 {offsets = [0, 16], sizes = [8, 16], strides = [1, 1]} : vector<8x64xbf16> to vector<8x16xbf16>
    %cst_5 = arith.constant dense<0.000000e+00> : vector<8x8xf32>
    %24 = tpu.matmul %21, %22, %cst_5 {dimension_numbers = #tpu.dot_dimension_numbers<[1], [1], [0], [0], [0, 0, 1, 0], [], []>} : vector<8x16xbf16>, vector<8x16xbf16>, vector<8x8xf32> -> vector<8x8xf32>
    %cst_6 = arith.constant dense<0xFF800000> : vector<8xf32>
    %25 = vector.multi_reduction <maximumf>, %24, %cst_6 [1] : vector<8x8xf32> to vector<8xf32>
    %26 = vector.shape_cast %25 : vector<8xf32> to vector<8x1xf32>
    %27 = vector.broadcast %26 : vector<8x1xf32> to vector<8x8xf32>
    %28 = arith.subf %24, %27 : vector<8x8xf32>
    %29 = math.exp %28 : vector<8x8xf32>
    %cst_7 = arith.constant dense<0.000000e+00> : vector<8xf32>
    %30 = vector.multi_reduction <add>, %29, %cst_7 [1] : vector<8x8xf32> to vector<8xf32>
    %31 = vector.shape_cast %30 : vector<8xf32> to vector<8x1xf32>
    %32 = tpu.reciprocal %31 {approx = true} : vector<8x1xf32> -> vector<8x1xf32>
    %33 = vector.broadcast %32 : vector<8x1xf32> to vector<8x8xf32>
    %34 = arith.mulf %29, %33 : vector<8x8xf32>
    %35 = arith.truncf %34 : vector<8x8xf32> to vector<8x8xbf16>
    %cst_8 = arith.constant dense<0.000000e+00> : vector<8x16xf32>
    %36 = tpu.matmul %35, %23, %cst_8 {dimension_numbers = #tpu.dot_dimension_numbers<[1], [0], [0], [1], [0, 0, 1, 1], [], []>} : vector<8x8xbf16>, vector<8x16xbf16>, vector<8x16xf32> -> vector<8x16xf32>
    %37 = vector.extract_strided_slice %2 {offsets = [0, 32], sizes = [8, 16], strides = [1, 1]} : vector<8x64xbf16> to vector<8x16xbf16>
    %38 = vector.extract_strided_slice %3 {offsets = [0, 32], sizes = [8, 16], strides = [1, 1]} : vector<8x64xbf16> to vector<8x16xbf16>
    %39 = vector.extract_strided_slice %4 {offsets = [0, 32], sizes = [8, 16], strides = [1, 1]} : vector<8x64xbf16> to vector<8x16xbf16>
    %cst_9 = arith.constant dense<0.000000e+00> : vector<8x8xf32>
    %40 = tpu.matmul %37, %38, %cst_9 {dimension_numbers = #tpu.dot_dimension_numbers<[1], [1], [0], [0], [0, 0, 1, 0], [], []>} : vector<8x16xbf16>, vector<8x16xbf16>, vector<8x8xf32> -> vector<8x8xf32>
    %cst_10 = arith.constant dense<0xFF800000> : vector<8xf32>
    %41 = vector.multi_reduction <maximumf>, %40, %cst_10 [1] : vector<8x8xf32> to vector<8xf32>
    %42 = vector.shape_cast %41 : vector<8xf32> to vector<8x1xf32>
    %43 = vector.broadcast %42 : vector<8x1xf32> to vector<8x8xf32>
    %44 = arith.subf %40, %43 : vector<8x8xf32>
    %45 = math.exp %44 : vector<8x8xf32>
    %cst_11 = arith.constant dense<0.000000e+00> : vector<8xf32>
    %46 = vector.multi_reduction <add>, %45, %cst_11 [1] : vector<8x8xf32> to vector<8xf32>
    %47 = vector.shape_cast %46 : vector<8xf32> to vector<8x1xf32>
    %48 = tpu.reciprocal %47 {approx = true} : vector<8x1xf32> -> vector<8x1xf32>
    %49 = vector.broadcast %48 : vector<8x1xf32> to vector<8x8xf32>
    %50 = arith.mulf %45, %49 : vector<8x8xf32>
    %51 = arith.truncf %50 : vector<8x8xf32> to vector<8x8xbf16>
    %cst_12 = arith.constant dense<0.000000e+00> : vector<8x16xf32>
    %52 = tpu.matmul %51, %39, %cst_12 {dimension_numbers = #tpu.dot_dimension_numbers<[1], [0], [0], [1], [0, 0, 1, 1], [], []>} : vector<8x8xbf16>, vector<8x16xbf16>, vector<8x16xf32> -> vector<8x16xf32>
    %53 = vector.extract_strided_slice %2 {offsets = [0, 48], sizes = [8, 16], strides = [1, 1]} : vector<8x64xbf16> to vector<8x16xbf16>
    %54 = vector.extract_strided_slice %3 {offsets = [0, 48], sizes = [8, 16], strides = [1, 1]} : vector<8x64xbf16> to vector<8x16xbf16>
    %55 = vector.extract_strided_slice %4 {offsets = [0, 48], sizes = [8, 16], strides = [1, 1]} : vector<8x64xbf16> to vector<8x16xbf16>
    %cst_13 = arith.constant dense<0.000000e+00> : vector<8x8xf32>
    %56 = tpu.matmul %53, %54, %cst_13 {dimension_numbers = #tpu.dot_dimension_numbers<[1], [1], [0], [0], [0, 0, 1, 0], [], []>} : vector<8x16xbf16>, vector<8x16xbf16>, vector<8x8xf32> -> vector<8x8xf32>
    %cst_14 = arith.constant dense<0xFF800000> : vector<8xf32>
    %57 = vector.multi_reduction <maximumf>, %56, %cst_14 [1] : vector<8x8xf32> to vector<8xf32>
    %58 = vector.shape_cast %57 : vector<8xf32> to vector<8x1xf32>
    %59 = vector.broadcast %58 : vector<8x1xf32> to vector<8x8xf32>
    %60 = arith.subf %56, %59 : vector<8x8xf32>
    %61 = math.exp %60 : vector<8x8xf32>
    %cst_15 = arith.constant dense<0.000000e+00> : vector<8xf32>
    %62 = vector.multi_reduction <add>, %61, %cst_15 [1] : vector<8x8xf32> to vector<8xf32>
    %63 = vector.shape_cast %62 : vector<8xf32> to vector<8x1xf32>
    %64 = tpu.reciprocal %63 {approx = true} : vector<8x1xf32> -> vector<8x1xf32>
    %65 = vector.broadcast %64 : vector<8x1xf32> to vector<8x8xf32>
    %66 = arith.mulf %61, %65 : vector<8x8xf32>
    %67 = arith.truncf %66 : vector<8x8xf32> to vector<8x8xbf16>
    %cst_16 = arith.constant dense<0.000000e+00> : vector<8x16xf32>
    %68 = tpu.matmul %67, %55, %cst_16 {dimension_numbers = #tpu.dot_dimension_numbers<[1], [0], [0], [1], [0, 0, 1, 1], [], []>} : vector<8x8xbf16>, vector<8x16xbf16>, vector<8x16xf32> -> vector<8x16xf32>
    %69 = tpu.concatenate %20, %36, %52, %68 in 1 : vector<8x16xf32>, vector<8x16xf32>, vector<8x16xf32>, vector<8x16xf32> -> vector<8x64xf32>
    %70 = arith.truncf %69 : vector<8x64xf32> to vector<8x64xbf16>
    %c0_17 = arith.constant 0 : index
    %c0_18 = arith.constant 0 : index
    %c0_19 = arith.constant 0 : index
    %71 = vector.load %arg2[%c0_17, %c0_18, %c0_19] : memref<1x8x64xbf16, #tpu.memory_space<vmem>>, vector<1x8x64xbf16>
    %72 = vector.shape_cast %71 : vector<1x8x64xbf16> to vector<8x64xbf16>
    %73 = vector.shape_cast %70 : vector<8x64xbf16> to vector<1x8x64xbf16>
    tpu.vector_store %arg2[%c0_17, %c0_18, %c0_19], %73 {strides = array<i32>} : memref<1x8x64xbf16, #tpu.memory_space<vmem>>, vector<1x8x64xbf16>,
    return
  }
  func.func @transform_0(%arg0: i32) -> (i32, i32, i32) {
    %c0_i32 = arith.constant 0 : i32
    %c0_i32_0 = arith.constant 0 : i32
    %c0_i32_1 = arith.constant 0 : i32
    return %arg0, %c0_i32, %c0_i32_0 : i32, i32, i32
  }
  func.func @transform_1(%arg0: i32) -> (i32, i32, i32) {
    %c0_i32 = arith.constant 0 : i32
    %c0_i32_0 = arith.constant 0 : i32
    %c0_i32_1 = arith.constant 0 : i32
    return %arg0, %c0_i32, %c0_i32_0 : i32, i32, i32
  }
}

module attributes {stable_mosaic.version = 11 : i64} {
  func.func @_ln_matmul_kernel(%arg0: i32, %arg1: i32, %arg2: memref<16x64xbf16, #tpu.memory_space<vmem>>, %arg3: memref<64x64xbf16, #tpu.memory_space<vmem>>, %arg4: memref<1x64xf32, #tpu.memory_space<vmem>>, %arg5: memref<16x64xf32, #tpu.memory_space<vmem>>, %arg6: memref<16x64xf32, #tpu.memory_space<vmem>>) attributes {dimension_semantics = [#tpu.dimension_semantics<parallel>, #tpu.dimension_semantics<parallel>], iteration_bounds = array<i64: 1, 1>, scalar_prefetch = 0 : i64, scratch_operands = 0 : i64, tpu.core_type = #tpu.core_type<tc>, window_params = [{transform_indices = @transform_0, window_bounds = array<i64: 16, 64>}, {transform_indices = @transform_1, window_bounds = array<i64: 64, 64>}, {transform_indices = @transform_2, window_bounds = array<i64: 1, 64>}, {transform_indices = @transform_3, window_bounds = array<i64: 16, 64>}, {transform_indices = @transform_4, window_bounds = array<i64: 16, 64>}]} {
    %c0 = arith.constant 0 : index
    %c0_0 = arith.constant 0 : index
    %0 = vector.load %arg2[%c0, %c0_0] : memref<16x64xbf16, #tpu.memory_space<vmem>>, vector<16x64xbf16>
    %c0_1 = arith.constant 0 : index
    %c0_2 = arith.constant 0 : index
    %1 = vector.load %arg3[%c0_1, %c0_2] : memref<64x64xbf16, #tpu.memory_space<vmem>>, vector<64x64xbf16>
    %cst = arith.constant dense<0.000000e+00> : vector<16x64xf32>
    %2 = tpu.matmul %0, %1, %cst {dimension_numbers = #tpu.dot_dimension_numbers<[1], [0], [0], [1], [0, 0, 1, 1], [], []>} : vector<16x64xbf16>, vector<64x64xbf16>, vector<16x64xf32> -> vector<16x64xf32>
    %c0_3 = arith.constant 0 : index
    %c0_4 = arith.constant 0 : index
    %3 = vector.load %arg4[%c0_3, %c0_4] : memref<1x64xf32, #tpu.memory_space<vmem>>, vector<1x64xf32>
    %4 = vector.broadcast %3 : vector<1x64xf32> to vector<16x64xf32>
    %5 = arith.addf %2, %4 : vector<16x64xf32>
    %c0_5 = arith.constant 0 : index
    %c0_6 = arith.constant 0 : index
    %6 = vector.load %arg5[%c0_5, %c0_6] : memref<16x64xf32, #tpu.memory_space<vmem>>, vector<16x64xf32>
    %7 = arith.addf %5, %6 : vector<16x64xf32>
    %c0_7 = arith.constant 0 : index
    %c0_8 = arith.constant 0 : index
    %8 = vector.load %arg6[%c0_7, %c0_8] : memref<16x64xf32, #tpu.memory_space<vmem>>, vector<16x64xf32>
    tpu.vector_store %arg6[%c0_7, %c0_8], %7 {strides = array<i32>} : memref<16x64xf32, #tpu.memory_space<vmem>>, vector<16x64xf32>,
    return
  }
  func.func @transform_0(%arg0: i32, %arg1: i32) -> (i32, i32) {
    %c0_i32 = arith.constant 0 : i32
    %c0_i32_0 = arith.constant 0 : i32
    return %arg0, %c0_i32 : i32, i32
  }
  func.func @transform_1(%arg0: i32, %arg1: i32) -> (i32, i32) {
    %c0_i32 = arith.constant 0 : i32
    %c0_i32_0 = arith.constant 0 : i32
    return %c0_i32, %arg1 : i32, i32
  }
  func.func @transform_2(%arg0: i32, %arg1: i32) -> (i32, i32) {
    %c0_i32 = arith.constant 0 : i32
    %c0_i32_0 = arith.constant 0 : i32
    return %c0_i32, %arg1 : i32, i32
  }
  func.func @transform_3(%arg0: i32, %arg1: i32) -> (i32, i32) {
    %c0_i32 = arith.constant 0 : i32
    return %arg0, %arg1 : i32, i32
  }
  func.func @transform_4(%arg0: i32, %arg1: i32) -> (i32, i32) {
    %c0_i32 = arith.constant 0 : i32
    return %arg0, %arg1 : i32, i32
  }
}

module attributes {stable_mosaic.version = 11 : i64} {
  func.func @_ln_matmul_kernel(%arg0: i32, %arg1: i32, %arg2: memref<16x64xf32, #tpu.memory_space<vmem>>, %arg3: memref<1x64xf32, #tpu.memory_space<vmem>>, %arg4: memref<1x64xf32, #tpu.memory_space<vmem>>, %arg5: memref<64x64xbf16, #tpu.memory_space<vmem>>, %arg6: memref<1x64xf32, #tpu.memory_space<vmem>>, %arg7: memref<16x64xbf16, #tpu.memory_space<vmem>>) attributes {dimension_semantics = [#tpu.dimension_semantics<parallel>, #tpu.dimension_semantics<parallel>], iteration_bounds = array<i64: 1, 1>, scalar_prefetch = 0 : i64, scratch_operands = 0 : i64, tpu.core_type = #tpu.core_type<tc>, window_params = [{transform_indices = @transform_0, window_bounds = array<i64: 16, 64>}, {pipeline_mode = #tpu.pipeline_mode<synchronous>, transform_indices = @transform_1, window_bounds = array<i64: 1, 64>}, {pipeline_mode = #tpu.pipeline_mode<synchronous>, transform_indices = @transform_2, window_bounds = array<i64: 1, 64>}, {transform_indices = @transform_3, window_bounds = array<i64: 64, 64>}, {transform_indices = @transform_4, window_bounds = array<i64: 1, 64>}, {transform_indices = @transform_5, window_bounds = array<i64: 16, 64>}]} {
    %c0 = arith.constant 0 : index
    %c0_0 = arith.constant 0 : index
    %0 = vector.load %arg2[%c0, %c0_0] : memref<16x64xf32, #tpu.memory_space<vmem>>, vector<16x64xf32>
    %cst = arith.constant dense<0.000000e+00> : vector<16xf32>
    %1 = vector.multi_reduction <add>, %0, %cst [1] : vector<16x64xf32> to vector<16xf32>
    %2 = vector.shape_cast %1 : vector<16xf32> to vector<16x1xf32>
    %cst_1 = arith.constant 6.400000e+01 : f32
    %3 = vector.broadcast %cst_1 : f32 to vector<16x1xf32>
    %4 = arith.divf %2, %3 : vector<16x1xf32>
    %5 = vector.broadcast %4 : vector<16x1xf32> to vector<16x64xf32>
    %6 = arith.subf %0, %5 : vector<16x64xf32>
    %7 = arith.mulf %6, %6 : vector<16x64xf32>
    %cst_2 = arith.constant dense<0.000000e+00> : vector<16xf32>
    %8 = vector.multi_reduction <add>, %7, %cst_2 [1] : vector<16x64xf32> to vector<16xf32>
    %9 = vector.shape_cast %8 : vector<16xf32> to vector<16x1xf32>
    %cst_3 = arith.constant 6.400000e+01 : f32
    %10 = vector.broadcast %cst_3 : f32 to vector<16x1xf32>
    %11 = arith.divf %9, %10 : vector<16x1xf32>
    %cst_4 = arith.constant 9.99999974E-6 : f32
    %12 = vector.broadcast %cst_4 : f32 to vector<16x1xf32>
    %13 = arith.addf %11, %12 : vector<16x1xf32>
    %14 = math.rsqrt %13 : vector<16x1xf32>
    %15 = vector.broadcast %14 : vector<16x1xf32> to vector<16x64xf32>
    %16 = arith.mulf %6, %15 : vector<16x64xf32>
    %c0_5 = arith.constant 0 : index
    %c0_6 = arith.constant 0 : index
    %17 = vector.load %arg3[%c0_5, %c0_6] : memref<1x64xf32, #tpu.memory_space<vmem>>, vector<1x64xf32>
    %18 = vector.broadcast %17 : vector<1x64xf32> to vector<16x64xf32>
    %19 = arith.mulf %16, %18 : vector<16x64xf32>
    %c0_7 = arith.constant 0 : index
    %c0_8 = arith.constant 0 : index
    %20 = vector.load %arg4[%c0_7, %c0_8] : memref<1x64xf32, #tpu.memory_space<vmem>>, vector<1x64xf32>
    %21 = vector.broadcast %20 : vector<1x64xf32> to vector<16x64xf32>
    %22 = arith.addf %19, %21 : vector<16x64xf32>
    %23 = arith.truncf %22 : vector<16x64xf32> to vector<16x64xbf16>
    %c0_9 = arith.constant 0 : index
    %c0_10 = arith.constant 0 : index
    %24 = vector.load %arg5[%c0_9, %c0_10] : memref<64x64xbf16, #tpu.memory_space<vmem>>, vector<64x64xbf16>
    %cst_11 = arith.constant dense<0.000000e+00> : vector<16x64xf32>
    %25 = tpu.matmul %23, %24, %cst_11 {dimension_numbers = #tpu.dot_dimension_numbers<[1], [0], [0], [1], [0, 0, 1, 1], [], []>} : vector<16x64xbf16>, vector<64x64xbf16>, vector<16x64xf32> -> vector<16x64xf32>
    %c0_12 = arith.constant 0 : index
    %c0_13 = arith.constant 0 : index
    %26 = vector.load %arg6[%c0_12, %c0_13] : memref<1x64xf32, #tpu.memory_space<vmem>>, vector<1x64xf32>
    %27 = vector.broadcast %26 : vector<1x64xf32> to vector<16x64xf32>
    %28 = arith.addf %25, %27 : vector<16x64xf32>
    %29 = arith.truncf %28 : vector<16x64xf32> to vector<16x64xbf16>
    %c0_14 = arith.constant 0 : index
    %c0_15 = arith.constant 0 : index
    %30 = vector.load %arg7[%c0_14, %c0_15] : memref<16x64xbf16, #tpu.memory_space<vmem>>, vector<16x64xbf16>
    tpu.vector_store %arg7[%c0_14, %c0_15], %29 {strides = array<i32>} : memref<16x64xbf16, #tpu.memory_space<vmem>>, vector<16x64xbf16>,
    return
  }
  func.func @transform_0(%arg0: i32, %arg1: i32) -> (i32, i32) {
    %c0_i32 = arith.constant 0 : i32
    %c0_i32_0 = arith.constant 0 : i32
    return %arg0, %c0_i32 : i32, i32
  }
  func.func @transform_1(%arg0: i32, %arg1: i32) -> (i32, i32) {
    %c0_i32 = arith.constant 0 : i32
    %c0_i32_0 = arith.constant 0 : i32
    %c0_i32_1 = arith.constant 0 : i32
    return %c0_i32, %c0_i32_0 : i32, i32
  }
  func.func @transform_2(%arg0: i32, %arg1: i32) -> (i32, i32) {
    %c0_i32 = arith.constant 0 : i32
    %c0_i32_0 = arith.constant 0 : i32
    %c0_i32_1 = arith.constant 0 : i32
    return %c0_i32, %c0_i32_0 : i32, i32
  }
  func.func @transform_3(%arg0: i32, %arg1: i32) -> (i32, i32) {
    %c0_i32 = arith.constant 0 : i32
    %c0_i32_0 = arith.constant 0 : i32
    return %c0_i32, %arg1 : i32, i32
  }
  func.func @transform_4(%arg0: i32, %arg1: i32) -> (i32, i32) {
    %c0_i32 = arith.constant 0 : i32
    %c0_i32_0 = arith.constant 0 : i32
    return %c0_i32, %arg1 : i32, i32
  }
  func.func @transform_5(%arg0: i32, %arg1: i32) -> (i32, i32) {
    %c0_i32 = arith.constant 0 : i32
    return %arg0, %arg1 : i32, i32
  }
}

module attributes {stable_mosaic.version = 11 : i64} {
  func.func @_ln_matmul_kernel(%arg0: i32, %arg1: i32, %arg2: memref<16x64xf32, #tpu.memory_space<vmem>>, %arg3: memref<1x64xf32, #tpu.memory_space<vmem>>, %arg4: memref<1x64xf32, #tpu.memory_space<vmem>>, %arg5: memref<64x192xbf16, #tpu.memory_space<vmem>>, %arg6: memref<1x192xf32, #tpu.memory_space<vmem>>, %arg7: memref<16x192xbf16, #tpu.memory_space<vmem>>) attributes {dimension_semantics = [#tpu.dimension_semantics<parallel>, #tpu.dimension_semantics<parallel>], iteration_bounds = array<i64: 1, 1>, scalar_prefetch = 0 : i64, scratch_operands = 0 : i64, tpu.core_type = #tpu.core_type<tc>, window_params = [{transform_indices = @transform_0, window_bounds = array<i64: 16, 64>}, {pipeline_mode = #tpu.pipeline_mode<synchronous>, transform_indices = @transform_1, window_bounds = array<i64: 1, 64>}, {pipeline_mode = #tpu.pipeline_mode<synchronous>, transform_indices = @transform_2, window_bounds = array<i64: 1, 64>}, {transform_indices = @transform_3, window_bounds = array<i64: 64, 192>}, {transform_indices = @transform_4, window_bounds = array<i64: 1, 192>}, {transform_indices = @transform_5, window_bounds = array<i64: 16, 192>}]} {
    %c0 = arith.constant 0 : index
    %c0_0 = arith.constant 0 : index
    %0 = vector.load %arg2[%c0, %c0_0] : memref<16x64xf32, #tpu.memory_space<vmem>>, vector<16x64xf32>
    %cst = arith.constant dense<0.000000e+00> : vector<16xf32>
    %1 = vector.multi_reduction <add>, %0, %cst [1] : vector<16x64xf32> to vector<16xf32>
    %2 = vector.shape_cast %1 : vector<16xf32> to vector<16x1xf32>
    %cst_1 = arith.constant 6.400000e+01 : f32
    %3 = vector.broadcast %cst_1 : f32 to vector<16x1xf32>
    %4 = arith.divf %2, %3 : vector<16x1xf32>
    %5 = vector.broadcast %4 : vector<16x1xf32> to vector<16x64xf32>
    %6 = arith.subf %0, %5 : vector<16x64xf32>
    %7 = arith.mulf %6, %6 : vector<16x64xf32>
    %cst_2 = arith.constant dense<0.000000e+00> : vector<16xf32>
    %8 = vector.multi_reduction <add>, %7, %cst_2 [1] : vector<16x64xf32> to vector<16xf32>
    %9 = vector.shape_cast %8 : vector<16xf32> to vector<16x1xf32>
    %cst_3 = arith.constant 6.400000e+01 : f32
    %10 = vector.broadcast %cst_3 : f32 to vector<16x1xf32>
    %11 = arith.divf %9, %10 : vector<16x1xf32>
    %cst_4 = arith.constant 9.99999974E-6 : f32
    %12 = vector.broadcast %cst_4 : f32 to vector<16x1xf32>
    %13 = arith.addf %11, %12 : vector<16x1xf32>
    %14 = math.rsqrt %13 : vector<16x1xf32>
    %15 = vector.broadcast %14 : vector<16x1xf32> to vector<16x64xf32>
    %16 = arith.mulf %6, %15 : vector<16x64xf32>
    %c0_5 = arith.constant 0 : index
    %c0_6 = arith.constant 0 : index
    %17 = vector.load %arg3[%c0_5, %c0_6] : memref<1x64xf32, #tpu.memory_space<vmem>>, vector<1x64xf32>
    %18 = vector.broadcast %17 : vector<1x64xf32> to vector<16x64xf32>
    %19 = arith.mulf %16, %18 : vector<16x64xf32>
    %c0_7 = arith.constant 0 : index
    %c0_8 = arith.constant 0 : index
    %20 = vector.load %arg4[%c0_7, %c0_8] : memref<1x64xf32, #tpu.memory_space<vmem>>, vector<1x64xf32>
    %21 = vector.broadcast %20 : vector<1x64xf32> to vector<16x64xf32>
    %22 = arith.addf %19, %21 : vector<16x64xf32>
    %23 = arith.truncf %22 : vector<16x64xf32> to vector<16x64xbf16>
    %c0_9 = arith.constant 0 : index
    %c0_10 = arith.constant 0 : index
    %24 = vector.load %arg5[%c0_9, %c0_10] : memref<64x192xbf16, #tpu.memory_space<vmem>>, vector<64x192xbf16>
    %cst_11 = arith.constant dense<0.000000e+00> : vector<16x192xf32>
    %25 = tpu.matmul %23, %24, %cst_11 {dimension_numbers = #tpu.dot_dimension_numbers<[1], [0], [0], [1], [0, 0, 1, 1], [], []>} : vector<16x64xbf16>, vector<64x192xbf16>, vector<16x192xf32> -> vector<16x192xf32>
    %c0_12 = arith.constant 0 : index
    %c0_13 = arith.constant 0 : index
    %26 = vector.load %arg6[%c0_12, %c0_13] : memref<1x192xf32, #tpu.memory_space<vmem>>, vector<1x192xf32>
    %27 = vector.broadcast %26 : vector<1x192xf32> to vector<16x192xf32>
    %28 = arith.addf %25, %27 : vector<16x192xf32>
    %29 = arith.truncf %28 : vector<16x192xf32> to vector<16x192xbf16>
    %c0_14 = arith.constant 0 : index
    %c0_15 = arith.constant 0 : index
    %30 = vector.load %arg7[%c0_14, %c0_15] : memref<16x192xbf16, #tpu.memory_space<vmem>>, vector<16x192xbf16>
    tpu.vector_store %arg7[%c0_14, %c0_15], %29 {strides = array<i32>} : memref<16x192xbf16, #tpu.memory_space<vmem>>, vector<16x192xbf16>,
    return
  }
  func.func @transform_0(%arg0: i32, %arg1: i32) -> (i32, i32) {
    %c0_i32 = arith.constant 0 : i32
    %c0_i32_0 = arith.constant 0 : i32
    return %arg0, %c0_i32 : i32, i32
  }
  func.func @transform_1(%arg0: i32, %arg1: i32) -> (i32, i32) {
    %c0_i32 = arith.constant 0 : i32
    %c0_i32_0 = arith.constant 0 : i32
    %c0_i32_1 = arith.constant 0 : i32
    return %c0_i32, %c0_i32_0 : i32, i32
  }
  func.func @transform_2(%arg0: i32, %arg1: i32) -> (i32, i32) {
    %c0_i32 = arith.constant 0 : i32
    %c0_i32_0 = arith.constant 0 : i32
    %c0_i32_1 = arith.constant 0 : i32
    return %c0_i32, %c0_i32_0 : i32, i32
  }
  func.func @transform_3(%arg0: i32, %arg1: i32) -> (i32, i32) {
    %c0_i32 = arith.constant 0 : i32
    %c0_i32_0 = arith.constant 0 : i32
    return %c0_i32, %arg1 : i32, i32
  }
  func.func @transform_4(%arg0: i32, %arg1: i32) -> (i32, i32) {
    %c0_i32 = arith.constant 0 : i32
    %c0_i32_0 = arith.constant 0 : i32
    return %c0_i32, %arg1 : i32, i32
  }
  func.func @transform_5(%arg0: i32, %arg1: i32) -> (i32, i32) {
    %c0_i32 = arith.constant 0 : i32
    return %arg0, %arg1 : i32, i32
  }
}

module attributes {stable_mosaic.version = 11 : i64} {
  func.func @_ln_matmul_kernel(%arg0: i32, %arg1: i32, %arg2: memref<32x48xf32, #tpu.memory_space<vmem>>, %arg3: memref<48x128xbf16, #tpu.memory_space<vmem>>, %arg4: memref<1x128xf32, #tpu.memory_space<vmem>>, %arg5: memref<32x128xbf16, #tpu.memory_space<vmem>>) attributes {dimension_semantics = [#tpu.dimension_semantics<parallel>, #tpu.dimension_semantics<parallel>], iteration_bounds = array<i64: 1, 1>, scalar_prefetch = 0 : i64, scratch_operands = 0 : i64, tpu.core_type = #tpu.core_type<tc>, window_params = [{transform_indices = @transform_0, window_bounds = array<i64: 32, 48>}, {transform_indices = @transform_1, window_bounds = array<i64: 48, 128>}, {transform_indices = @transform_2, window_bounds = array<i64: 1, 128>}, {transform_indices = @transform_3, window_bounds = array<i64: 32, 128>}]} {
    %c0 = arith.constant 0 : index
    %c0_0 = arith.constant 0 : index
    %0 = vector.load %arg2[%c0, %c0_0] : memref<32x48xf32, #tpu.memory_space<vmem>>, vector<32x48xf32>
    %1 = arith.truncf %0 : vector<32x48xf32> to vector<32x48xbf16>
    %c0_1 = arith.constant 0 : index
    %c0_2 = arith.constant 0 : index
    %2 = vector.load %arg3[%c0_1, %c0_2] : memref<48x128xbf16, #tpu.memory_space<vmem>>, vector<48x128xbf16>
    %cst = arith.constant dense<0.000000e+00> : vector<32x128xf32>
    %3 = tpu.matmul %1, %2, %cst {dimension_numbers = #tpu.dot_dimension_numbers<[1], [0], [0], [1], [0, 0, 1, 1], [], []>} : vector<32x48xbf16>, vector<48x128xbf16>, vector<32x128xf32> -> vector<32x128xf32>
    %c0_3 = arith.constant 0 : index
    %c0_4 = arith.constant 0 : index
    %4 = vector.load %arg4[%c0_3, %c0_4] : memref<1x128xf32, #tpu.memory_space<vmem>>, vector<1x128xf32>
    %5 = vector.broadcast %4 : vector<1x128xf32> to vector<32x128xf32>
    %6 = arith.addf %3, %5 : vector<32x128xf32>
    %7 = arith.truncf %6 : vector<32x128xf32> to vector<32x128xbf16>
    %c0_5 = arith.constant 0 : index
    %c0_6 = arith.constant 0 : index
    %8 = vector.load %arg5[%c0_5, %c0_6] : memref<32x128xbf16, #tpu.memory_space<vmem>>, vector<32x128xbf16>
    tpu.vector_store %arg5[%c0_5, %c0_6], %7 {strides = array<i32>} : memref<32x128xbf16, #tpu.memory_space<vmem>>, vector<32x128xbf16>,
    return
  }
  func.func @transform_0(%arg0: i32, %arg1: i32) -> (i32, i32) {
    %c0_i32 = arith.constant 0 : i32
    %c0_i32_0 = arith.constant 0 : i32
    return %arg0, %c0_i32 : i32, i32
  }
  func.func @transform_1(%arg0: i32, %arg1: i32) -> (i32, i32) {
    %c0_i32 = arith.constant 0 : i32
    %c0_i32_0 = arith.constant 0 : i32
    return %c0_i32, %arg1 : i32, i32
  }
  func.func @transform_2(%arg0: i32, %arg1: i32) -> (i32, i32) {
    %c0_i32 = arith.constant 0 : i32
    %c0_i32_0 = arith.constant 0 : i32
    return %c0_i32, %arg1 : i32, i32
  }
  func.func @transform_3(%arg0: i32, %arg1: i32) -> (i32, i32) {
    %c0_i32 = arith.constant 0 : i32
    return %arg0, %arg1 : i32, i32
  }
}

module attributes {stable_mosaic.version = 11 : i64} {
  func.func @_cross_attn_kernel(%arg0: i32, %arg1: memref<1x8x64xbf16, #tpu.memory_space<vmem>>, %arg2: memref<1x16x128xbf16, #tpu.memory_space<vmem>>, %arg3: memref<1x8x64xbf16, #tpu.memory_space<vmem>>) attributes {dimension_semantics = [#tpu.dimension_semantics<parallel>], iteration_bounds = array<i64: 2>, scalar_prefetch = 0 : i64, scratch_operands = 0 : i64, tpu.core_type = #tpu.core_type<tc>, window_params = [{transform_indices = @transform_0, window_bounds = array<i64: 1, 8, 64>}, {transform_indices = @transform_1, window_bounds = array<i64: 1, 16, 128>}, {transform_indices = @transform_2, window_bounds = array<i64: 1, 8, 64>}]} {
    %c0 = arith.constant 0 : index
    %c0_0 = arith.constant 0 : index
    %c0_1 = arith.constant 0 : index
    %0 = vector.load %arg1[%c0, %c0_0, %c0_1] : memref<1x8x64xbf16, #tpu.memory_space<vmem>>, vector<1x8x64xbf16>
    %1 = vector.shape_cast %0 : vector<1x8x64xbf16> to vector<8x64xbf16>
    %c0_2 = arith.constant 0 : index
    %c0_3 = arith.constant 0 : index
    %c0_4 = arith.constant 0 : index
    %2 = vector.load %arg2[%c0_2, %c0_3, %c0_4] : memref<1x16x128xbf16, #tpu.memory_space<vmem>>, vector<1x16x128xbf16>
    %3 = vector.shape_cast %2 : vector<1x16x128xbf16> to vector<16x128xbf16>
    %4 = vector.extract_strided_slice %3 {offsets = [0, 0], sizes = [16, 64], strides = [1, 1]} : vector<16x128xbf16> to vector<16x64xbf16>
    %5 = vector.extract_strided_slice %3 {offsets = [0, 64], sizes = [16, 64], strides = [1, 1]} : vector<16x128xbf16> to vector<16x64xbf16>
    %6 = vector.extract_strided_slice %1 {offsets = [0, 0], sizes = [8, 16], strides = [1, 1]} : vector<8x64xbf16> to vector<8x16xbf16>
    %7 = vector.extract_strided_slice %4 {offsets = [0, 0], sizes = [16, 16], strides = [1, 1]} : vector<16x64xbf16> to vector<16x16xbf16>
    %8 = vector.extract_strided_slice %5 {offsets = [0, 0], sizes = [16, 16], strides = [1, 1]} : vector<16x64xbf16> to vector<16x16xbf16>
    %cst = arith.constant dense<0.000000e+00> : vector<8x16xf32>
    %9 = tpu.matmul %6, %7, %cst {dimension_numbers = #tpu.dot_dimension_numbers<[1], [1], [0], [0], [0, 0, 1, 0], [], []>} : vector<8x16xbf16>, vector<16x16xbf16>, vector<8x16xf32> -> vector<8x16xf32>
    %cst_5 = arith.constant dense<0xFF800000> : vector<8xf32>
    %10 = vector.multi_reduction <maximumf>, %9, %cst_5 [1] : vector<8x16xf32> to vector<8xf32>
    %11 = vector.shape_cast %10 : vector<8xf32> to vector<8x1xf32>
    %12 = vector.broadcast %11 : vector<8x1xf32> to vector<8x16xf32>
    %13 = arith.subf %9, %12 : vector<8x16xf32>
    %14 = math.exp %13 : vector<8x16xf32>
    %cst_6 = arith.constant dense<0.000000e+00> : vector<8xf32>
    %15 = vector.multi_reduction <add>, %14, %cst_6 [1] : vector<8x16xf32> to vector<8xf32>
    %16 = vector.shape_cast %15 : vector<8xf32> to vector<8x1xf32>
    %17 = tpu.reciprocal %16 {approx = true} : vector<8x1xf32> -> vector<8x1xf32>
    %18 = vector.broadcast %17 : vector<8x1xf32> to vector<8x16xf32>
    %19 = arith.mulf %14, %18 : vector<8x16xf32>
    %20 = arith.truncf %19 : vector<8x16xf32> to vector<8x16xbf16>
    %cst_7 = arith.constant dense<0.000000e+00> : vector<8x16xf32>
    %21 = tpu.matmul %20, %8, %cst_7 {dimension_numbers = #tpu.dot_dimension_numbers<[1], [0], [0], [1], [0, 0, 1, 1], [], []>} : vector<8x16xbf16>, vector<16x16xbf16>, vector<8x16xf32> -> vector<8x16xf32>
    %22 = vector.extract_strided_slice %1 {offsets = [0, 16], sizes = [8, 16], strides = [1, 1]} : vector<8x64xbf16> to vector<8x16xbf16>
    %23 = vector.extract_strided_slice %4 {offsets = [0, 16], sizes = [16, 16], strides = [1, 1]} : vector<16x64xbf16> to vector<16x16xbf16>
    %24 = vector.extract_strided_slice %5 {offsets = [0, 16], sizes = [16, 16], strides = [1, 1]} : vector<16x64xbf16> to vector<16x16xbf16>
    %cst_8 = arith.constant dense<0.000000e+00> : vector<8x16xf32>
    %25 = tpu.matmul %22, %23, %cst_8 {dimension_numbers = #tpu.dot_dimension_numbers<[1], [1], [0], [0], [0, 0, 1, 0], [], []>} : vector<8x16xbf16>, vector<16x16xbf16>, vector<8x16xf32> -> vector<8x16xf32>
    %cst_9 = arith.constant dense<0xFF800000> : vector<8xf32>
    %26 = vector.multi_reduction <maximumf>, %25, %cst_9 [1] : vector<8x16xf32> to vector<8xf32>
    %27 = vector.shape_cast %26 : vector<8xf32> to vector<8x1xf32>
    %28 = vector.broadcast %27 : vector<8x1xf32> to vector<8x16xf32>
    %29 = arith.subf %25, %28 : vector<8x16xf32>
    %30 = math.exp %29 : vector<8x16xf32>
    %cst_10 = arith.constant dense<0.000000e+00> : vector<8xf32>
    %31 = vector.multi_reduction <add>, %30, %cst_10 [1] : vector<8x16xf32> to vector<8xf32>
    %32 = vector.shape_cast %31 : vector<8xf32> to vector<8x1xf32>
    %33 = tpu.reciprocal %32 {approx = true} : vector<8x1xf32> -> vector<8x1xf32>
    %34 = vector.broadcast %33 : vector<8x1xf32> to vector<8x16xf32>
    %35 = arith.mulf %30, %34 : vector<8x16xf32>
    %36 = arith.truncf %35 : vector<8x16xf32> to vector<8x16xbf16>
    %cst_11 = arith.constant dense<0.000000e+00> : vector<8x16xf32>
    %37 = tpu.matmul %36, %24, %cst_11 {dimension_numbers = #tpu.dot_dimension_numbers<[1], [0], [0], [1], [0, 0, 1, 1], [], []>} : vector<8x16xbf16>, vector<16x16xbf16>, vector<8x16xf32> -> vector<8x16xf32>
    %38 = vector.extract_strided_slice %1 {offsets = [0, 32], sizes = [8, 16], strides = [1, 1]} : vector<8x64xbf16> to vector<8x16xbf16>
    %39 = vector.extract_strided_slice %4 {offsets = [0, 32], sizes = [16, 16], strides = [1, 1]} : vector<16x64xbf16> to vector<16x16xbf16>
    %40 = vector.extract_strided_slice %5 {offsets = [0, 32], sizes = [16, 16], strides = [1, 1]} : vector<16x64xbf16> to vector<16x16xbf16>
    %cst_12 = arith.constant dense<0.000000e+00> : vector<8x16xf32>
    %41 = tpu.matmul %38, %39, %cst_12 {dimension_numbers = #tpu.dot_dimension_numbers<[1], [1], [0], [0], [0, 0, 1, 0], [], []>} : vector<8x16xbf16>, vector<16x16xbf16>, vector<8x16xf32> -> vector<8x16xf32>
    %cst_13 = arith.constant dense<0xFF800000> : vector<8xf32>
    %42 = vector.multi_reduction <maximumf>, %41, %cst_13 [1] : vector<8x16xf32> to vector<8xf32>
    %43 = vector.shape_cast %42 : vector<8xf32> to vector<8x1xf32>
    %44 = vector.broadcast %43 : vector<8x1xf32> to vector<8x16xf32>
    %45 = arith.subf %41, %44 : vector<8x16xf32>
    %46 = math.exp %45 : vector<8x16xf32>
    %cst_14 = arith.constant dense<0.000000e+00> : vector<8xf32>
    %47 = vector.multi_reduction <add>, %46, %cst_14 [1] : vector<8x16xf32> to vector<8xf32>
    %48 = vector.shape_cast %47 : vector<8xf32> to vector<8x1xf32>
    %49 = tpu.reciprocal %48 {approx = true} : vector<8x1xf32> -> vector<8x1xf32>
    %50 = vector.broadcast %49 : vector<8x1xf32> to vector<8x16xf32>
    %51 = arith.mulf %46, %50 : vector<8x16xf32>
    %52 = arith.truncf %51 : vector<8x16xf32> to vector<8x16xbf16>
    %cst_15 = arith.constant dense<0.000000e+00> : vector<8x16xf32>
    %53 = tpu.matmul %52, %40, %cst_15 {dimension_numbers = #tpu.dot_dimension_numbers<[1], [0], [0], [1], [0, 0, 1, 1], [], []>} : vector<8x16xbf16>, vector<16x16xbf16>, vector<8x16xf32> -> vector<8x16xf32>
    %54 = vector.extract_strided_slice %1 {offsets = [0, 48], sizes = [8, 16], strides = [1, 1]} : vector<8x64xbf16> to vector<8x16xbf16>
    %55 = vector.extract_strided_slice %4 {offsets = [0, 48], sizes = [16, 16], strides = [1, 1]} : vector<16x64xbf16> to vector<16x16xbf16>
    %56 = vector.extract_strided_slice %5 {offsets = [0, 48], sizes = [16, 16], strides = [1, 1]} : vector<16x64xbf16> to vector<16x16xbf16>
    %cst_16 = arith.constant dense<0.000000e+00> : vector<8x16xf32>
    %57 = tpu.matmul %54, %55, %cst_16 {dimension_numbers = #tpu.dot_dimension_numbers<[1], [1], [0], [0], [0, 0, 1, 0], [], []>} : vector<8x16xbf16>, vector<16x16xbf16>, vector<8x16xf32> -> vector<8x16xf32>
    %cst_17 = arith.constant dense<0xFF800000> : vector<8xf32>
    %58 = vector.multi_reduction <maximumf>, %57, %cst_17 [1] : vector<8x16xf32> to vector<8xf32>
    %59 = vector.shape_cast %58 : vector<8xf32> to vector<8x1xf32>
    %60 = vector.broadcast %59 : vector<8x1xf32> to vector<8x16xf32>
    %61 = arith.subf %57, %60 : vector<8x16xf32>
    %62 = math.exp %61 : vector<8x16xf32>
    %cst_18 = arith.constant dense<0.000000e+00> : vector<8xf32>
    %63 = vector.multi_reduction <add>, %62, %cst_18 [1] : vector<8x16xf32> to vector<8xf32>
    %64 = vector.shape_cast %63 : vector<8xf32> to vector<8x1xf32>
    %65 = tpu.reciprocal %64 {approx = true} : vector<8x1xf32> -> vector<8x1xf32>
    %66 = vector.broadcast %65 : vector<8x1xf32> to vector<8x16xf32>
    %67 = arith.mulf %62, %66 : vector<8x16xf32>
    %68 = arith.truncf %67 : vector<8x16xf32> to vector<8x16xbf16>
    %cst_19 = arith.constant dense<0.000000e+00> : vector<8x16xf32>
    %69 = tpu.matmul %68, %56, %cst_19 {dimension_numbers = #tpu.dot_dimension_numbers<[1], [0], [0], [1], [0, 0, 1, 1], [], []>} : vector<8x16xbf16>, vector<16x16xbf16>, vector<8x16xf32> -> vector<8x16xf32>
    %70 = tpu.concatenate %21, %37, %53, %69 in 1 : vector<8x16xf32>, vector<8x16xf32>, vector<8x16xf32>, vector<8x16xf32> -> vector<8x64xf32>
    %71 = arith.truncf %70 : vector<8x64xf32> to vector<8x64xbf16>
    %c0_20 = arith.constant 0 : index
    %c0_21 = arith.constant 0 : index
    %c0_22 = arith.constant 0 : index
    %72 = vector.load %arg3[%c0_20, %c0_21, %c0_22] : memref<1x8x64xbf16, #tpu.memory_space<vmem>>, vector<1x8x64xbf16>
    %73 = vector.shape_cast %72 : vector<1x8x64xbf16> to vector<8x64xbf16>
    %74 = vector.shape_cast %71 : vector<8x64xbf16> to vector<1x8x64xbf16>
    tpu.vector_store %arg3[%c0_20, %c0_21, %c0_22], %74 {strides = array<i32>} : memref<1x8x64xbf16, #tpu.memory_space<vmem>>, vector<1x8x64xbf16>,
    return
  }
  func.func @transform_0(%arg0: i32) -> (i32, i32, i32) {
    %c0_i32 = arith.constant 0 : i32
    %c0_i32_0 = arith.constant 0 : i32
    %c0_i32_1 = arith.constant 0 : i32
    return %arg0, %c0_i32, %c0_i32_0 : i32, i32, i32
  }
  func.func @transform_1(%arg0: i32) -> (i32, i32, i32) {
    %c0_i32 = arith.constant 0 : i32
    %c0_i32_0 = arith.constant 0 : i32
    %c0_i32_1 = arith.constant 0 : i32
    return %arg0, %c0_i32, %c0_i32_0 : i32, i32, i32
  }
  func.func @transform_2(%arg0: i32) -> (i32, i32, i32) {
    %c0_i32 = arith.constant 0 : i32
    %c0_i32_0 = arith.constant 0 : i32
    %c0_i32_1 = arith.constant 0 : i32
    return %arg0, %c0_i32, %c0_i32_0 : i32, i32, i32
  }
}

module attributes {stable_mosaic.version = 11 : i64} {
  func.func @_ln_geglu_kernel(%arg0: i32, %arg1: i32, %arg2: memref<16x64xf32, #tpu.memory_space<vmem>>, %arg3: memref<1x64xf32, #tpu.memory_space<vmem>>, %arg4: memref<1x64xf32, #tpu.memory_space<vmem>>, %arg5: memref<64x512xbf16, #tpu.memory_space<vmem>>, %arg6: memref<1x512xf32, #tpu.memory_space<vmem>>, %arg7: memref<16x256xbf16, #tpu.memory_space<vmem>>) attributes {dimension_semantics = [#tpu.dimension_semantics<parallel>, #tpu.dimension_semantics<parallel>], iteration_bounds = array<i64: 1, 1>, scalar_prefetch = 0 : i64, scratch_operands = 0 : i64, tpu.core_type = #tpu.core_type<tc>, window_params = [{transform_indices = @transform_0, window_bounds = array<i64: 16, 64>}, {pipeline_mode = #tpu.pipeline_mode<synchronous>, transform_indices = @transform_1, window_bounds = array<i64: 1, 64>}, {pipeline_mode = #tpu.pipeline_mode<synchronous>, transform_indices = @transform_2, window_bounds = array<i64: 1, 64>}, {transform_indices = @transform_3, window_bounds = array<i64: 64, 512>}, {transform_indices = @transform_4, window_bounds = array<i64: 1, 512>}, {transform_indices = @transform_5, window_bounds = array<i64: 16, 256>}]} {
    %c0 = arith.constant 0 : index
    %c0_0 = arith.constant 0 : index
    %0 = vector.load %arg2[%c0, %c0_0] : memref<16x64xf32, #tpu.memory_space<vmem>>, vector<16x64xf32>
    %cst = arith.constant dense<0.000000e+00> : vector<16xf32>
    %1 = vector.multi_reduction <add>, %0, %cst [1] : vector<16x64xf32> to vector<16xf32>
    %2 = vector.shape_cast %1 : vector<16xf32> to vector<16x1xf32>
    %cst_1 = arith.constant 6.400000e+01 : f32
    %3 = vector.broadcast %cst_1 : f32 to vector<16x1xf32>
    %4 = arith.divf %2, %3 : vector<16x1xf32>
    %5 = vector.broadcast %4 : vector<16x1xf32> to vector<16x64xf32>
    %6 = arith.subf %0, %5 : vector<16x64xf32>
    %7 = arith.mulf %6, %6 : vector<16x64xf32>
    %cst_2 = arith.constant dense<0.000000e+00> : vector<16xf32>
    %8 = vector.multi_reduction <add>, %7, %cst_2 [1] : vector<16x64xf32> to vector<16xf32>
    %9 = vector.shape_cast %8 : vector<16xf32> to vector<16x1xf32>
    %cst_3 = arith.constant 6.400000e+01 : f32
    %10 = vector.broadcast %cst_3 : f32 to vector<16x1xf32>
    %11 = arith.divf %9, %10 : vector<16x1xf32>
    %cst_4 = arith.constant 9.99999974E-6 : f32
    %12 = vector.broadcast %cst_4 : f32 to vector<16x1xf32>
    %13 = arith.addf %11, %12 : vector<16x1xf32>
    %14 = math.rsqrt %13 : vector<16x1xf32>
    %15 = vector.broadcast %14 : vector<16x1xf32> to vector<16x64xf32>
    %16 = arith.mulf %6, %15 : vector<16x64xf32>
    %c0_5 = arith.constant 0 : index
    %c0_6 = arith.constant 0 : index
    %17 = vector.load %arg3[%c0_5, %c0_6] : memref<1x64xf32, #tpu.memory_space<vmem>>, vector<1x64xf32>
    %18 = vector.broadcast %17 : vector<1x64xf32> to vector<16x64xf32>
    %19 = arith.mulf %16, %18 : vector<16x64xf32>
    %c0_7 = arith.constant 0 : index
    %c0_8 = arith.constant 0 : index
    %20 = vector.load %arg4[%c0_7, %c0_8] : memref<1x64xf32, #tpu.memory_space<vmem>>, vector<1x64xf32>
    %21 = vector.broadcast %20 : vector<1x64xf32> to vector<16x64xf32>
    %22 = arith.addf %19, %21 : vector<16x64xf32>
    %23 = arith.truncf %22 : vector<16x64xf32> to vector<16x64xbf16>
    %c0_9 = arith.constant 0 : index
    %c0_10 = arith.constant 0 : index
    %24 = vector.load %arg5[%c0_9, %c0_10] : memref<64x512xbf16, #tpu.memory_space<vmem>>, vector<64x512xbf16>
    %cst_11 = arith.constant dense<0.000000e+00> : vector<16x512xf32>
    %25 = tpu.matmul %23, %24, %cst_11 {dimension_numbers = #tpu.dot_dimension_numbers<[1], [0], [0], [1], [0, 0, 1, 1], [], []>} : vector<16x64xbf16>, vector<64x512xbf16>, vector<16x512xf32> -> vector<16x512xf32>
    %c0_12 = arith.constant 0 : index
    %c0_13 = arith.constant 0 : index
    %26 = vector.load %arg6[%c0_12, %c0_13] : memref<1x512xf32, #tpu.memory_space<vmem>>, vector<1x512xf32>
    %27 = vector.broadcast %26 : vector<1x512xf32> to vector<16x512xf32>
    %28 = arith.addf %25, %27 : vector<16x512xf32>
    %29 = vector.extract_strided_slice %28 {offsets = [0, 0], sizes = [16, 256], strides = [1, 1]} : vector<16x512xf32> to vector<16x256xf32>
    %30 = vector.extract_strided_slice %28 {offsets = [0, 256], sizes = [16, 256], strides = [1, 1]} : vector<16x512xf32> to vector<16x256xf32>
    %cst_14 = arith.constant 5.000000e-01 : f32
    %31 = vector.broadcast %cst_14 : f32 to vector<16x256xf32>
    %32 = arith.mulf %31, %30 : vector<16x256xf32>
    %cst_15 = arith.constant 0.707106769 : f32
    %33 = vector.broadcast %cst_15 : f32 to vector<16x256xf32>
    %34 = arith.mulf %30, %33 : vector<16x256xf32>
    %35 = math.erf %34 : vector<16x256xf32>
    %cst_16 = arith.constant 1.000000e+00 : f32
    %36 = vector.broadcast %cst_16 : f32 to vector<16x256xf32>
    %37 = arith.addf %36, %35 : vector<16x256xf32>
    %38 = arith.mulf %32, %37 : vector<16x256xf32>
    %39 = arith.mulf %29, %38 : vector<16x256xf32>
    %40 = arith.truncf %39 : vector<16x256xf32> to vector<16x256xbf16>
    %c0_17 = arith.constant 0 : index
    %c0_18 = arith.constant 0 : index
    %41 = vector.load %arg7[%c0_17, %c0_18] : memref<16x256xbf16, #tpu.memory_space<vmem>>, vector<16x256xbf16>
    tpu.vector_store %arg7[%c0_17, %c0_18], %40 {strides = array<i32>} : memref<16x256xbf16, #tpu.memory_space<vmem>>, vector<16x256xbf16>,
    return
  }
  func.func @transform_0(%arg0: i32, %arg1: i32) -> (i32, i32) {
    %c0_i32 = arith.constant 0 : i32
    %c0_i32_0 = arith.constant 0 : i32
    return %arg0, %c0_i32 : i32, i32
  }
  func.func @transform_1(%arg0: i32, %arg1: i32) -> (i32, i32) {
    %c0_i32 = arith.constant 0 : i32
    %c0_i32_0 = arith.constant 0 : i32
    %c0_i32_1 = arith.constant 0 : i32
    return %c0_i32, %c0_i32_0 : i32, i32
  }
  func.func @transform_2(%arg0: i32, %arg1: i32) -> (i32, i32) {
    %c0_i32 = arith.constant 0 : i32
    %c0_i32_0 = arith.constant 0 : i32
    %c0_i32_1 = arith.constant 0 : i32
    return %c0_i32, %c0_i32_0 : i32, i32
  }
  func.func @transform_3(%arg0: i32, %arg1: i32) -> (i32, i32) {
    %c0_i32 = arith.constant 0 : i32
    %c0_i32_0 = arith.constant 0 : i32
    return %c0_i32, %arg1 : i32, i32
  }
  func.func @transform_4(%arg0: i32, %arg1: i32) -> (i32, i32) {
    %c0_i32 = arith.constant 0 : i32
    %c0_i32_0 = arith.constant 0 : i32
    return %c0_i32, %arg1 : i32, i32
  }
  func.func @transform_5(%arg0: i32, %arg1: i32) -> (i32, i32) {
    %c0_i32 = arith.constant 0 : i32
    return %arg0, %arg1 : i32, i32
  }
}

module attributes {stable_mosaic.version = 11 : i64} {
  func.func @_ln_matmul_kernel(%arg0: i32, %arg1: i32, %arg2: memref<16x256xbf16, #tpu.memory_space<vmem>>, %arg3: memref<256x64xbf16, #tpu.memory_space<vmem>>, %arg4: memref<1x64xf32, #tpu.memory_space<vmem>>, %arg5: memref<16x64xf32, #tpu.memory_space<vmem>>, %arg6: memref<16x64xf32, #tpu.memory_space<vmem>>) attributes {dimension_semantics = [#tpu.dimension_semantics<parallel>, #tpu.dimension_semantics<parallel>], iteration_bounds = array<i64: 1, 1>, scalar_prefetch = 0 : i64, scratch_operands = 0 : i64, tpu.core_type = #tpu.core_type<tc>, window_params = [{transform_indices = @transform_0, window_bounds = array<i64: 16, 256>}, {transform_indices = @transform_1, window_bounds = array<i64: 256, 64>}, {transform_indices = @transform_2, window_bounds = array<i64: 1, 64>}, {transform_indices = @transform_3, window_bounds = array<i64: 16, 64>}, {transform_indices = @transform_4, window_bounds = array<i64: 16, 64>}]} {
    %c0 = arith.constant 0 : index
    %c0_0 = arith.constant 0 : index
    %0 = vector.load %arg2[%c0, %c0_0] : memref<16x256xbf16, #tpu.memory_space<vmem>>, vector<16x256xbf16>
    %c0_1 = arith.constant 0 : index
    %c0_2 = arith.constant 0 : index
    %1 = vector.load %arg3[%c0_1, %c0_2] : memref<256x64xbf16, #tpu.memory_space<vmem>>, vector<256x64xbf16>
    %cst = arith.constant dense<0.000000e+00> : vector<16x64xf32>
    %2 = tpu.matmul %0, %1, %cst {dimension_numbers = #tpu.dot_dimension_numbers<[1], [0], [0], [1], [0, 0, 1, 1], [], []>} : vector<16x256xbf16>, vector<256x64xbf16>, vector<16x64xf32> -> vector<16x64xf32>
    %c0_3 = arith.constant 0 : index
    %c0_4 = arith.constant 0 : index
    %3 = vector.load %arg4[%c0_3, %c0_4] : memref<1x64xf32, #tpu.memory_space<vmem>>, vector<1x64xf32>
    %4 = vector.broadcast %3 : vector<1x64xf32> to vector<16x64xf32>
    %5 = arith.addf %2, %4 : vector<16x64xf32>
    %c0_5 = arith.constant 0 : index
    %c0_6 = arith.constant 0 : index
    %6 = vector.load %arg5[%c0_5, %c0_6] : memref<16x64xf32, #tpu.memory_space<vmem>>, vector<16x64xf32>
    %7 = arith.addf %5, %6 : vector<16x64xf32>
    %c0_7 = arith.constant 0 : index
    %c0_8 = arith.constant 0 : index
    %8 = vector.load %arg6[%c0_7, %c0_8] : memref<16x64xf32, #tpu.memory_space<vmem>>, vector<16x64xf32>
    tpu.vector_store %arg6[%c0_7, %c0_8], %7 {strides = array<i32>} : memref<16x64xf32, #tpu.memory_space<vmem>>, vector<16x64xf32>,
    return
  }
  func.func @transform_0(%arg0: i32, %arg1: i32) -> (i32, i32) {
    %c0_i32 = arith.constant 0 : i32
    %c0_i32_0 = arith.constant 0 : i32
    return %arg0, %c0_i32 : i32, i32
  }
  func.func @transform_1(%arg0: i32, %arg1: i32) -> (i32, i32) {
    %c0_i32 = arith.constant 0 : i32
    %c0_i32_0 = arith.constant 0 : i32
    return %c0_i32, %arg1 : i32, i32
  }
  func.func @transform_2(%arg0: i32, %arg1: i32) -> (i32, i32) {
    %c0_i32 = arith.constant 0 : i32
    %c0_i32_0 = arith.constant 0 : i32
    return %c0_i32, %arg1 : i32, i32
  }
  func.func @transform_3(%arg0: i32, %arg1: i32) -> (i32, i32) {
    %c0_i32 = arith.constant 0 : i32
    return %arg0, %arg1 : i32, i32
  }
  func.func @transform_4(%arg0: i32, %arg1: i32) -> (i32, i32) {
    %c0_i32 = arith.constant 0 : i32
    return %arg0, %arg1 : i32, i32
  }
}

</mosaic_0001>

<llo_original>
// kernel: block_forward.12
$region0: #{block_forward.12}
  #allocation0 [shape = 'u32[]', space=smem, size = 0x4, offset = 0x4, fixed_abs, tag = 'smem constant byte address 0x4 - core index']
  #allocation1 [shape = 'u32[144,128]{1,0:T(1,128)}', space=vmem, size = 0x12000, scoped, tag = 'internal scratch']
  %s0 = inlined_call_operand.vmem [shape: f32[16,64], index: 0, kind: input, shape index: {}]
  %s1 = inlined_call_operand.vmem [shape: f32[1,64], index: 1, kind: input, shape index: {}]
  %s2 = inlined_call_operand.vmem [shape: f32[1,64], index: 2, kind: input, shape index: {}]
  %s3 = inlined_call_operand.vmem [shape: bf16[64,64], index: 3, kind: input, shape index: {}]
  %s4 = inlined_call_operand.vmem [shape: f32[1,64], index: 4, kind: input, shape index: {}]
  %s5 = inlined_call_operand.vmem [shape: bf16[16,64], index: 5, kind: output, shape index: {}]
  %s6 = sld [smem:[#allocation0]]
  $region30: #{block_forward.12} parent=0
    _
  %s8 = ssub.s32 1, %s6
  %s9 = scalar_select 0, %s8, %s6
  // Predicated region
  $region2: #{block_forward.12} parent=0 // pred_check
    _
  $region3: #{block_forward.12} parent=0 // pred_check_branch
    %11 = sbr.rel (0) target = $region5
  $region4: #{block_forward.12} parent=0 // pred_region
    _
  $region5: #{block_forward.12} parent=0 // pred_fallthru
    _
  // Predicated region
  $region6: #{block_forward.12} parent=0 // pred_check
    _
  $region7: #{block_forward.12} parent=0 // pred_check_branch
    %13 = sbr.rel (0) target = $region9
  $region8: #{block_forward.12} parent=0 // pred_region
    _
  $region9: #{block_forward.12} parent=0 // pred_fallthru
    _
  // Predicated region
  $region10: #{block_forward.12} parent=0 // pred_check
    _
  $region11: #{block_forward.12} parent=0 // pred_check_branch
    %15 = sbr.rel (0) target = $region13
  $region12: #{block_forward.12} parent=0 // pred_region
    _
  $region13: #{block_forward.12} parent=0 // pred_fallthru
    _
  // Predicated region
  $region14: #{block_forward.12} parent=0 // pred_check
    _
  $region15: #{block_forward.12} parent=0 // pred_check_branch
    %17 = sbr.rel (0) target = $region17
  $region16: #{block_forward.12} parent=0 // pred_region
    _
  $region17: #{block_forward.12} parent=0 // pred_fallthru
    _
  // Predicated region
  $region18: #{block_forward.12} parent=0 // pred_check
    _
  $region19: #{block_forward.12} parent=0 // pred_check_branch
    %19 = sbr.rel (0) target = $region21
  $region20: #{block_forward.12} parent=0 // pred_region
    _
  $region21: #{block_forward.12} parent=0 // pred_fallthru
    _
  %v21 = vld [vmem:[%s0] sm:$0xff]
  %v22 = vld [vmem:[%s0 + $0x8] sm:$0xff]
  %vm23 = vcmask 523264
  %v24 = vsel %vm23, %v21, 0.0
  %25 = vadd.xlane.f32.xlu0 %v24
  %v26 = vpop.xlane.xlu0 %25
  %v27 = vsel %vm23, %v22, 0.0
  %28 = vadd.xlane.f32.xlu0 %v27
  %v29 = vpop.xlane.xlu0 %28
  %v30 = vrcp.pop 64.0
  %v31 = vmul.f32 %v26, %v30
  %v32 = vmul.f32 %v29, %v30
  %v33 = vsub.f32 %v21, %v31
  %v34 = vsub.f32 %v22, %v32
  %v35 = vmul.f32 %v33, %v33
  %v36 = vmul.f32 %v34, %v34
  %v37 = vsel %vm23, %v35, 0.0
  %38 = vadd.xlane.f32.xlu0 %v37
  %v39 = vpop.xlane.xlu0 %38
  %v40 = vsel %vm23, %v36, 0.0
  %41 = vadd.xlane.f32.xlu0 %v40
  %v42 = vpop.xlane.xlu0 %41
  %v43 = vmul.f32 %v39, %v30
  %v44 = vmul.f32 %v42, %v30
  %v45 = vadd.f32 %v43, 1e-05
  %v46 = vadd.f32 %v44, 1e-05
  %v47 = vrsqrt.pop %v45
  %v48 = vrsqrt.pop %v46
  %v49 = vmul.f32 %v33, %v47
  %v50 = vmul.f32 %v34, %v48
  %v51 = vld [vmem:[%s1] sm:$0x1]
  %v53 = vlaneseq
  %v54 = vshrl.u32 %v53, 7
  %v55 = vsub.s32 0, %v54
  %v56 = vrot.slane %v51, %v55
  %v58 = vmul.f32 %v49, %v56
  %v59 = vmul.f32 %v50, %v56
  %v60 = vld [vmem:[%s2] sm:$0x1]
  %v62 = vlaneseq
  %v63 = vshrl.u32 %v62, 7
  %v64 = vsub.s32 0, %v63
  %v65 = vrot.slane %v60, %v64
  %v67 = vadd.f32 %v58, %v65
  %v68 = vadd.f32 %v59, %v65
  %v69 = vpack.c.bf16 %v68, %v67
  %v70 = vld [vmem:[%s3] sm:$0xf]
  %v71 = vld [vmem:[%s3 + $0x4] sm:$0xf]
  %v72 = vld [vmem:[%s3 + $0x8] sm:$0xf]
  %v73 = vld [vmem:[%s3 + $0xc] sm:$0xf]
  %v74 = vld [vmem:[%s3 + $0x10] sm:$0xf]
  %v75 = vld [vmem:[%s3 + $0x14] sm:$0xf]
  %v76 = vld [vmem:[%s3 + $0x18] sm:$0xf]
  %v77 = vld [vmem:[%s3 + $0x1c] sm:$0xf]
  %v78 = vld [vmem:[%s4] sm:$0x1]
  %v80 = vlaneseq
  %v81 = vshrl.u32 %v80, 7
  %v82 = vsub.s32 0, %v81
  %v83 = vrot.slane %v78, %v82
  %v93 = vunpack.c.l.b16 %v70
  %v94 = vunpack.c.l.b16 %v71
  %v95 = vunpack.c.l.b16 %v72
  %v96 = vunpack.c.l.b16 %v73
  %v97 = vunpack.c.l.b16 %v74
  %v98 = vunpack.c.l.b16 %v75
  %v99 = vunpack.c.l.b16 %v76
  %v100 = vunpack.c.l.b16 %v77
  %v101 = vpack.c.b16 %v94, %v93
  %v102 = vpack.c.b16 %v96, %v95
  %v103 = vpack.c.b16 %v98, %v97
  %v104 = vpack.c.b16 %v100, %v99
  %v110 = vsel %vm23, %v69, 0
  %112 = vmatprep.subr.bf16.mxu0 0
  %113 = vmatpush1.bf16.msra.mxu0 0
  %114 = vmatprep.subr.bf16.mxu0 0
  %115 = vmatpush1.bf16.msra.mxu0 0
  %116 = vmatprep.subr.bf16.mxu0 0
  %117 = vmatpush1.bf16.msra.mxu0 0
  %118 = vmatprep.subr.bf16.mxu0 0
  %119 = vmatpush1.bf16.msra.mxu0 0
  %120 = vmatprep.subr.bf16.mxu0 0
  %121 = vmatpush1.bf16.msra.mxu0 %v104
  %122 = vmatprep.subr.bf16.mxu0 0
  %123 = vmatpush1.bf16.msra.mxu0 %v103
  %124 = vmatprep.subr.bf16.mxu0 0
  %125 = vmatpush1.bf16.msra.mxu0 %v102
  %126 = vmatprep.subr.bf16.mxu0 0
  %127 = vmatpush1.bf16.msra.mxu0 %v101
  %128 = vmatprep.subr.bf16.mxu0 0
  %129 = vmatpush2.bf16.msra.mxu0 0
  %130 = vmatprep.subr.bf16.mxu0 0
  %131 = vmatpush2.bf16.msra.mxu0 0
  %132 = vmatprep.subr.bf16.mxu0 0
  %133 = vmatpush2.bf16.msra.mxu0 0
  %134 = vmatprep.subr.bf16.mxu0 0
  %135 = vmatpush2.bf16.msra.mxu0 0
  %136 = vmatprep.subr.bf16.mxu0 0
  %137 = vmatpush2.bf16.msra.mxu0 0
  %138 = vmatprep.subr.bf16.mxu0 0
  %139 = vmatpush2.bf16.msra.mxu0 0
  %140 = vmatprep.subr.bf16.mxu0 0
  %141 = vmatpush2.bf16.msra.mxu0 0
  %142 = vmatprep.subr.bf16.mxu0 0
  %143 = vmatpush2.bf16.msra.mxu0 0
  %144 = vmatprep.mubr.bf16.mxu0 0
  %145 = vmatmul.mubr.bf16.gmra.mxu0 %v110
  %v146 = vpop.f32.mrf.mxu0
  %v147 = vadd.f32 %v83, %v146
  %v148 = vpop.f32.mrf.mxu0
  %v149 = vpop.f32.mrf.mxu0
  %v150 = vadd.f32 %v83, %v149
  %v151 = vpop.f32.mrf.mxu0
  %152 = vdwg.mxu0
  %v153 = vpack.c.bf16 %v150, %v147
  %v155 = vunpack.c.l.b16 %v153
  %v156 = vunpack.c.h.b16 %v153
  %v157 = vpack.c.b16 %v155, %v155
  %v158 = vpack.c.b16 %v156, %v156
  %vm161 = vcmask 519168
  %162 = vst.msk [vmem:[%s5] sm:$0xf] %vm161, %v157
  %163 = vst.msk [vmem:[%s5 + $0x4] sm:$0xf] %vm161, %v158
  // Predicated region
  $region22: #{block_forward.12} parent=0 // pred_check
    _
  $region23: #{block_forward.12} parent=0 // pred_check_branch
    %165 = sbr.rel (0) target = $region25
  $region24: #{block_forward.12} parent=0 // pred_region
    _
  $region25: #{block_forward.12} parent=0 // pred_fallthru
    _
  // Predicated region
  $region26: #{block_forward.12} parent=0 // pred_check
    _
  $region27: #{block_forward.12} parent=0 // pred_check_branch
    %167 = sbr.rel (0) target = $region29
  $region28: #{block_forward.12} parent=0 // pred_region
    _
  $region29: #{block_forward.12} parent=0 // pred_fallthru
    _

// kernel: block_forward.11
$region0: #{block_forward.11}
  #allocation0 [shape = 'u32[]', space=smem, size = 0x4, offset = 0x4, fixed_abs, tag = 'smem constant byte address 0x4 - core index']
  #allocation1 [shape = 'u32[144,128]{1,0:T(1,128)}', space=vmem, size = 0x12000, scoped, tag = 'internal scratch']
  %s0 = inlined_call_operand.vmem [shape: bf16[16,64], index: 0, kind: input, shape index: {}]
  %s1 = inlined_call_operand.vmem [shape: bf16[64,64], index: 1, kind: input, shape index: {}]
  %s2 = inlined_call_operand.vmem [shape: f32[1,64], index: 2, kind: input, shape index: {}]
  %s3 = inlined_call_operand.vmem [shape: f32[16,64], index: 3, kind: input, shape index: {}]
  %s4 = inlined_call_operand.vmem [shape: f32[16,64], index: 4, kind: output, shape index: {}]
  %s5 = sld [smem:[#allocation0]]
  $region26: #{block_forward.11} parent=0
    _
  %s7 = ssub.s32 1, %s5
  %s8 = scalar_select 0, %s7, %s5
  // Predicated region
  $region2: #{block_forward.11} parent=0 // pred_check
    _
  $region3: #{block_forward.11} parent=0 // pred_check_branch
    %10 = sbr.rel (0) target = $region5
  $region4: #{block_forward.11} parent=0 // pred_region
    _
  $region5: #{block_forward.11} parent=0 // pred_fallthru
    _
  // Predicated region
  $region6: #{block_forward.11} parent=0 // pred_check
    _
  $region7: #{block_forward.11} parent=0 // pred_check_branch
    %12 = sbr.rel (0) target = $region9
  $region8: #{block_forward.11} parent=0 // pred_region
    _
  $region9: #{block_forward.11} parent=0 // pred_fallthru
    _
  // Predicated region
  $region10: #{block_forward.11} parent=0 // pred_check
    _
  $region11: #{block_forward.11} parent=0 // pred_check_branch
    %14 = sbr.rel (0) target = $region13
  $region12: #{block_forward.11} parent=0 // pred_region
    _
  $region13: #{block_forward.11} parent=0 // pred_fallthru
    _
  // Predicated region
  $region14: #{block_forward.11} parent=0 // pred_check
    _
  $region15: #{block_forward.11} parent=0 // pred_check_branch
    %16 = sbr.rel (0) target = $region17
  $region16: #{block_forward.11} parent=0 // pred_region
    _
  $region17: #{block_forward.11} parent=0 // pred_fallthru
    _
  %v18 = vld [vmem:[%s0] sm:$0xf]
  %v19 = vld [vmem:[%s0 + $0x4] sm:$0xf]
  %v20 = vld [vmem:[%s1] sm:$0xf]
  %v21 = vld [vmem:[%s1 + $0x4] sm:$0xf]
  %v22 = vld [vmem:[%s1 + $0x8] sm:$0xf]
  %v23 = vld [vmem:[%s1 + $0xc] sm:$0xf]
  %v24 = vld [vmem:[%s1 + $0x10] sm:$0xf]
  %v25 = vld [vmem:[%s1 + $0x14] sm:$0xf]
  %v26 = vld [vmem:[%s1 + $0x18] sm:$0xf]
  %v27 = vld [vmem:[%s1 + $0x1c] sm:$0xf]
  %v28 = vld [vmem:[%s2] sm:$0x1]
  %v30 = vlaneseq
  %v31 = vshrl.u32 %v30, 7
  %v32 = vsub.s32 0, %v31
  %v33 = vrot.slane %v28, %v32
  %v37 = vunpack.c.l.b16 %v18
  %v38 = vunpack.c.l.b16 %v19
  %v39 = vpack.c.b16 %v38, %v37
  %v48 = vunpack.c.l.b16 %v20
  %v49 = vunpack.c.l.b16 %v21
  %v50 = vunpack.c.l.b16 %v22
  %v51 = vunpack.c.l.b16 %v23
  %v52 = vunpack.c.l.b16 %v24
  %v53 = vunpack.c.l.b16 %v25
  %v54 = vunpack.c.l.b16 %v26
  %v55 = vunpack.c.l.b16 %v27
  %v56 = vpack.c.b16 %v49, %v48
  %v57 = vpack.c.b16 %v51, %v50
  %v58 = vpack.c.b16 %v53, %v52
  %v59 = vpack.c.b16 %v55, %v54
  %vm64 = vcmask 523264
  %v66 = vsel %vm64, %v39, 0
  %68 = vmatprep.subr.bf16.mxu0 0
  %69 = vmatpush1.bf16.msra.mxu0 0
  %70 = vmatprep.subr.bf16.mxu0 0
  %71 = vmatpush1.bf16.msra.mxu0 0
  %72 = vmatprep.subr.bf16.mxu0 0
  %73 = vmatpush1.bf16.msra.mxu0 0
  %74 = vmatprep.subr.bf16.mxu0 0
  %75 = vmatpush1.bf16.msra.mxu0 0
  %76 = vmatprep.subr.bf16.mxu0 0
  %77 = vmatpush1.bf16.msra.mxu0 %v59
  %78 = vmatprep.subr.bf16.mxu0 0
  %79 = vmatpush1.bf16.msra.mxu0 %v58
  %80 = vmatprep.subr.bf16.mxu0 0
  %81 = vmatpush1.bf16.msra.mxu0 %v57
  %82 = vmatprep.subr.bf16.mxu0 0
  %83 = vmatpush1.bf16.msra.mxu0 %v56
  %84 = vmatprep.subr.bf16.mxu0 0
  %85 = vmatpush2.bf16.msra.mxu0 0
  %86 = vmatprep.subr.bf16.mxu0 0
  %87 = vmatpush2.bf16.msra.mxu0 0
  %88 = vmatprep.subr.bf16.mxu0 0
  %89 = vmatpush2.bf16.msra.mxu0 0
  %90 = vmatprep.subr.bf16.mxu0 0
  %91 = vmatpush2.bf16.msra.mxu0 0
  %92 = vmatprep.subr.bf16.mxu0 0
  %93 = vmatpush2.bf16.msra.mxu0 0
  %94 = vmatprep.subr.bf16.mxu0 0
  %95 = vmatpush2.bf16.msra.mxu0 0
  %96 = vmatprep.subr.bf16.mxu0 0
  %97 = vmatpush2.bf16.msra.mxu0 0
  %98 = vmatprep.subr.bf16.mxu0 0
  %99 = vmatpush2.bf16.msra.mxu0 0
  %100 = vmatprep.mubr.bf16.mxu0 0
  %101 = vmatmul.mubr.bf16.gmra.mxu0 %v66
  %v102 = vpop.f32.mrf.mxu0
  %v103 = vadd.f32 %v33, %v102
  %v104 = vpop.f32.mrf.mxu0
  %v105 = vpop.f32.mrf.mxu0
  %v106 = vadd.f32 %v33, %v105
  %v107 = vpop.f32.mrf.mxu0
  %108 = vdwg.mxu0
  %v109 = vld [vmem:[%s3] sm:$0xff]
  %v110 = vld [vmem:[%s3 + $0x8] sm:$0xff]
  %v111 = vadd.f32 %v103, %v109
  %v112 = vadd.f32 %v106, %v110
  %113 = vst.msk [vmem:[%s4] sm:$0xff] %vm64, %v111
  %114 = vst.msk [vmem:[%s4 + $0x8] sm:$0xff] %vm64, %v112
  // Predicated region
  $region18: #{block_forward.11} parent=0 // pred_check
    _
  $region19: #{block_forward.11} parent=0 // pred_check_branch
    %116 = sbr.rel (0) target = $region21
  $region20: #{block_forward.11} parent=0 // pred_region
    _
  $region21: #{block_forward.11} parent=0 // pred_fallthru
    _
  // Predicated region
  $region22: #{block_forward.11} parent=0 // pred_check
    _
  $region23: #{block_forward.11} parent=0 // pred_check_branch
    %118 = sbr.rel (0) target = $region25
  $region24: #{block_forward.11} parent=0 // pred_region
    _
  $region25: #{block_forward.11} parent=0 // pred_fallthru
    _

// kernel: block_forward.9
$region0: #{block_forward.9}
  #allocation0 [shape = 'u32[]', space=smem, size = 0x4, offset = 0x4, fixed_abs, tag = 'smem constant byte address 0x4 - core index']
  #allocation1 [shape = 'u32[144,128]{1,0:T(1,128)}', space=vmem, size = 0x12000, scoped, tag = 'internal scratch']
  %s0 = inlined_call_operand.vmem [shape: f32[16,64], index: 0, kind: input, shape index: {}]
  %s1 = inlined_call_operand.vmem [shape: f32[1,64], index: 1, kind: input, shape index: {}]
  %s2 = inlined_call_operand.vmem [shape: f32[1,64], index: 2, kind: input, shape index: {}]
  %s3 = inlined_call_operand.hbm [shape: bf16[64,192], index: 3, kind: input, shape index: {}]
  %s4 = inlined_call_operand.vmem [shape: f32[1,192], index: 4, kind: input, shape index: {}]
  %s5 = inlined_call_operand.vmem [shape: bf16[16,192], index: 5, kind: output, shape index: {}]
  %s6 = sld [smem:[#allocation0]]
  $region34: #{block_forward.9} parent=0
    _
  %s8 = ssub.s32 1, %s6
  %s9 = scalar_select 0, %s8, %s6
  $region1: #{block_forward.9} parent=0
    #allocation2 [shape = 'u8[32768]{0}', space=vmem, size = 0x8000, scoped, tag = 'input window, operand 3, single buffered']
    #allocation3 [shape = 's32[1]{0}', space=sflag, size = 0x4, scoped, tag = 'scoped memory for block_forward.9']
    %10 = vsyncpa [#allocation3], 0
    // Predicated region
    $region2: #{block_forward.9} parent=1 // pred_check
      _
    $region3: #{block_forward.9} parent=1 // pred_check_branch
      %12 = sbr.rel (0) target = $region5
    $region4: #{block_forward.9} parent=1 // pred_region
      _
    $region5: #{block_forward.9} parent=1 // pred_fallthru
      _
    // Predicated region
    $region6: #{block_forward.9} parent=1 // pred_check
      _
    $region7: #{block_forward.9} parent=1 // pred_check_branch
      %14 = sbr.rel (0) target = $region9
    $region8: #{block_forward.9} parent=1 // pred_region
      _
    $region9: #{block_forward.9} parent=1 // pred_fallthru
      _
    // Predicated region
    $region10: #{block_forward.9} parent=1 // pred_check
      _
    $region11: #{block_forward.9} parent=1 // pred_check_branch
      %16 = sbr.rel (0) target = $region13
    $region12: #{block_forward.9} parent=1 // pred_region
      _
    $region13: #{block_forward.9} parent=1 // pred_fallthru
      _
    // Predicated region
    $region14: #{block_forward.9} parent=1 // pred_check
      _
    $region15: #{block_forward.9} parent=1 // pred_check_branch
      %18 = sbr.rel (0) target = $region17
    $region16: #{block_forward.9} parent=1 // pred_region
      %s20 = ssub.s32 1024, 1024
      %21 = vsyncadd [#allocation3], %s20
      %s22 = sshll.u32 [#allocation2], 4
      %s23 = int_to_ptr.vmem [resolvable:$true] %s22
      %28 = dma.hbm_to_vmem [thread:$0]  %s3, 1024, %s23, [#allocation3], 128, 128, 8
    $region17: #{block_forward.9} parent=1 // pred_fallthru
      _
    // Predicated region
    $region18: #{block_forward.9} parent=1 // pred_check
      _
    $region19: #{block_forward.9} parent=1 // pred_check_branch
      %30 = sbr.rel (0) target = $region21
    $region20: #{block_forward.9} parent=1 // pred_region
      _
    $region21: #{block_forward.9} parent=1 // pred_fallthru
      _
    // Predicated region
    $region22: #{block_forward.9} parent=1 // pred_check
      _
    $region23: #{block_forward.9} parent=1 // pred_check_branch
      %32 = sbr.rel (0) target = $region25
    $region24: #{block_forward.9} parent=1 // pred_region
      %33 = dma.done [#allocation3], 1024
    $region25: #{block_forward.9} parent=1 // pred_fallthru
      _
    %v35 = vld [vmem:[%s0] sm:$0xff]
    %v36 = vld [vmem:[%s0 + $0x8] sm:$0xff]
    %vm37 = vcmask 523264
    %v38 = vsel %vm37, %v35, 0.0
    %39 = vadd.xlane.f32.xlu0 %v38
    %v40 = vpop.xlane.xlu0 %39
    %v41 = vsel %vm37, %v36, 0.0
    %42 = vadd.xlane.f32.xlu0 %v41
    %v43 = vpop.xlane.xlu0 %42
    %v44 = vrcp.pop 64.0
    %v45 = vmul.f32 %v40, %v44
    %v46 = vmul.f32 %v43, %v44
    %v47 = vsub.f32 %v35, %v45
    %v48 = vsub.f32 %v36, %v46
    %v49 = vmul.f32 %v47, %v47
    %v50 = vmul.f32 %v48, %v48
    %v51 = vsel %vm37, %v49, 0.0
    %52 = vadd.xlane.f32.xlu0 %v51
    %v53 = vpop.xlane.xlu0 %52
    %v54 = vsel %vm37, %v50, 0.0
    %55 = vadd.xlane.f32.xlu0 %v54
    %v56 = vpop.xlane.xlu0 %55
    %v57 = vmul.f32 %v53, %v44
    %v58 = vmul.f32 %v56, %v44
    %v59 = vadd.f32 %v57, 1e-05
    %v60 = vadd.f32 %v58, 1e-05
    %v61 = vrsqrt.pop %v59
    %v62 = vrsqrt.pop %v60
    %v63 = vmul.f32 %v47, %v61
    %v64 = vmul.f32 %v48, %v62
    %v65 = vld [vmem:[%s1] sm:$0x1]
    %v67 = vlaneseq
    %v68 = vshrl.u32 %v67, 7
    %v69 = vsub.s32 0, %v68
    %v70 = vrot.slane %v65, %v69
    %v72 = vmul.f32 %v63, %v70
    %v73 = vmul.f32 %v64, %v70
    %v74 = vld [vmem:[%s2] sm:$0x1]
    %v76 = vlaneseq
    %v77 = vshrl.u32 %v76, 7
    %v78 = vsub.s32 0, %v77
    %v79 = vrot.slane %v74, %v78
    %v81 = vadd.f32 %v72, %v79
    %v82 = vadd.f32 %v73, %v79
    %v83 = vpack.c.bf16 %v82, %v81
    %v84 = vld [vmem:[#allocation2] sm:$0xff]
    %v85 = vld [vmem:[#allocation2 + $0x8] sm:$0xff]
    %v86 = vld [vmem:[#allocation2 + $0x10] sm:$0xff]
    %v87 = vld [vmem:[#allocation2 + $0x18] sm:$0xff]
    %v88 = vld [vmem:[#allocation2 + $0x20] sm:$0xff]
    %v89 = vld [vmem:[#allocation2 + $0x28] sm:$0xff]
    %v90 = vld [vmem:[#allocation2 + $0x30] sm:$0xff]
    %v91 = vld [vmem:[#allocation2 + $0x38] sm:$0xff]
    %v92 = vld [vmem:[%s4] sm:$0x3]
    %v94 = vlaneseq
    %v95 = vshrl.u32 %v94, 7
    %v96 = vsub.s32 0, %v95
    %v97 = vrot.slane %v92, %v96
    %v98 = vlaneseq
    %v99 = vshrl.u32 %v98, 7
    %v100 = vsub.s32 1, %v99
    %v101 = vrot.slane %v92, %v100
    %v112 = vunpack.c.l.b16 %v84
    %v113 = vunpack.c.h.b16 %v84
    %v114 = vunpack.c.l.b16 %v85
    %v115 = vunpack.c.h.b16 %v85
    %v116 = vunpack.c.l.b16 %v86
    %v117 = vunpack.c.h.b16 %v86
    %v118 = vunpack.c.l.b16 %v87
    %v119 = vunpack.c.h.b16 %v87
    %v120 = vunpack.c.l.b16 %v88
    %v121 = vunpack.c.h.b16 %v88
    %v122 = vunpack.c.l.b16 %v89
    %v123 = vunpack.c.h.b16 %v89
    %v124 = vunpack.c.l.b16 %v90
    %v125 = vunpack.c.h.b16 %v90
    %v126 = vunpack.c.l.b16 %v91
    %v127 = vunpack.c.h.b16 %v91
    %v128 = vpack.c.b16 %v114, %v112
    %v129 = vpack.c.b16 %v115, %v113
    %v130 = vpack.c.b16 %v118, %v116
    %v131 = vpack.c.b16 %v119, %v117
    %v132 = vpack.c.b16 %v122, %v120
    %v133 = vpack.c.b16 %v123, %v121
    %v134 = vpack.c.b16 %v126, %v124
    %v135 = vpack.c.b16 %v127, %v125
    %v145 = vsel %vm37, %v83, 0
    %147 = vmatprep.subr.bf16.mxu0 0
    %148 = vmatpush1.bf16.msra.mxu0 0
    %149 = vmatprep.subr.bf16.mxu0 0
    %150 = vmatpush1.bf16.msra.mxu0 0
    %151 = vmatprep.subr.bf16.mxu0 0
    %152 = vmatpush1.bf16.msra.mxu0 0
    %153 = vmatprep.subr.bf16.mxu0 0
    %154 = vmatpush1.bf16.msra.mxu0 0
    %155 = vmatprep.subr.bf16.mxu0 %v135
    %156 = vmatpush1.bf16.msra.mxu0 %v134
    %157 = vmatprep.subr.bf16.mxu0 %v133
    %158 = vmatpush1.bf16.msra.mxu0 %v132
    %159 = vmatprep.subr.bf16.mxu0 %v131
    %160 = vmatpush1.bf16.msra.mxu0 %v130
    %161 = vmatprep.subr.bf16.mxu0 %v129
    %162 = vmatpush1.bf16.msra.mxu0 %v128
    %163 = vmatprep.subr.bf16.mxu0 0
    %164 = vmatpush2.bf16.msra.mxu0 0
    %165 = vmatprep.subr.bf16.mxu0 0
    %166 = vmatpush2.bf16.msra.mxu0 0
    %167 = vmatprep.subr.bf16.mxu0 0
    %168 = vmatpush2.bf16.msra.mxu0 0
    %169 = vmatprep.subr.bf16.mxu0 0
    %170 = vmatpush2.bf16.msra.mxu0 0
    %171 = vmatprep.subr.bf16.mxu0 0
    %172 = vmatpush2.bf16.msra.mxu0 0
    %173 = vmatprep.subr.bf16.mxu0 0
    %174 = vmatpush2.bf16.msra.mxu0 0
    %175 = vmatprep.subr.bf16.mxu0 0
    %176 = vmatpush2.bf16.msra.mxu0 0
    %177 = vmatprep.subr.bf16.mxu0 0
    %178 = vmatpush2.bf16.msra.mxu0 0
    %179 = vmatprep.mubr.bf16.mxu0 0
    %180 = vmatmul.mubr.bf16.gmra.mxu0 %v145
    %v181 = vpop.f32.mrf.mxu0
    %v182 = vadd.f32 %v97, %v181
    %v183 = vpop.f32.mrf.mxu0
    %v184 = vadd.f32 %v101, %v183
    %v185 = vpop.f32.mrf.mxu0
    %v186 = vadd.f32 %v97, %v185
    %v187 = vpop.f32.mrf.mxu0
    %v188 = vadd.f32 %v101, %v187
    %189 = vdwg.mxu0
    %v190 = vpack.c.bf16 %v186, %v182
    %v191 = vpack.c.bf16 %v188, %v184
    %v194 = vunpack.c.l.b16 %v190
    %v195 = vunpack.c.l.b16 %v191
    %v196 = vunpack.c.h.b16 %v190
    %v197 = vunpack.c.h.b16 %v191
    %v198 = vpack.c.b16 %v195, %v194
    %v199 = vpack.c.b16 %v197, %v196
    %vm202 = vcmask 1043456
    %vm203 = vcmask 523268
    %vm204 = vmor %vm203, %vm202
    %205 = vst.msk [vmem:[%s5] sm:$0xff] %vm204, %v198
    %206 = vst.msk [vmem:[%s5 + $0x8] sm:$0xff] %vm204, %v199
    // Predicated region
    $region26: #{block_forward.9} parent=1 // pred_check
      _
    $region27: #{block_forward.9} parent=1 // pred_check_branch
      %208 = sbr.rel (0) target = $region29
    $region28: #{block_forward.9} parent=1 // pred_region
      _
    $region29: #{block_forward.9} parent=1 // pred_fallthru
      _
    // Predicated region
    $region30: #{block_forward.9} parent=1 // pred_check
      _
    $region31: #{block_forward.9} parent=1 // pred_check_branch
      %210 = sbr.rel (0) target = $region33
    $region32: #{block_forward.9} parent=1 // pred_region
      _
    $region33: #{block_forward.9} parent=1 // pred_fallthru
      _
    %211 = vsyncpa [#allocation3], 1

// kernel: block_forward.10
$region0: #{block_forward.10}
  #allocation0 [shape = 'u32[]', space=smem, size = 0x4, offset = 0x4, fixed_abs, tag = 'smem constant byte address 0x4 - core index']
  #allocation1 [shape = 'u32[144,128]{1,0:T(1,128)}', space=vmem, size = 0x12000, scoped, tag = 'internal scratch']
  %s0 = inlined_call_operand.vmem [shape: bf16[2,8,192], index: 0, kind: input, shape index: {}]
  %s1 = inlined_call_operand.vmem [shape: bf16[2,8,64], index: 1, kind: output, shape index: {}]
  %s2 = sld [smem:[#allocation0]]
  $region37: #{block_forward.10} parent=0
    _
  %s4 = ssub.s32 1, %s2
  %s5 = scalar_select 0, %s4, %s2
  loop: start=0, step=1, limit=4
  $region2: #{block_forward.10} parent=0 // loop_pre_header
    _
  $region3: #{block_forward.10} parent=0 // loop_header
    %s7 = sphi 0, %s11
    %p8 = scmp.ge.s32.totalorder %s7, 4
    %s17 = sphi 0, %s19
    %s20 = sphi 0, %s17
    %s21 = sphi 0, %s20
    %s37 = sphi 0, %s21
    %s43 = sphi 0, %s45
    %s46 = sphi 0, %s43
    %s47 = sphi 0, %s46
    %s63 = sphi 0, %s47
  $region4: #{block_forward.10} parent=0 // loop_header_branch
    %10 = sbr.rel (%p8) target = $region8
  $region5: #{block_forward.10} parent=0 // loop_body
    %s12 = ssub.s32 %s7, 1
    %s13 = ssub.s32 %s7, 2
    %s14 = sadd.s32 %s7, 1
    %s15 = ssub.s32 %s7, %s14
    %p16 = scmp.eq.s32.totalorder %s15, 0
    %s18 = sadd.s32 %s17, 1
    %s19 = scalar_select %p16, %s17, %s18
    %p22 = pneg %p16
    %p23 = scmp.eq.s32.totalorder %s7, 1
    %p24 = por %p22, %p23
    %p25 = scmp.ne.s32.totalorder %s17, %s20
    %p26 = scmp.eq.s32.totalorder %s7, 0
    %p27 = por %p25, %p26
    %p28 = scmp.ne.s32.totalorder %s17, %s20
    %p29 = scmp.eq.s32.totalorder %s12, 1
    %p30 = por %p28, %p29
    %p31 = scmp.ne.s32.totalorder %s20, %s21
    %p32 = scmp.eq.s32.totalorder %s12, 0
    %p33 = por %p31, %p32
    %p34 = scmp.ne.s32.totalorder %s20, %s21
    %p35 = scmp.eq.s32.totalorder %s13, 1
    %p36 = por %p34, %p35
    %p38 = scmp.ne.s32.totalorder %s21, %s37
    %p39 = scmp.eq.s32.totalorder %s13, 0
    %p40 = por %p38, %p39
    %s41 = ssub.s32 %s7, %s14
    %p42 = scmp.eq.s32.totalorder %s41, 0
    %s44 = sadd.s32 %s43, 1
    %s45 = scalar_select %p42, %s43, %s44
    %p48 = pneg %p42
    %p49 = scmp.eq.s32.totalorder %s7, 1
    %p50 = por %p48, %p49
    %p51 = scmp.ne.s32.totalorder %s43, %s46
    %p52 = scmp.eq.s32.totalorder %s7, 0
    %p53 = por %p51, %p52
    %p54 = scmp.ne.s32.totalorder %s43, %s46
    %p55 = scmp.eq.s32.totalorder %s12, 1
    %p56 = por %p54, %p55
    %p57 = scmp.ne.s32.totalorder %s46, %s47
    %p58 = scmp.eq.s32.totalorder %s12, 0
    %p59 = por %p57, %p58
    %p60 = scmp.ne.s32.totalorder %s46, %s47
    %p61 = scmp.eq.s32.totalorder %s13, 1
    %p62 = por %p60, %p61
    %p64 = scmp.ne.s32.totalorder %s47, %s63
    %p65 = scmp.eq.s32.totalorder %s13, 0
    %p66 = por %p64, %p65
    %p67 = scmp.le.s32.totalorder 1, %s7
    %p68 = scmp.lt.s32.totalorder %s7, 3
    %p69 = pnand %p67, %p68
    %p70 = pneg %p69
    // Predicated region
    $region9: #{block_forward.10} parent=5 // pred_check
      _
    $region10: #{block_forward.10} parent=5 // pred_check_branch
      %72 = sbr.rel (%p69) target = $region12
    $region11: #{block_forward.10} parent=5 // pred_region
      %s73 = ssub.s32 %s7, 1
    $region12: #{block_forward.10} parent=5 // pred_fallthru
      _
    %p74 = scmp.lt.s32.totalorder %s7, 2
    // Predicated region
    $region13: #{block_forward.10} parent=5 // pred_check
      %p75 = pneg %p74
    $region14: #{block_forward.10} parent=5 // pred_check_branch
      %77 = sbr.rel (%p75) target = $region16
    $region15: #{block_forward.10} parent=5 // pred_region
      // Predicated region
      $region17: #{block_forward.10} parent=15 // pred_check
        %p78 = pneg %p27
      $region18: #{block_forward.10} parent=15 // pred_check_branch
        %80 = sbr.rel (%p78) target = $region20
      $region19: #{block_forward.10} parent=15 // pred_region
        %p81 = scmp.lt.s32.totalorder %s7, 1
        %s82 = scalar_select %p81, %s7, 1
        %s83 = smul.addr %s82, 2
        %s84 = smul.addr %s83, 4
        %s85 = scalar_lea.vmem %s0, %s84
      $region20: #{block_forward.10} parent=15 // pred_fallthru
        _
    $region16: #{block_forward.10} parent=5 // pred_fallthru
      _
    %p86 = scmp.le.s32.totalorder 1, %s7
    %p87 = scmp.lt.s32.totalorder %s7, 3
    %p88 = pnand %p86, %p87
    %p89 = pneg %p88
    // Predicated region
    $region21: #{block_forward.10} parent=5 // pred_check
      _
    $region22: #{block_forward.10} parent=5 // pred_check_branch
      %91 = sbr.rel (%p88) target = $region24
    $region23: #{block_forward.10} parent=5 // pred_region
      %s92 = ssub.s32 %s7, 1
      %p93 = scmp.lt.s32.totalorder %s12, 1
      %s94 = scalar_select %p93, %s12, 1
      %s95 = smul.addr %s94, 2
      %s96 = smul.addr %s95, 4
      %s97 = scalar_lea.vmem %s0, %s96
      %p98 = pneg %p33
      %p99 = pneg %p30
      %p100 = pneg %p59
      %p101 = pneg %p56
      %p102 = scmp.lt.s32.totalorder %s12, 1
      %s103 = scalar_select %p102, %s12, 1
      %s104 = smul.addr %s103, 4
      %s105 = scalar_lea.vmem %s1, %s104
      %p106 = scmp.lt.s32.totalorder %s12, 1
      %s107 = scalar_select %p106, %s12, 1
      %s108 = smul.addr %s107, 2
      %s109 = smul.addr %s108, 4
      %s110 = scalar_lea.vmem %s0, %s109
      %p111 = scmp.lt.s32.totalorder %s12, 1
      %s112 = scalar_select %p111, %s12, 1
      %s113 = smul.addr %s112, 4
      %s114 = scalar_lea.vmem %s1, %s113
      %v116 = vld [vmem:[%s110] sm:$0xff]
      %v118 = vunpack.c.l.b16 %v116
      %v119 = vpack.c.b16 %v118, %v118
      %120 = vrot.lane.b32.xlu0 %v119, 64
      %v121 = vpop.permute.xlu0 %120
      %vm122 = vcmask 130048
      %v124 = vsel %vm122, %v116, 0
      %v127 = vsel %vm122, %v121, 0
      %129 = vmatprep.subr.bf16.mxu0 0
      %130 = vmatpush1.bf16.xpose.msra.mxu0 0
      %131 = vmatprep.subr.bf16.mxu0 0
      %132 = vmatpush1.bf16.xpose.msra.mxu0 0
      %133 = vmatprep.subr.bf16.mxu0 0
      %134 = vmatpush1.bf16.xpose.msra.mxu0 0
      %135 = vmatprep.subr.bf16.mxu0 0
      %136 = vmatpush1.bf16.xpose.msra.mxu0 0
      %137 = vmatprep.subr.bf16.mxu0 0
      %138 = vmatpush1.bf16.xpose.msra.mxu0 0
      %139 = vmatprep.subr.bf16.mxu0 0
      %140 = vmatpush1.bf16.xpose.msra.mxu0 0
      %141 = vmatprep.subr.bf16.mxu0 0
      %142 = vmatpush1.bf16.xpose.msra.mxu0 0
      %143 = vmatprep.subr.bf16.mxu0 0
      %144 = vmatpush1.bf16.xpose.msra.mxu0 %v127
      %145 = vmatprep.subr.bf16.mxu0 0
      %146 = vmatpush2.bf16.xpose.msra.mxu0 0
      %147 = vmatprep.subr.bf16.mxu0 0
      %148 = vmatpush2.bf16.xpose.msra.mxu0 0
      %149 = vmatprep.subr.bf16.mxu0 0
      %150 = vmatpush2.bf16.xpose.msra.mxu0 0
      %151 = vmatprep.subr.bf16.mxu0 0
      %152 = vmatpush2.bf16.xpose.msra.mxu0 0
      %153 = vmatprep.subr.bf16.mxu0 0
      %154 = vmatpush2.bf16.xpose.msra.mxu0 0
      %155 = vmatprep.subr.bf16.mxu0 0
      %156 = vmatpush2.bf16.xpose.msra.mxu0 0
      %157 = vmatprep.subr.bf16.mxu0 0
      %158 = vmatpush2.bf16.xpose.msra.mxu0 0
      %159 = vmatprep.subr.bf16.mxu0 0
      %160 = vmatpush2.bf16.xpose.msra.mxu0 0
      %161 = vmatprep.mubr.bf16.mxu0 0
      %162 = vmatmul.mubr.bf16.gmra.mxu0 %v124
      %v163 = vpop.f32.mrf.mxu0
      %v164 = vadd.f32 0.0, %v163
      %v165 = vpop.f32.mrf.mxu0
      %v166 = vpop.f32.mrf.mxu0
      %v167 = vpop.f32.mrf.mxu0
      %168 = vdwg.mxu0
      %vm169 = vcmask 64512
      %v170 = vsel %vm169, %v164, -inf
      %171 = vmax.xlane.f32.xlu0 %v170
      %v172 = vpop.xlane.xlu0 %171
      %v173 = vsub.f32 %v164, %v172
      %v174 = vmul.f32 %v173, 1.442695
      %v175 = vpow.pop %v174
      %v176 = vsel %vm169, %v175, 0.0
      %177 = vadd.xlane.f32.xlu0 %v176
      %v178 = vpop.xlane.xlu0 %177
      %v179 = vrcp.pop %v178
      %v180 = vmul.f32 %v175, %v179
      %v181 = vpack.c.bf16 %v180, %v180
      %v182 = vunpack.c.h.b16 %v116
      %v183 = vpack.c.b16 %v182, %v182
      %v185 = vsel %vm169, %v181, 0
      %vm187 = vcmask 1043456
      %v189 = vsel %vm187, %v183, 0
      %191 = vmatprep.subr.bf16.mxu0 0
      %192 = vmatpush1.bf16.msra.mxu0 0
      %193 = vmatprep.subr.bf16.mxu0 0
      %194 = vmatpush1.bf16.msra.mxu0 0
      %195 = vmatprep.subr.bf16.mxu0 0
      %196 = vmatpush1.bf16.msra.mxu0 0
      %197 = vmatprep.subr.bf16.mxu0 0
      %198 = vmatpush1.bf16.msra.mxu0 0
      %199 = vmatprep.subr.bf16.mxu0 0
      %200 = vmatpush1.bf16.msra.mxu0 0
      %201 = vmatprep.subr.bf16.mxu0 0
      %202 = vmatpush1.bf16.msra.mxu0 0
      %203 = vmatprep.subr.bf16.mxu0 0
      %204 = vmatpush1.bf16.msra.mxu0 0
      %205 = vmatprep.subr.bf16.mxu0 0
      %206 = vmatpush1.bf16.msra.mxu0 %v189
      %207 = vmatprep.subr.bf16.mxu0 0
      %208 = vmatpush2.bf16.msra.mxu0 0
      %209 = vmatprep.subr.bf16.mxu0 0
      %210 = vmatpush2.bf16.msra.mxu0 0
      %211 = vmatprep.subr.bf16.mxu0 0
      %212 = vmatpush2.bf16.msra.mxu0 0
      %213 = vmatprep.subr.bf16.mxu0 0
      %214 = vmatpush2.bf16.msra.mxu0 0
      %215 = vmatprep.subr.bf16.mxu0 0
      %216 = vmatpush2.bf16.msra.mxu0 0
      %217 = vmatprep.subr.bf16.mxu0 0
      %218 = vmatpush2.bf16.msra.mxu0 0
      %219 = vmatprep.subr.bf16.mxu0 0
      %220 = vmatpush2.bf16.msra.mxu0 0
      %221 = vmatprep.subr.bf16.mxu0 0
      %222 = vmatpush2.bf16.msra.mxu0 0
      %223 = vmatprep.mubr.bf16.mxu0 0
      %224 = vmatmul.mubr.bf16.gmra.mxu0 %v185
      %v225 = vpop.f32.mrf.mxu0
      %v226 = vadd.f32 0.0, %v225
      %v227 = vpop.f32.mrf.mxu0
      %v228 = vpop.f32.mrf.mxu0
      %v229 = vpop.f32.mrf.mxu0
      %230 = vdwg.mxu0
      %231 = vrot.lane.b32.xlu0 %v119, 112
      %v232 = vpop.permute.xlu0 %231
      %233 = vrot.lane.b32.xlu0 %v119, 48
      %v234 = vpop.permute.xlu0 %233
      %v236 = vsel %vm122, %v232, 0
      %v239 = vsel %vm122, %v234, 0
      %241 = vmatprep.subr.bf16.mxu0 0
      %242 = vmatpush1.bf16.xpose.msra.mxu0 0
      %243 = vmatprep.subr.bf16.mxu0 0
      %244 = vmatpush1.bf16.xpose.msra.mxu0 0
      %245 = vmatprep.subr.bf16.mxu0 0
      %246 = vmatpush1.bf16.xpose.msra.mxu0 0
      %247 = vmatprep.subr.bf16.mxu0 0
      %248 = vmatpush1.bf16.xpose.msra.mxu0 0
      %249 = vmatprep.subr.bf16.mxu0 0
      %250 = vmatpush1.bf16.xpose.msra.mxu0 0
      %251 = vmatprep.subr.bf16.mxu0 0
      %252 = vmatpush1.bf16.xpose.msra.mxu0 0
      %253 = vmatprep.subr.bf16.mxu0 0
      %254 = vmatpush1.bf16.xpose.msra.mxu0 0
      %255 = vmatprep.subr.bf16.mxu0 0
      %256 = vmatpush1.bf16.xpose.msra.mxu0 %v239
      %257 = vmatprep.subr.bf16.mxu0 0
      %258 = vmatpush2.bf16.xpose.msra.mxu0 0
      %259 = vmatprep.subr.bf16.mxu0 0
      %260 = vmatpush2.bf16.xpose.msra.mxu0 0
      %261 = vmatprep.subr.bf16.mxu0 0
      %262 = vmatpush2.bf16.xpose.msra.mxu0 0
      %263 = vmatprep.subr.bf16.mxu0 0
      %264 = vmatpush2.bf16.xpose.msra.mxu0 0
      %265 = vmatprep.subr.bf16.mxu0 0
      %266 = vmatpush2.bf16.xpose.msra.mxu0 0
      %267 = vmatprep.subr.bf16.mxu0 0
      %268 = vmatpush2.bf16.xpose.msra.mxu0 0
      %269 = vmatprep.subr.bf16.mxu0 0
      %270 = vmatpush2.bf16.xpose.msra.mxu0 0
      %271 = vmatprep.subr.bf16.mxu0 0
      %272 = vmatpush2.bf16.xpose.msra.mxu0 0
      %273 = vmatprep.mubr.bf16.mxu0 0
      %274 = vmatmul.mubr.bf16.gmra.mxu0 %v236
      %v275 = vpop.f32.mrf.mxu0
      %v276 = vadd.f32 0.0, %v275
      %v277 = vpop.f32.mrf.mxu0
      %v278 = vpop.f32.mrf.mxu0
      %v279 = vpop.f32.mrf.mxu0
      %280 = vdwg.mxu0
      %v281 = vsel %vm169, %v276, -inf
      %282 = vmax.xlane.f32.xlu0 %v281
      %v283 = vpop.xlane.xlu0 %282
      %v284 = vsub.f32 %v276, %v283
      %v285 = vmul.f32 %v284, 1.442695
      %v286 = vpow.pop %v285
      %v287 = vsel %vm169, %v286, 0.0
      %288 = vadd.xlane.f32.xlu0 %v287
      %v289 = vpop.xlane.xlu0 %288
      %v290 = vrcp.pop %v289
      %v291 = vmul.f32 %v286, %v290
      %v292 = vpack.c.bf16 %v291, %v291
      %293 = vrot.lane.b32.xlu0 %v183, 112
      %v294 = vpop.permute.xlu0 %293
      %v296 = vsel %vm169, %v292, 0
      %v299 = vsel %vm187, %v294, 0
      %301 = vmatprep.subr.bf16.mxu0 0
      %302 = vmatpush1.bf16.msra.mxu0 0
      %303 = vmatprep.subr.bf16.mxu0 0
      %304 = vmatpush1.bf16.msra.mxu0 0
      %305 = vmatprep.subr.bf16.mxu0 0
      %306 = vmatpush1.bf16.msra.mxu0 0
      %307 = vmatprep.subr.bf16.mxu0 0
      %308 = vmatpush1.bf16.msra.mxu0 0
      %309 = vmatprep.subr.bf16.mxu0 0
      %310 = vmatpush1.bf16.msra.mxu0 0
      %311 = vmatprep.subr.bf16.mxu0 0
      %312 = vmatpush1.bf16.msra.mxu0 0
      %313 = vmatprep.subr.bf16.mxu0 0
      %314 = vmatpush1.bf16.msra.mxu0 0
      %315 = vmatprep.subr.bf16.mxu0 0
      %316 = vmatpush1.bf16.msra.mxu0 %v299
      %317 = vmatprep.subr.bf16.mxu0 0
      %318 = vmatpush2.bf16.msra.mxu0 0
      %319 = vmatprep.subr.bf16.mxu0 0
      %320 = vmatpush2.bf16.msra.mxu0 0
      %321 = vmatprep.subr.bf16.mxu0 0
      %322 = vmatpush2.bf16.msra.mxu0 0
      %323 = vmatprep.subr.bf16.mxu0 0
      %324 = vmatpush2.bf16.msra.mxu0 0
      %325 = vmatprep.subr.bf16.mxu0 0
      %326 = vmatpush2.bf16.msra.mxu0 0
      %327 = vmatprep.subr.bf16.mxu0 0
      %328 = vmatpush2.bf16.msra.mxu0 0
      %329 = vmatprep.subr.bf16.mxu0 0
      %330 = vmatpush2.bf16.msra.mxu0 0
      %331 = vmatprep.subr.bf16.mxu0 0
      %332 = vmatpush2.bf16.msra.mxu0 0
      %333 = vmatprep.mubr.bf16.mxu0 0
      %334 = vmatmul.mubr.bf16.gmra.mxu0 %v296
      %v335 = vpop.f32.mrf.mxu0
      %v336 = vadd.f32 0.0, %v335
      %v337 = vpop.f32.mrf.mxu0
      %v338 = vpop.f32.mrf.mxu0
      %v339 = vpop.f32.mrf.mxu0
      %340 = vdwg.mxu0
      %341 = vrot.lane.b32.xlu0 %v119, 96
      %v342 = vpop.permute.xlu0 %341
      %343 = vrot.lane.b32.xlu0 %v119, 32
      %v344 = vpop.permute.xlu0 %343
      %v346 = vsel %vm122, %v342, 0
      %v349 = vsel %vm122, %v344, 0
      %351 = vmatprep.subr.bf16.mxu0 0
      %352 = vmatpush1.bf16.xpose.msra.mxu0 0
      %353 = vmatprep.subr.bf16.mxu0 0
      %354 = vmatpush1.bf16.xpose.msra.mxu0 0
      %355 = vmatprep.subr.bf16.mxu0 0
      %356 = vmatpush1.bf16.xpose.msra.mxu0 0
      %357 = vmatprep.subr.bf16.mxu0 0
      %358 = vmatpush1.bf16.xpose.msra.mxu0 0
      %359 = vmatprep.subr.bf16.mxu0 0
      %360 = vmatpush1.bf16.xpose.msra.mxu0 0
      %361 = vmatprep.subr.bf16.mxu0 0
      %362 = vmatpush1.bf16.xpose.msra.mxu0 0
      %363 = vmatprep.subr.bf16.mxu0 0
      %364 = vmatpush1.bf16.xpose.msra.mxu0 0
      %365 = vmatprep.subr.bf16.mxu0 0
      %366 = vmatpush1.bf16.xpose.msra.mxu0 %v349
      %367 = vmatprep.subr.bf16.mxu0 0
      %368 = vmatpush2.bf16.xpose.msra.mxu0 0
      %369 = vmatprep.subr.bf16.mxu0 0
      %370 = vmatpush2.bf16.xpose.msra.mxu0 0
      %371 = vmatprep.subr.bf16.mxu0 0
      %372 = vmatpush2.bf16.xpose.msra.mxu0 0
      %373 = vmatprep.subr.bf16.mxu0 0
      %374 = vmatpush2.bf16.xpose.msra.mxu0 0
      %375 = vmatprep.subr.bf16.mxu0 0
      %376 = vmatpush2.bf16.xpose.msra.mxu0 0
      %377 = vmatprep.subr.bf16.mxu0 0
      %378 = vmatpush2.bf16.xpose.msra.mxu0 0
      %379 = vmatprep.subr.bf16.mxu0 0
      %380 = vmatpush2.bf16.xpose.msra.mxu0 0
      %381 = vmatprep.subr.bf16.mxu0 0
      %382 = vmatpush2.bf16.xpose.msra.mxu0 0
      %383 = vmatprep.mubr.bf16.mxu0 0
      %384 = vmatmul.mubr.bf16.gmra.mxu0 %v346
      %v385 = vpop.f32.mrf.mxu0
      %v386 = vadd.f32 0.0, %v385
      %v387 = vpop.f32.mrf.mxu0
      %v388 = vpop.f32.mrf.mxu0
      %v389 = vpop.f32.mrf.mxu0
      %390 = vdwg.mxu0
      %v391 = vsel %vm169, %v386, -inf
      %392 = vmax.xlane.f32.xlu0 %v391
      %v393 = vpop.xlane.xlu0 %392
      %v394 = vsub.f32 %v386, %v393
      %v395 = vmul.f32 %v394, 1.442695
      %v396 = vpow.pop %v395
      %v397 = vsel %vm169, %v396, 0.0
      %398 = vadd.xlane.f32.xlu0 %v397
      %v399 = vpop.xlane.xlu0 %398
      %v400 = vrcp.pop %v399
      %v401 = vmul.f32 %v396, %v400
      %v402 = vpack.c.bf16 %v401, %v401
      %403 = vrot.lane.b32.xlu0 %v183, 96
      %v404 = vpop.permute.xlu0 %403
      %v406 = vsel %vm169, %v402, 0
      %v409 = vsel %vm187, %v404, 0
      %411 = vmatprep.subr.bf16.mxu0 0
      %412 = vmatpush1.bf16.msra.mxu0 0
      %413 = vmatprep.subr.bf16.mxu0 0
      %414 = vmatpush1.bf16.msra.mxu0 0
      %415 = vmatprep.subr.bf16.mxu0 0
      %416 = vmatpush1.bf16.msra.mxu0 0
      %417 = vmatprep.subr.bf16.mxu0 0
      %418 = vmatpush1.bf16.msra.mxu0 0
      %419 = vmatprep.subr.bf16.mxu0 0
      %420 = vmatpush1.bf16.msra.mxu0 0
      %421 = vmatprep.subr.bf16.mxu0 0
      %422 = vmatpush1.bf16.msra.mxu0 0
      %423 = vmatprep.subr.bf16.mxu0 0
      %424 = vmatpush1.bf16.msra.mxu0 0
      %425 = vmatprep.subr.bf16.mxu0 0
      %426 = vmatpush1.bf16.msra.mxu0 %v409
      %427 = vmatprep.subr.bf16.mxu0 0
      %428 = vmatpush2.bf16.msra.mxu0 0
      %429 = vmatprep.subr.bf16.mxu0 0
      %430 = vmatpush2.bf16.msra.mxu0 0
      %431 = vmatprep.subr.bf16.mxu0 0
      %432 = vmatpush2.bf16.msra.mxu0 0
      %433 = vmatprep.subr.bf16.mxu0 0
      %434 = vmatpush2.bf16.msra.mxu0 0
      %435 = vmatprep.subr.bf16.mxu0 0
      %436 = vmatpush2.bf16.msra.mxu0 0
      %437 = vmatprep.subr.bf16.mxu0 0
      %438 = vmatpush2.bf16.msra.mxu0 0
      %439 = vmatprep.subr.bf16.mxu0 0
      %440 = vmatpush2.bf16.msra.mxu0 0
      %441 = vmatprep.subr.bf16.mxu0 0
      %442 = vmatpush2.bf16.msra.mxu0 0
      %443 = vmatprep.mubr.bf16.mxu0 0
      %444 = vmatmul.mubr.bf16.gmra.mxu0 %v406
      %v445 = vpop.f32.mrf.mxu0
      %v446 = vadd.f32 0.0, %v445
      %v447 = vpop.f32.mrf.mxu0
      %v448 = vpop.f32.mrf.mxu0
      %v449 = vpop.f32.mrf.mxu0
      %450 = vdwg.mxu0
      %451 = vrot.lane.b32.xlu0 %v119, 80
      %v452 = vpop.permute.xlu0 %451
      %453 = vrot.lane.b32.xlu0 %v119, 16
      %v454 = vpop.permute.xlu0 %453
      %v456 = vsel %vm122, %v452, 0
      %v459 = vsel %vm122, %v454, 0
      %461 = vmatprep.subr.bf16.mxu0 0
      %462 = vmatpush1.bf16.xpose.msra.mxu0 0
      %463 = vmatprep.subr.bf16.mxu0 0
      %464 = vmatpush1.bf16.xpose.msra.mxu0 0
      %465 = vmatprep.subr.bf16.mxu0 0
      %466 = vmatpush1.bf16.xpose.msra.mxu0 0
      %467 = vmatprep.subr.bf16.mxu0 0
      %468 = vmatpush1.bf16.xpose.msra.mxu0 0
      %469 = vmatprep.subr.bf16.mxu0 0
      %470 = vmatpush1.bf16.xpose.msra.mxu0 0
      %471 = vmatprep.subr.bf16.mxu0 0
      %472 = vmatpush1.bf16.xpose.msra.mxu0 0
      %473 = vmatprep.subr.bf16.mxu0 0
      %474 = vmatpush1.bf16.xpose.msra.mxu0 0
      %475 = vmatprep.subr.bf16.mxu0 0
      %476 = vmatpush1.bf16.xpose.msra.mxu0 %v459
      %477 = vmatprep.subr.bf16.mxu0 0
      %478 = vmatpush2.bf16.xpose.msra.mxu0 0
      %479 = vmatprep.subr.bf16.mxu0 0
      %480 = vmatpush2.bf16.xpose.msra.mxu0 0
      %481 = vmatprep.subr.bf16.mxu0 0
      %482 = vmatpush2.bf16.xpose.msra.mxu0 0
      %483 = vmatprep.subr.bf16.mxu0 0
      %484 = vmatpush2.bf16.xpose.msra.mxu0 0
      %485 = vmatprep.subr.bf16.mxu0 0
      %486 = vmatpush2.bf16.xpose.msra.mxu0 0
      %487 = vmatprep.subr.bf16.mxu0 0
      %488 = vmatpush2.bf16.xpose.msra.mxu0 0
      %489 = vmatprep.subr.bf16.mxu0 0
      %490 = vmatpush2.bf16.xpose.msra.mxu0 0
      %491 = vmatprep.subr.bf16.mxu0 0
      %492 = vmatpush2.bf16.xpose.msra.mxu0 0
      %493 = vmatprep.mubr.bf16.mxu0 0
      %494 = vmatmul.mubr.bf16.gmra.mxu0 %v456
      %v495 = vpop.f32.mrf.mxu0
      %v496 = vadd.f32 0.0, %v495
      %v497 = vpop.f32.mrf.mxu0
      %v498 = vpop.f32.mrf.mxu0
      %v499 = vpop.f32.mrf.mxu0
      %500 = vdwg.mxu0
      %v501 = vsel %vm169, %v496, -inf
      %502 = vmax.xlane.f32.xlu0 %v501
      %v503 = vpop.xlane.xlu0 %502
      %v504 = vsub.f32 %v496, %v503
      %v505 = vmul.f32 %v504, 1.442695
      %v506 = vpow.pop %v505
      %v507 = vsel %vm169, %v506, 0.0
      %508 = vadd.xlane.f32.xlu0 %v507
      %v509 = vpop.xlane.xlu0 %508
      %v510 = vrcp.pop %v509
      %v511 = vmul.f32 %v506, %v510
      %v512 = vpack.c.bf16 %v511, %v511
      %513 = vrot.lane.b32.xlu0 %v183, 80
      %v514 = vpop.permute.xlu0 %513
      %v516 = vsel %vm169, %v512, 0
      %v519 = vsel %vm187, %v514, 0
      %521 = vmatprep.subr.bf16.mxu0 0
      %522 = vmatpush1.bf16.msra.mxu0 0
      %523 = vmatprep.subr.bf16.mxu0 0
      %524 = vmatpush1.bf16.msra.mxu0 0
      %525 = vmatprep.subr.bf16.mxu0 0
      %526 = vmatpush1.bf16.msra.mxu0 0
      %527 = vmatprep.subr.bf16.mxu0 0
      %528 = vmatpush1.bf16.msra.mxu0 0
      %529 = vmatprep.subr.bf16.mxu0 0
      %530 = vmatpush1.bf16.msra.mxu0 0
      %531 = vmatprep.subr.bf16.mxu0 0
      %532 = vmatpush1.bf16.msra.mxu0 0
      %533 = vmatprep.subr.bf16.mxu0 0
      %534 = vmatpush1.bf16.msra.mxu0 0
      %535 = vmatprep.subr.bf16.mxu0 0
      %536 = vmatpush1.bf16.msra.mxu0 %v519
      %537 = vmatprep.subr.bf16.mxu0 0
      %538 = vmatpush2.bf16.msra.mxu0 0
      %539 = vmatprep.subr.bf16.mxu0 0
      %540 = vmatpush2.bf16.msra.mxu0 0
      %541 = vmatprep.subr.bf16.mxu0 0
      %542 = vmatpush2.bf16.msra.mxu0 0
      %543 = vmatprep.subr.bf16.mxu0 0
      %544 = vmatpush2.bf16.msra.mxu0 0
      %545 = vmatprep.subr.bf16.mxu0 0
      %546 = vmatpush2.bf16.msra.mxu0 0
      %547 = vmatprep.subr.bf16.mxu0 0
      %548 = vmatpush2.bf16.msra.mxu0 0
      %549 = vmatprep.subr.bf16.mxu0 0
      %550 = vmatpush2.bf16.msra.mxu0 0
      %551 = vmatprep.subr.bf16.mxu0 0
      %552 = vmatpush2.bf16.msra.mxu0 0
      %553 = vmatprep.mubr.bf16.mxu0 0
      %554 = vmatmul.mubr.bf16.gmra.mxu0 %v516
      %v555 = vpop.f32.mrf.mxu0
      %v556 = vadd.f32 0.0, %v555
      %v557 = vpop.f32.mrf.mxu0
      %v558 = vpop.f32.mrf.mxu0
      %v559 = vpop.f32.mrf.mxu0
      %560 = vdwg.mxu0
      %562 = vrot.lane.b32.xlu0 %v336, 16
      %v563 = vpop.permute.xlu0 %562
      %566 = vrot.lane.b32.xlu0 %v446, 32
      %v567 = vpop.permute.xlu0 %566
      %570 = vrot.lane.b32.xlu0 %v556, 48
      %v571 = vpop.permute.xlu0 %570
      %v573 = vsel %vm122, %v226, %v563
      %vm574 = vcmask 261120
      %v575 = vsel %vm574, %v573, %v567
      %vm576 = vcmask 392192
      %v577 = vsel %vm576, %v575, %v571
      %v578 = vpack.c.bf16 %v577, %v577
      %vm579 = vcmask 519168
      %580 = vst.msk [vmem:[%s114] sm:$0xf] %vm579, %v578
      %p581 = scmp.lt.s32.totalorder %s12, 1
      %s582 = scalar_select %p581, %s12, 1
      %s583 = smul.addr %s582, 4
      %s584 = scalar_lea.vmem %s1, %s583
      // Predicated region
      $region25: #{block_forward.10} parent=23 // pred_check
        %p585 = pneg %p56
      $region26: #{block_forward.10} parent=23 // pred_check_branch
        %587 = sbr.rel (%p585) target = $region28
      $region27: #{block_forward.10} parent=23 // pred_region
        _
      $region28: #{block_forward.10} parent=23 // pred_fallthru
        _
    $region24: #{block_forward.10} parent=5 // pred_fallthru
      _
    %p588 = scmp.le.s32.totalorder 2, %s7
    // Predicated region
    $region29: #{block_forward.10} parent=5 // pred_check
      %p589 = pneg %p588
    $region30: #{block_forward.10} parent=5 // pred_check_branch
      %591 = sbr.rel (%p589) target = $region32
    $region31: #{block_forward.10} parent=5 // pred_region
      %s592 = ssub.s32 %s7, 2
      // Predicated region
      $region33: #{block_forward.10} parent=31 // pred_check
        %p593 = pneg %p62
      $region34: #{block_forward.10} parent=31 // pred_check_branch
        %595 = sbr.rel (%p593) target = $region36
      $region35: #{block_forward.10} parent=31 // pred_region
        %p596 = scmp.lt.s32.totalorder %s13, 1
        %s597 = scalar_select %p596, %s13, 1
        %s598 = smul.addr %s597, 4
        %s599 = scalar_lea.vmem %s1, %s598
      $region36: #{block_forward.10} parent=31 // pred_fallthru
        _
    $region32: #{block_forward.10} parent=5 // pred_fallthru
      _
  $region6: #{block_forward.10} parent=0 // loop_footer
    %s11 = sadd.s32 1, %s7
  $region7: #{block_forward.10} parent=0 // loop_footer_branch
    %6 = sbr.rel target = $region3
  $region8: #{block_forward.10} parent=0 // loop_exit
    _

// kernel: block_forward.13
$region0: #{block_forward.13}
  #allocation0 [shape = 'u32[]', space=smem, size = 0x4, offset = 0x4, fixed_abs, tag = 'smem constant byte address 0x4 - core index']
  #allocation1 [shape = 'u32[144,128]{1,0:T(1,128)}', space=vmem, size = 0x12000, scoped, tag = 'internal scratch']
  %s0 = inlined_call_operand.vmem [shape: f32[32,48], index: 0, kind: input, shape index: {}]
  %s1 = inlined_call_operand.vmem [shape: bf16[48,128], index: 1, kind: input, shape index: {}]
  %s2 = inlined_call_operand.vmem [shape: f32[1,128], index: 2, kind: input, shape index: {}]
  %s3 = inlined_call_operand.vmem [shape: bf16[32,128], index: 3, kind: output, shape index: {}]
  %s4 = sld [smem:[#allocation0]]
  $region22: #{block_forward.13} parent=0
    _
  %s6 = ssub.s32 1, %s4
  %s7 = scalar_select 0, %s6, %s4
  // Predicated region
  $region2: #{block_forward.13} parent=0 // pred_check
    _
  $region3: #{block_forward.13} parent=0 // pred_check_branch
    %9 = sbr.rel (0) target = $region5
  $region4: #{block_forward.13} parent=0 // pred_region
    _
  $region5: #{block_forward.13} parent=0 // pred_fallthru
    _
  // Predicated region
  $region6: #{block_forward.13} parent=0 // pred_check
    _
  $region7: #{block_forward.13} parent=0 // pred_check_branch
    %11 = sbr.rel (0) target = $region9
  $region8: #{block_forward.13} parent=0 // pred_region
    _
  $region9: #{block_forward.13} parent=0 // pred_fallthru
    _
  // Predicated region
  $region10: #{block_forward.13} parent=0 // pred_check
    _
  $region11: #{block_forward.13} parent=0 // pred_check_branch
    %13 = sbr.rel (0) target = $region13
  $region12: #{block_forward.13} parent=0 // pred_region
    _
  $region13: #{block_forward.13} parent=0 // pred_fallthru
    _
  %v15 = vld [vmem:[%s0] sm:$0xff]
  %v16 = vld [vmem:[%s0 + $0x8] sm:$0xff]
  %v17 = vld [vmem:[%s0 + $0x10] sm:$0xff]
  %v18 = vld [vmem:[%s0 + $0x18] sm:$0xff]
  %v19 = vpack.c.bf16 %v16, %v15
  %v20 = vpack.c.bf16 %v18, %v17
  %v21 = vld [vmem:[%s1] sm:$0xf]
  %v22 = vld [vmem:[%s1 + $0x4] sm:$0xf]
  %v23 = vld [vmem:[%s1 + $0x8] sm:$0xf]
  %v24 = vld [vmem:[%s1 + $0xc] sm:$0xf]
  %v25 = vld [vmem:[%s1 + $0x10] sm:$0xf]
  %v26 = vld [vmem:[%s1 + $0x14] sm:$0xf]
  %v27 = vld [vmem:[%s2] sm:$0x1]
  %v29 = vlaneseq
  %v30 = vshrl.u32 %v29, 7
  %v31 = vsub.s32 0, %v30
  %v32 = vrot.slane %v27, %v31
  %v40 = vunpack.c.l.b16 %v21
  %v41 = vunpack.c.l.b16 %v22
  %v42 = vunpack.c.l.b16 %v23
  %v43 = vunpack.c.l.b16 %v24
  %v44 = vunpack.c.l.b16 %v25
  %v45 = vunpack.c.l.b16 %v26
  %v46 = vpack.c.b16 %v41, %v40
  %v47 = vpack.c.b16 %v43, %v42
  %v48 = vpack.c.b16 %v45, %v44
  %vm52 = vcmask 392192
  %v54 = vsel %vm52, %v19, 0
  %v57 = vsel %vm52, %v20, 0
  %59 = vmatprep.subr.bf16.mxu0 0
  %60 = vmatpush1.bf16.msra.mxu0 0
  %61 = vmatprep.subr.bf16.mxu0 0
  %62 = vmatpush1.bf16.msra.mxu0 0
  %63 = vmatprep.subr.bf16.mxu0 0
  %64 = vmatpush1.bf16.msra.mxu0 0
  %65 = vmatprep.subr.bf16.mxu0 0
  %66 = vmatpush1.bf16.msra.mxu0 0
  %67 = vmatprep.subr.bf16.mxu0 0
  %68 = vmatpush1.bf16.msra.mxu0 0
  %69 = vmatprep.subr.bf16.mxu0 0
  %70 = vmatpush1.bf16.msra.mxu0 %v48
  %71 = vmatprep.subr.bf16.mxu0 0
  %72 = vmatpush1.bf16.msra.mxu0 %v47
  %73 = vmatprep.subr.bf16.mxu0 0
  %74 = vmatpush1.bf16.msra.mxu0 %v46
  %75 = vmatprep.subr.bf16.mxu0 0
  %76 = vmatpush2.bf16.msra.mxu0 0
  %77 = vmatprep.subr.bf16.mxu0 0
  %78 = vmatpush2.bf16.msra.mxu0 0
  %79 = vmatprep.subr.bf16.mxu0 0
  %80 = vmatpush2.bf16.msra.mxu0 0
  %81 = vmatprep.subr.bf16.mxu0 0
  %82 = vmatpush2.bf16.msra.mxu0 0
  %83 = vmatprep.subr.bf16.mxu0 0
  %84 = vmatpush2.bf16.msra.mxu0 0
  %85 = vmatprep.subr.bf16.mxu0 0
  %86 = vmatpush2.bf16.msra.mxu0 0
  %87 = vmatprep.subr.bf16.mxu0 0
  %88 = vmatpush2.bf16.msra.mxu0 0
  %89 = vmatprep.subr.bf16.mxu0 0
  %90 = vmatpush2.bf16.msra.mxu0 0
  %91 = vmatprep.mubr.bf16.mxu0 0
  %92 = vmatmul.mubr.bf16.gmra.mxu0 %v54
  %v93 = vpop.f32.mrf.mxu0
  %v94 = vadd.f32 %v32, %v93
  %v95 = vpop.f32.mrf.mxu0
  %v96 = vpop.f32.mrf.mxu0
  %v97 = vadd.f32 %v32, %v96
  %v98 = vpop.f32.mrf.mxu0
  %99 = vmatprep.mubr.bf16.mxu0 0
  %100 = vmatmul.mubr.bf16.gmra.mxu0 %v57
  %v101 = vpop.f32.mrf.mxu0
  %v102 = vadd.f32 %v32, %v101
  %v103 = vpop.f32.mrf.mxu0
  %v104 = vpop.f32.mrf.mxu0
  %v105 = vadd.f32 %v32, %v104
  %v106 = vpop.f32.mrf.mxu0
  %107 = vdwg.mxu0
  %v108 = vpack.c.bf16 %v97, %v94
  %v109 = vpack.c.bf16 %v105, %v102
  %v112 = vunpack.c.l.b16 %v108
  %v113 = vunpack.c.h.b16 %v108
  %v114 = vunpack.c.l.b16 %v109
  %v115 = vunpack.c.h.b16 %v109
  %v116 = vpack.c.b16 %v112, %v112
  %v117 = vpack.c.b16 %v113, %v113
  %v118 = vpack.c.b16 %v114, %v114
  %v119 = vpack.c.b16 %v115, %v115
  %124 = vst [vmem:[%s3] sm:$0xf] %v116
  %125 = vst [vmem:[%s3 + $0x4] sm:$0xf] %v117
  %126 = vst [vmem:[%s3 + $0x8] sm:$0xf] %v118
  %127 = vst [vmem:[%s3 + $0xc] sm:$0xf] %v119
  // Predicated region
  $region14: #{block_forward.13} parent=0 // pred_check
    _
  $region15: #{block_forward.13} parent=0 // pred_check_branch
    %129 = sbr.rel (0) target = $region17
  $region16: #{block_forward.13} parent=0 // pred_region
    _
  $region17: #{block_forward.13} parent=0 // pred_fallthru
    _
  // Predicated region
  $region18: #{block_forward.13} parent=0 // pred_check
    _
  $region19: #{block_forward.13} parent=0 // pred_check_branch
    %131 = sbr.rel (0) target = $region21
  $region20: #{block_forward.13} parent=0 // pred_region
    _
  $region21: #{block_forward.13} parent=0 // pred_fallthru
    _

// kernel: block_forward.14
$region0: #{block_forward.14}
  #allocation0 [shape = 'u32[]', space=smem, size = 0x4, offset = 0x4, fixed_abs, tag = 'smem constant byte address 0x4 - core index']
  #allocation1 [shape = 'u32[144,128]{1,0:T(1,128)}', space=vmem, size = 0x12000, scoped, tag = 'internal scratch']
  %s0 = inlined_call_operand.vmem [shape: bf16[2,8,64], index: 0, kind: input, shape index: {}]
  %s1 = inlined_call_operand.vmem [shape: bf16[2,16,128], index: 1, kind: input, shape index: {}]
  %s2 = inlined_call_operand.vmem [shape: bf16[2,8,64], index: 2, kind: output, shape index: {}]
  %s3 = sld [smem:[#allocation0]]
  $region41: #{block_forward.14} parent=0
    _
  %s5 = ssub.s32 1, %s3
  %s6 = scalar_select 0, %s5, %s3
  loop: start=0, step=1, limit=4
  $region2: #{block_forward.14} parent=0 // loop_pre_header
    _
  $region3: #{block_forward.14} parent=0 // loop_header
    %s8 = sphi 0, %s12
    %p9 = scmp.ge.s32.totalorder %s8, 4
    %s18 = sphi 0, %s20
    %s21 = sphi 0, %s18
    %s22 = sphi 0, %s21
    %s38 = sphi 0, %s22
    %s44 = sphi 0, %s46
    %s47 = sphi 0, %s44
    %s48 = sphi 0, %s47
    %s64 = sphi 0, %s48
    %s70 = sphi 0, %s72
    %s73 = sphi 0, %s70
    %s74 = sphi 0, %s73
    %s90 = sphi 0, %s74
  $region4: #{block_forward.14} parent=0 // loop_header_branch
    %11 = sbr.rel (%p9) target = $region8
  $region5: #{block_forward.14} parent=0 // loop_body
    %s13 = ssub.s32 %s8, 1
    %s14 = ssub.s32 %s8, 2
    %s15 = sadd.s32 %s8, 1
    %s16 = ssub.s32 %s8, %s15
    %p17 = scmp.eq.s32.totalorder %s16, 0
    %s19 = sadd.s32 %s18, 1
    %s20 = scalar_select %p17, %s18, %s19
    %p23 = pneg %p17
    %p24 = scmp.eq.s32.totalorder %s8, 1
    %p25 = por %p23, %p24
    %p26 = scmp.ne.s32.totalorder %s18, %s21
    %p27 = scmp.eq.s32.totalorder %s8, 0
    %p28 = por %p26, %p27
    %p29 = scmp.ne.s32.totalorder %s18, %s21
    %p30 = scmp.eq.s32.totalorder %s13, 1
    %p31 = por %p29, %p30
    %p32 = scmp.ne.s32.totalorder %s21, %s22
    %p33 = scmp.eq.s32.totalorder %s13, 0
    %p34 = por %p32, %p33
    %p35 = scmp.ne.s32.totalorder %s21, %s22
    %p36 = scmp.eq.s32.totalorder %s14, 1
    %p37 = por %p35, %p36
    %p39 = scmp.ne.s32.totalorder %s22, %s38
    %p40 = scmp.eq.s32.totalorder %s14, 0
    %p41 = por %p39, %p40
    %s42 = ssub.s32 %s8, %s15
    %p43 = scmp.eq.s32.totalorder %s42, 0
    %s45 = sadd.s32 %s44, 1
    %s46 = scalar_select %p43, %s44, %s45
    %p49 = pneg %p43
    %p50 = scmp.eq.s32.totalorder %s8, 1
    %p51 = por %p49, %p50
    %p52 = scmp.ne.s32.totalorder %s44, %s47
    %p53 = scmp.eq.s32.totalorder %s8, 0
    %p54 = por %p52, %p53
    %p55 = scmp.ne.s32.totalorder %s44, %s47
    %p56 = scmp.eq.s32.totalorder %s13, 1
    %p57 = por %p55, %p56
    %p58 = scmp.ne.s32.totalorder %s47, %s48
    %p59 = scmp.eq.s32.totalorder %s13, 0
    %p60 = por %p58, %p59
    %p61 = scmp.ne.s32.totalorder %s47, %s48
    %p62 = scmp.eq.s32.totalorder %s14, 1
    %p63 = por %p61, %p62
    %p65 = scmp.ne.s32.totalorder %s48, %s64
    %p66 = scmp.eq.s32.totalorder %s14, 0
    %p67 = por %p65, %p66
    %s68 = ssub.s32 %s8, %s15
    %p69 = scmp.eq.s32.totalorder %s68, 0
    %s71 = sadd.s32 %s70, 1
    %s72 = scalar_select %p69, %s70, %s71
    %p75 = pneg %p69
    %p76 = scmp.eq.s32.totalorder %s8, 1
    %p77 = por %p75, %p76
    %p78 = scmp.ne.s32.totalorder %s70, %s73
    %p79 = scmp.eq.s32.totalorder %s8, 0
    %p80 = por %p78, %p79
    %p81 = scmp.ne.s32.totalorder %s70, %s73
    %p82 = scmp.eq.s32.totalorder %s13, 1
    %p83 = por %p81, %p82
    %p84 = scmp.ne.s32.totalorder %s73, %s74
    %p85 = scmp.eq.s32.totalorder %s13, 0
    %p86 = por %p84, %p85
    %p87 = scmp.ne.s32.totalorder %s73, %s74
    %p88 = scmp.eq.s32.totalorder %s14, 1
    %p89 = por %p87, %p88
    %p91 = scmp.ne.s32.totalorder %s74, %s90
    %p92 = scmp.eq.s32.totalorder %s14, 0
    %p93 = por %p91, %p92
    %p94 = scmp.le.s32.totalorder 1, %s8
    %p95 = scmp.lt.s32.totalorder %s8, 3
    %p96 = pnand %p94, %p95
    %p97 = pneg %p96
    // Predicated region
    $region9: #{block_forward.14} parent=5 // pred_check
      _
    $region10: #{block_forward.14} parent=5 // pred_check_branch
      %99 = sbr.rel (%p96) target = $region12
    $region11: #{block_forward.14} parent=5 // pred_region
      %s100 = ssub.s32 %s8, 1
    $region12: #{block_forward.14} parent=5 // pred_fallthru
      _
    %p101 = scmp.lt.s32.totalorder %s8, 2
    // Predicated region
    $region13: #{block_forward.14} parent=5 // pred_check
      %p102 = pneg %p101
    $region14: #{block_forward.14} parent=5 // pred_check_branch
      %104 = sbr.rel (%p102) target = $region16
    $region15: #{block_forward.14} parent=5 // pred_region
      // Predicated region
      $region17: #{block_forward.14} parent=15 // pred_check
        %p105 = pneg %p28
      $region18: #{block_forward.14} parent=15 // pred_check_branch
        %107 = sbr.rel (%p105) target = $region20
      $region19: #{block_forward.14} parent=15 // pred_region
        %p108 = scmp.lt.s32.totalorder %s8, 1
        %s109 = scalar_select %p108, %s8, 1
        %s110 = smul.addr %s109, 4
        %s111 = scalar_lea.vmem %s0, %s110
      $region20: #{block_forward.14} parent=15 // pred_fallthru
        _
      // Predicated region
      $region21: #{block_forward.14} parent=15 // pred_check
        %p112 = pneg %p54
      $region22: #{block_forward.14} parent=15 // pred_check_branch
        %114 = sbr.rel (%p112) target = $region24
      $region23: #{block_forward.14} parent=15 // pred_region
        %p115 = scmp.lt.s32.totalorder %s8, 1
        %s116 = scalar_select %p115, %s8, 1
        %s117 = smul.addr %s116, 2
        %s118 = smul.addr %s117, 4
        %s119 = scalar_lea.vmem %s1, %s118
      $region24: #{block_forward.14} parent=15 // pred_fallthru
        _
    $region16: #{block_forward.14} parent=5 // pred_fallthru
      _
    %p120 = scmp.le.s32.totalorder 1, %s8
    %p121 = scmp.lt.s32.totalorder %s8, 3
    %p122 = pnand %p120, %p121
    %p123 = pneg %p122
    // Predicated region
    $region25: #{block_forward.14} parent=5 // pred_check
      _
    $region26: #{block_forward.14} parent=5 // pred_check_branch
      %125 = sbr.rel (%p122) target = $region28
    $region27: #{block_forward.14} parent=5 // pred_region
      %s126 = ssub.s32 %s8, 1
      %p127 = scmp.lt.s32.totalorder %s13, 1
      %s128 = scalar_select %p127, %s13, 1
      %s129 = smul.addr %s128, 4
      %s130 = scalar_lea.vmem %s0, %s129
      %p131 = pneg %p34
      %p132 = pneg %p31
      %p133 = scmp.lt.s32.totalorder %s13, 1
      %s134 = scalar_select %p133, %s13, 1
      %s135 = smul.addr %s134, 2
      %s136 = smul.addr %s135, 4
      %s137 = scalar_lea.vmem %s1, %s136
      %p138 = pneg %p60
      %p139 = pneg %p57
      %p140 = pneg %p86
      %p141 = pneg %p83
      %p142 = scmp.lt.s32.totalorder %s13, 1
      %s143 = scalar_select %p142, %s13, 1
      %s144 = smul.addr %s143, 4
      %s145 = scalar_lea.vmem %s2, %s144
      %p146 = scmp.lt.s32.totalorder %s13, 1
      %s147 = scalar_select %p146, %s13, 1
      %s148 = smul.addr %s147, 4
      %s149 = scalar_lea.vmem %s0, %s148
      %p150 = scmp.lt.s32.totalorder %s13, 1
      %s151 = scalar_select %p150, %s13, 1
      %s152 = smul.addr %s151, 2
      %s153 = smul.addr %s152, 4
      %s154 = scalar_lea.vmem %s1, %s153
      %p155 = scmp.lt.s32.totalorder %s13, 1
      %s156 = scalar_select %p155, %s13, 1
      %s157 = smul.addr %s156, 4
      %s158 = scalar_lea.vmem %s2, %s157
      %v160 = vld [vmem:[%s149] sm:$0xf]
      %v161 = vld [vmem:[%s154] sm:$0xf]
      %v162 = vld [vmem:[%s154 + $0x4] sm:$0xf]
      %v165 = vunpack.c.l.b16 %v161
      %v166 = vunpack.c.l.b16 %v162
      %v167 = vpack.c.b16 %v166, %v165
      %vm168 = vcmask 130048
      %v170 = vsel %vm168, %v160, 0
      %v173 = vsel %vm168, %v167, 0
      %175 = vmatprep.subr.bf16.mxu0 0
      %176 = vmatpush1.bf16.xpose.msra.mxu0 0
      %177 = vmatprep.subr.bf16.mxu0 0
      %178 = vmatpush1.bf16.xpose.msra.mxu0 0
      %179 = vmatprep.subr.bf16.mxu0 0
      %180 = vmatpush1.bf16.xpose.msra.mxu0 0
      %181 = vmatprep.subr.bf16.mxu0 0
      %182 = vmatpush1.bf16.xpose.msra.mxu0 0
      %183 = vmatprep.subr.bf16.mxu0 0
      %184 = vmatpush1.bf16.xpose.msra.mxu0 0
      %185 = vmatprep.subr.bf16.mxu0 0
      %186 = vmatpush1.bf16.xpose.msra.mxu0 0
      %187 = vmatprep.subr.bf16.mxu0 0
      %188 = vmatpush1.bf16.xpose.msra.mxu0 0
      %189 = vmatprep.subr.bf16.mxu0 0
      %190 = vmatpush1.bf16.xpose.msra.mxu0 %v173
      %191 = vmatprep.subr.bf16.mxu0 0
      %192 = vmatpush2.bf16.xpose.msra.mxu0 0
      %193 = vmatprep.subr.bf16.mxu0 0
      %194 = vmatpush2.bf16.xpose.msra.mxu0 0
      %195 = vmatprep.subr.bf16.mxu0 0
      %196 = vmatpush2.bf16.xpose.msra.mxu0 0
      %197 = vmatprep.subr.bf16.mxu0 0
      %198 = vmatpush2.bf16.xpose.msra.mxu0 0
      %199 = vmatprep.subr.bf16.mxu0 0
      %200 = vmatpush2.bf16.xpose.msra.mxu0 0
      %201 = vmatprep.subr.bf16.mxu0 0
      %202 = vmatpush2.bf16.xpose.msra.mxu0 0
      %203 = vmatprep.subr.bf16.mxu0 0
      %204 = vmatpush2.bf16.xpose.msra.mxu0 0
      %205 = vmatprep.subr.bf16.mxu0 0
      %206 = vmatpush2.bf16.xpose.msra.mxu0 0
      %207 = vmatprep.mubr.bf16.mxu0 0
      %208 = vmatmul.mubr.bf16.gmra.mxu0 %v170
      %v209 = vpop.f32.mrf.mxu0
      %v210 = vadd.f32 0.0, %v209
      %v211 = vpop.f32.mrf.mxu0
      %v212 = vpop.f32.mrf.mxu0
      %v213 = vpop.f32.mrf.mxu0
      %214 = vdwg.mxu0
      %v215 = vsel %vm168, %v210, -inf
      %216 = vmax.xlane.f32.xlu0 %v215
      %v217 = vpop.xlane.xlu0 %216
      %v218 = vsub.f32 %v210, %v217
      %v219 = vmul.f32 %v218, 1.442695
      %v220 = vpow.pop %v219
      %v221 = vsel %vm168, %v220, 0.0
      %222 = vadd.xlane.f32.xlu0 %v221
      %v223 = vpop.xlane.xlu0 %222
      %v224 = vrcp.pop %v223
      %v225 = vmul.f32 %v220, %v224
      %v226 = vpack.c.bf16 %v225, %v225
      %227 = vrot.lane.b32.xlu0 %v167, 64
      %v228 = vpop.permute.xlu0 %227
      %v231 = vsel %vm168, %v226, 0
      %233 = vmatprep.subr.bf16.mxu0 0
      %234 = vmatpush1.bf16.msra.mxu0 0
      %235 = vmatprep.subr.bf16.mxu0 0
      %236 = vmatpush1.bf16.msra.mxu0 0
      %237 = vmatprep.subr.bf16.mxu0 0
      %238 = vmatpush1.bf16.msra.mxu0 0
      %239 = vmatprep.subr.bf16.mxu0 0
      %240 = vmatpush1.bf16.msra.mxu0 0
      %241 = vmatprep.subr.bf16.mxu0 0
      %242 = vmatpush1.bf16.msra.mxu0 0
      %243 = vmatprep.subr.bf16.mxu0 0
      %244 = vmatpush1.bf16.msra.mxu0 0
      %245 = vmatprep.subr.bf16.mxu0 0
      %246 = vmatpush1.bf16.msra.mxu0 0
      %247 = vmatprep.subr.bf16.mxu0 0
      %248 = vmatpush1.bf16.msra.mxu0 %v228
      %249 = vmatprep.subr.bf16.mxu0 0
      %250 = vmatpush2.bf16.msra.mxu0 0
      %251 = vmatprep.subr.bf16.mxu0 0
      %252 = vmatpush2.bf16.msra.mxu0 0
      %253 = vmatprep.subr.bf16.mxu0 0
      %254 = vmatpush2.bf16.msra.mxu0 0
      %255 = vmatprep.subr.bf16.mxu0 0
      %256 = vmatpush2.bf16.msra.mxu0 0
      %257 = vmatprep.subr.bf16.mxu0 0
      %258 = vmatpush2.bf16.msra.mxu0 0
      %259 = vmatprep.subr.bf16.mxu0 0
      %260 = vmatpush2.bf16.msra.mxu0 0
      %261 = vmatprep.subr.bf16.mxu0 0
      %262 = vmatpush2.bf16.msra.mxu0 0
      %263 = vmatprep.subr.bf16.mxu0 0
      %264 = vmatpush2.bf16.msra.mxu0 0
      %265 = vmatprep.mubr.bf16.mxu0 0
      %266 = vmatmul.mubr.bf16.gmra.mxu0 %v231
      %v267 = vpop.f32.mrf.mxu0
      %v268 = vadd.f32 0.0, %v267
      %v269 = vpop.f32.mrf.mxu0
      %v270 = vpop.f32.mrf.mxu0
      %v271 = vpop.f32.mrf.mxu0
      %272 = vdwg.mxu0
      %v274 = vunpack.c.l.b16 %v160
      %v275 = vpack.c.b16 %v274, %v274
      %276 = vrot.lane.b32.xlu0 %v275, 112
      %v277 = vpop.permute.xlu0 %276
      %278 = vrot.lane.b32.xlu0 %v167, 112
      %v279 = vpop.permute.xlu0 %278
      %v281 = vsel %vm168, %v277, 0
      %v284 = vsel %vm168, %v279, 0
      %286 = vmatprep.subr.bf16.mxu0 0
      %287 = vmatpush1.bf16.xpose.msra.mxu0 0
      %288 = vmatprep.subr.bf16.mxu0 0
      %289 = vmatpush1.bf16.xpose.msra.mxu0 0
      %290 = vmatprep.subr.bf16.mxu0 0
      %291 = vmatpush1.bf16.xpose.msra.mxu0 0
      %292 = vmatprep.subr.bf16.mxu0 0
      %293 = vmatpush1.bf16.xpose.msra.mxu0 0
      %294 = vmatprep.subr.bf16.mxu0 0
      %295 = vmatpush1.bf16.xpose.msra.mxu0 0
      %296 = vmatprep.subr.bf16.mxu0 0
      %297 = vmatpush1.bf16.xpose.msra.mxu0 0
      %298 = vmatprep.subr.bf16.mxu0 0
      %299 = vmatpush1.bf16.xpose.msra.mxu0 0
      %300 = vmatprep.subr.bf16.mxu0 0
      %301 = vmatpush1.bf16.xpose.msra.mxu0 %v284
      %302 = vmatprep.subr.bf16.mxu0 0
      %303 = vmatpush2.bf16.xpose.msra.mxu0 0
      %304 = vmatprep.subr.bf16.mxu0 0
      %305 = vmatpush2.bf16.xpose.msra.mxu0 0
      %306 = vmatprep.subr.bf16.mxu0 0
      %307 = vmatpush2.bf16.xpose.msra.mxu0 0
      %308 = vmatprep.subr.bf16.mxu0 0
      %309 = vmatpush2.bf16.xpose.msra.mxu0 0
      %310 = vmatprep.subr.bf16.mxu0 0
      %311 = vmatpush2.bf16.xpose.msra.mxu0 0
      %312 = vmatprep.subr.bf16.mxu0 0
      %313 = vmatpush2.bf16.xpose.msra.mxu0 0
      %314 = vmatprep.subr.bf16.mxu0 0
      %315 = vmatpush2.bf16.xpose.msra.mxu0 0
      %316 = vmatprep.subr.bf16.mxu0 0
      %317 = vmatpush2.bf16.xpose.msra.mxu0 0
      %318 = vmatprep.mubr.bf16.mxu0 0
      %319 = vmatmul.mubr.bf16.gmra.mxu0 %v281
      %v320 = vpop.f32.mrf.mxu0
      %v321 = vadd.f32 0.0, %v320
      %v322 = vpop.f32.mrf.mxu0
      %v323 = vpop.f32.mrf.mxu0
      %v324 = vpop.f32.mrf.mxu0
      %325 = vdwg.mxu0
      %v326 = vsel %vm168, %v321, -inf
      %327 = vmax.xlane.f32.xlu0 %v326
      %v328 = vpop.xlane.xlu0 %327
      %v329 = vsub.f32 %v321, %v328
      %v330 = vmul.f32 %v329, 1.442695
      %v331 = vpow.pop %v330
      %v332 = vsel %vm168, %v331, 0.0
      %333 = vadd.xlane.f32.xlu0 %v332
      %v334 = vpop.xlane.xlu0 %333
      %v335 = vrcp.pop %v334
      %v336 = vmul.f32 %v331, %v335
      %v337 = vpack.c.bf16 %v336, %v336
      %338 = vrot.lane.b32.xlu0 %v167, 48
      %v339 = vpop.permute.xlu0 %338
      %v342 = vsel %vm168, %v337, 0
      %344 = vmatprep.subr.bf16.mxu0 0
      %345 = vmatpush1.bf16.msra.mxu0 0
      %346 = vmatprep.subr.bf16.mxu0 0
      %347 = vmatpush1.bf16.msra.mxu0 0
      %348 = vmatprep.subr.bf16.mxu0 0
      %349 = vmatpush1.bf16.msra.mxu0 0
      %350 = vmatprep.subr.bf16.mxu0 0
      %351 = vmatpush1.bf16.msra.mxu0 0
      %352 = vmatprep.subr.bf16.mxu0 0
      %353 = vmatpush1.bf16.msra.mxu0 0
      %354 = vmatprep.subr.bf16.mxu0 0
      %355 = vmatpush1.bf16.msra.mxu0 0
      %356 = vmatprep.subr.bf16.mxu0 0
      %357 = vmatpush1.bf16.msra.mxu0 0
      %358 = vmatprep.subr.bf16.mxu0 0
      %359 = vmatpush1.bf16.msra.mxu0 %v339
      %360 = vmatprep.subr.bf16.mxu0 0
      %361 = vmatpush2.bf16.msra.mxu0 0
      %362 = vmatprep.subr.bf16.mxu0 0
      %363 = vmatpush2.bf16.msra.mxu0 0
      %364 = vmatprep.subr.bf16.mxu0 0
      %365 = vmatpush2.bf16.msra.mxu0 0
      %366 = vmatprep.subr.bf16.mxu0 0
      %367 = vmatpush2.bf16.msra.mxu0 0
      %368 = vmatprep.subr.bf16.mxu0 0
      %369 = vmatpush2.bf16.msra.mxu0 0
      %370 = vmatprep.subr.bf16.mxu0 0
      %371 = vmatpush2.bf16.msra.mxu0 0
      %372 = vmatprep.subr.bf16.mxu0 0
      %373 = vmatpush2.bf16.msra.mxu0 0
      %374 = vmatprep.subr.bf16.mxu0 0
      %375 = vmatpush2.bf16.msra.mxu0 0
      %376 = vmatprep.mubr.bf16.mxu0 0
      %377 = vmatmul.mubr.bf16.gmra.mxu0 %v342
      %v378 = vpop.f32.mrf.mxu0
      %v379 = vadd.f32 0.0, %v378
      %v380 = vpop.f32.mrf.mxu0
      %v381 = vpop.f32.mrf.mxu0
      %v382 = vpop.f32.mrf.mxu0
      %383 = vdwg.mxu0
      %384 = vrot.lane.b32.xlu0 %v275, 96
      %v385 = vpop.permute.xlu0 %384
      %386 = vrot.lane.b32.xlu0 %v167, 96
      %v387 = vpop.permute.xlu0 %386
      %v389 = vsel %vm168, %v385, 0
      %v392 = vsel %vm168, %v387, 0
      %394 = vmatprep.subr.bf16.mxu0 0
      %395 = vmatpush1.bf16.xpose.msra.mxu0 0
      %396 = vmatprep.subr.bf16.mxu0 0
      %397 = vmatpush1.bf16.xpose.msra.mxu0 0
      %398 = vmatprep.subr.bf16.mxu0 0
      %399 = vmatpush1.bf16.xpose.msra.mxu0 0
      %400 = vmatprep.subr.bf16.mxu0 0
      %401 = vmatpush1.bf16.xpose.msra.mxu0 0
      %402 = vmatprep.subr.bf16.mxu0 0
      %403 = vmatpush1.bf16.xpose.msra.mxu0 0
      %404 = vmatprep.subr.bf16.mxu0 0
      %405 = vmatpush1.bf16.xpose.msra.mxu0 0
      %406 = vmatprep.subr.bf16.mxu0 0
      %407 = vmatpush1.bf16.xpose.msra.mxu0 0
      %408 = vmatprep.subr.bf16.mxu0 0
      %409 = vmatpush1.bf16.xpose.msra.mxu0 %v392
      %410 = vmatprep.subr.bf16.mxu0 0
      %411 = vmatpush2.bf16.xpose.msra.mxu0 0
      %412 = vmatprep.subr.bf16.mxu0 0
      %413 = vmatpush2.bf16.xpose.msra.mxu0 0
      %414 = vmatprep.subr.bf16.mxu0 0
      %415 = vmatpush2.bf16.xpose.msra.mxu0 0
      %416 = vmatprep.subr.bf16.mxu0 0
      %417 = vmatpush2.bf16.xpose.msra.mxu0 0
      %418 = vmatprep.subr.bf16.mxu0 0
      %419 = vmatpush2.bf16.xpose.msra.mxu0 0
      %420 = vmatprep.subr.bf16.mxu0 0
      %421 = vmatpush2.bf16.xpose.msra.mxu0 0
      %422 = vmatprep.subr.bf16.mxu0 0
      %423 = vmatpush2.bf16.xpose.msra.mxu0 0
      %424 = vmatprep.subr.bf16.mxu0 0
      %425 = vmatpush2.bf16.xpose.msra.mxu0 0
      %426 = vmatprep.mubr.bf16.mxu0 0
      %427 = vmatmul.mubr.bf16.gmra.mxu0 %v389
      %v428 = vpop.f32.mrf.mxu0
      %v429 = vadd.f32 0.0, %v428
      %v430 = vpop.f32.mrf.mxu0
      %v431 = vpop.f32.mrf.mxu0
      %v432 = vpop.f32.mrf.mxu0
      %433 = vdwg.mxu0
      %v434 = vsel %vm168, %v429, -inf
      %435 = vmax.xlane.f32.xlu0 %v434
      %v436 = vpop.xlane.xlu0 %435
      %v437 = vsub.f32 %v429, %v436
      %v438 = vmul.f32 %v437, 1.442695
      %v439 = vpow.pop %v438
      %v440 = vsel %vm168, %v439, 0.0
      %441 = vadd.xlane.f32.xlu0 %v440
      %v442 = vpop.xlane.xlu0 %441
      %v443 = vrcp.pop %v442
      %v444 = vmul.f32 %v439, %v443
      %v445 = vpack.c.bf16 %v444, %v444
      %446 = vrot.lane.b32.xlu0 %v167, 32
      %v447 = vpop.permute.xlu0 %446
      %v450 = vsel %vm168, %v445, 0
      %452 = vmatprep.subr.bf16.mxu0 0
      %453 = vmatpush1.bf16.msra.mxu0 0
      %454 = vmatprep.subr.bf16.mxu0 0
      %455 = vmatpush1.bf16.msra.mxu0 0
      %456 = vmatprep.subr.bf16.mxu0 0
      %457 = vmatpush1.bf16.msra.mxu0 0
      %458 = vmatprep.subr.bf16.mxu0 0
      %459 = vmatpush1.bf16.msra.mxu0 0
      %460 = vmatprep.subr.bf16.mxu0 0
      %461 = vmatpush1.bf16.msra.mxu0 0
      %462 = vmatprep.subr.bf16.mxu0 0
      %463 = vmatpush1.bf16.msra.mxu0 0
      %464 = vmatprep.subr.bf16.mxu0 0
      %465 = vmatpush1.bf16.msra.mxu0 0
      %466 = vmatprep.subr.bf16.mxu0 0
      %467 = vmatpush1.bf16.msra.mxu0 %v447
      %468 = vmatprep.subr.bf16.mxu0 0
      %469 = vmatpush2.bf16.msra.mxu0 0
      %470 = vmatprep.subr.bf16.mxu0 0
      %471 = vmatpush2.bf16.msra.mxu0 0
      %472 = vmatprep.subr.bf16.mxu0 0
      %473 = vmatpush2.bf16.msra.mxu0 0
      %474 = vmatprep.subr.bf16.mxu0 0
      %475 = vmatpush2.bf16.msra.mxu0 0
      %476 = vmatprep.subr.bf16.mxu0 0
      %477 = vmatpush2.bf16.msra.mxu0 0
      %478 = vmatprep.subr.bf16.mxu0 0
      %479 = vmatpush2.bf16.msra.mxu0 0
      %480 = vmatprep.subr.bf16.mxu0 0
      %481 = vmatpush2.bf16.msra.mxu0 0
      %482 = vmatprep.subr.bf16.mxu0 0
      %483 = vmatpush2.bf16.msra.mxu0 0
      %484 = vmatprep.mubr.bf16.mxu0 0
      %485 = vmatmul.mubr.bf16.gmra.mxu0 %v450
      %v486 = vpop.f32.mrf.mxu0
      %v487 = vadd.f32 0.0, %v486
      %v488 = vpop.f32.mrf.mxu0
      %v489 = vpop.f32.mrf.mxu0
      %v490 = vpop.f32.mrf.mxu0
      %491 = vdwg.mxu0
      %492 = vrot.lane.b32.xlu0 %v275, 80
      %v493 = vpop.permute.xlu0 %492
      %494 = vrot.lane.b32.xlu0 %v167, 80
      %v495 = vpop.permute.xlu0 %494
      %v497 = vsel %vm168, %v493, 0
      %v500 = vsel %vm168, %v495, 0
      %502 = vmatprep.subr.bf16.mxu0 0
      %503 = vmatpush1.bf16.xpose.msra.mxu0 0
      %504 = vmatprep.subr.bf16.mxu0 0
      %505 = vmatpush1.bf16.xpose.msra.mxu0 0
      %506 = vmatprep.subr.bf16.mxu0 0
      %507 = vmatpush1.bf16.xpose.msra.mxu0 0
      %508 = vmatprep.subr.bf16.mxu0 0
      %509 = vmatpush1.bf16.xpose.msra.mxu0 0
      %510 = vmatprep.subr.bf16.mxu0 0
      %511 = vmatpush1.bf16.xpose.msra.mxu0 0
      %512 = vmatprep.subr.bf16.mxu0 0
      %513 = vmatpush1.bf16.xpose.msra.mxu0 0
      %514 = vmatprep.subr.bf16.mxu0 0
      %515 = vmatpush1.bf16.xpose.msra.mxu0 0
      %516 = vmatprep.subr.bf16.mxu0 0
      %517 = vmatpush1.bf16.xpose.msra.mxu0 %v500
      %518 = vmatprep.subr.bf16.mxu0 0
      %519 = vmatpush2.bf16.xpose.msra.mxu0 0
      %520 = vmatprep.subr.bf16.mxu0 0
      %521 = vmatpush2.bf16.xpose.msra.mxu0 0
      %522 = vmatprep.subr.bf16.mxu0 0
      %523 = vmatpush2.bf16.xpose.msra.mxu0 0
      %524 = vmatprep.subr.bf16.mxu0 0
      %525 = vmatpush2.bf16.xpose.msra.mxu0 0
      %526 = vmatprep.subr.bf16.mxu0 0
      %527 = vmatpush2.bf16.xpose.msra.mxu0 0
      %528 = vmatprep.subr.bf16.mxu0 0
      %529 = vmatpush2.bf16.xpose.msra.mxu0 0
      %530 = vmatprep.subr.bf16.mxu0 0
      %531 = vmatpush2.bf16.xpose.msra.mxu0 0
      %532 = vmatprep.subr.bf16.mxu0 0
      %533 = vmatpush2.bf16.xpose.msra.mxu0 0
      %534 = vmatprep.mubr.bf16.mxu0 0
      %535 = vmatmul.mubr.bf16.gmra.mxu0 %v497
      %v536 = vpop.f32.mrf.mxu0
      %v537 = vadd.f32 0.0, %v536
      %v538 = vpop.f32.mrf.mxu0
      %v539 = vpop.f32.mrf.mxu0
      %v540 = vpop.f32.mrf.mxu0
      %541 = vdwg.mxu0
      %v542 = vsel %vm168, %v537, -inf
      %543 = vmax.xlane.f32.xlu0 %v542
      %v544 = vpop.xlane.xlu0 %543
      %v545 = vsub.f32 %v537, %v544
      %v546 = vmul.f32 %v545, 1.442695
      %v547 = vpow.pop %v546
      %v548 = vsel %vm168, %v547, 0.0
      %549 = vadd.xlane.f32.xlu0 %v548
      %v550 = vpop.xlane.xlu0 %549
      %v551 = vrcp.pop %v550
      %v552 = vmul.f32 %v547, %v551
      %v553 = vpack.c.bf16 %v552, %v552
      %554 = vrot.lane.b32.xlu0 %v167, 16
      %v555 = vpop.permute.xlu0 %554
      %v558 = vsel %vm168, %v553, 0
      %560 = vmatprep.subr.bf16.mxu0 0
      %561 = vmatpush1.bf16.msra.mxu0 0
      %562 = vmatprep.subr.bf16.mxu0 0
      %563 = vmatpush1.bf16.msra.mxu0 0
      %564 = vmatprep.subr.bf16.mxu0 0
      %565 = vmatpush1.bf16.msra.mxu0 0
      %566 = vmatprep.subr.bf16.mxu0 0
      %567 = vmatpush1.bf16.msra.mxu0 0
      %568 = vmatprep.subr.bf16.mxu0 0
      %569 = vmatpush1.bf16.msra.mxu0 0
      %570 = vmatprep.subr.bf16.mxu0 0
      %571 = vmatpush1.bf16.msra.mxu0 0
      %572 = vmatprep.subr.bf16.mxu0 0
      %573 = vmatpush1.bf16.msra.mxu0 0
      %574 = vmatprep.subr.bf16.mxu0 0
      %575 = vmatpush1.bf16.msra.mxu0 %v555
      %576 = vmatprep.subr.bf16.mxu0 0
      %577 = vmatpush2.bf16.msra.mxu0 0
      %578 = vmatprep.subr.bf16.mxu0 0
      %579 = vmatpush2.bf16.msra.mxu0 0
      %580 = vmatprep.subr.bf16.mxu0 0
      %581 = vmatpush2.bf16.msra.mxu0 0
      %582 = vmatprep.subr.bf16.mxu0 0
      %583 = vmatpush2.bf16.msra.mxu0 0
      %584 = vmatprep.subr.bf16.mxu0 0
      %585 = vmatpush2.bf16.msra.mxu0 0
      %586 = vmatprep.subr.bf16.mxu0 0
      %587 = vmatpush2.bf16.msra.mxu0 0
      %588 = vmatprep.subr.bf16.mxu0 0
      %589 = vmatpush2.bf16.msra.mxu0 0
      %590 = vmatprep.subr.bf16.mxu0 0
      %591 = vmatpush2.bf16.msra.mxu0 0
      %592 = vmatprep.mubr.bf16.mxu0 0
      %593 = vmatmul.mubr.bf16.gmra.mxu0 %v558
      %v594 = vpop.f32.mrf.mxu0
      %v595 = vadd.f32 0.0, %v594
      %v596 = vpop.f32.mrf.mxu0
      %v597 = vpop.f32.mrf.mxu0
      %v598 = vpop.f32.mrf.mxu0
      %599 = vdwg.mxu0
      %601 = vrot.lane.b32.xlu0 %v379, 16
      %v602 = vpop.permute.xlu0 %601
      %605 = vrot.lane.b32.xlu0 %v487, 32
      %v606 = vpop.permute.xlu0 %605
      %609 = vrot.lane.b32.xlu0 %v595, 48
      %v610 = vpop.permute.xlu0 %609
      %v612 = vsel %vm168, %v268, %v602
      %vm613 = vcmask 261120
      %v614 = vsel %vm613, %v612, %v606
      %vm615 = vcmask 392192
      %v616 = vsel %vm615, %v614, %v610
      %v617 = vpack.c.bf16 %v616, %v616
      %vm618 = vcmask 519168
      %619 = vst.msk [vmem:[%s158] sm:$0xf] %vm618, %v617
      %p620 = scmp.lt.s32.totalorder %s13, 1
      %s621 = scalar_select %p620, %s13, 1
      %s622 = smul.addr %s621, 4
      %s623 = scalar_lea.vmem %s2, %s622
      // Predicated region
      $region29: #{block_forward.14} parent=27 // pred_check
        %p624 = pneg %p83
      $region30: #{block_forward.14} parent=27 // pred_check_branch
        %626 = sbr.rel (%p624) target = $region32
      $region31: #{block_forward.14} parent=27 // pred_region
        _
      $region32: #{block_forward.14} parent=27 // pred_fallthru
        _
    $region28: #{block_forward.14} parent=5 // pred_fallthru
      _
    %p627 = scmp.le.s32.totalorder 2, %s8
    // Predicated region
    $region33: #{block_forward.14} parent=5 // pred_check
      %p628 = pneg %p627
    $region34: #{block_forward.14} parent=5 // pred_check_branch
      %630 = sbr.rel (%p628) target = $region36
    $region35: #{block_forward.14} parent=5 // pred_region
      %s631 = ssub.s32 %s8, 2
      // Predicated region
      $region37: #{block_forward.14} parent=35 // pred_check
        %p632 = pneg %p89
      $region38: #{block_forward.14} parent=35 // pred_check_branch
        %634 = sbr.rel (%p632) target = $region40
      $region39: #{block_forward.14} parent=35 // pred_region
        %p635 = scmp.lt.s32.totalorder %s14, 1
        %s636 = scalar_select %p635, %s14, 1
        %s637 = smul.addr %s636, 4
        %s638 = scalar_lea.vmem %s2, %s637
      $region40: #{block_forward.14} parent=35 // pred_fallthru
        _
    $region36: #{block_forward.14} parent=5 // pred_fallthru
      _
  $region6: #{block_forward.14} parent=0 // loop_footer
    %s12 = sadd.s32 1, %s8
  $region7: #{block_forward.14} parent=0 // loop_footer_branch
    %7 = sbr.rel target = $region3
  $region8: #{block_forward.14} parent=0 // loop_exit
    _

// kernel: block_forward.16
$region0: #{block_forward.16}
  #allocation0 [shape = 'u32[]', space=smem, size = 0x4, offset = 0x4, fixed_abs, tag = 'smem constant byte address 0x4 - core index']
  #allocation1 [shape = 'u32[144,128]{1,0:T(1,128)}', space=vmem, size = 0x12000, scoped, tag = 'internal scratch']
  %s0 = inlined_call_operand.vmem [shape: f32[16,64], index: 0, kind: input, shape index: {}]
  %s1 = inlined_call_operand.vmem [shape: f32[1,64], index: 1, kind: input, shape index: {}]
  %s2 = inlined_call_operand.vmem [shape: f32[1,64], index: 2, kind: input, shape index: {}]
  %s3 = inlined_call_operand.vmem [shape: bf16[64,512], index: 3, kind: input, shape index: {}]
  %s4 = inlined_call_operand.vmem [shape: f32[1,512], index: 4, kind: input, shape index: {}]
  %s5 = inlined_call_operand.vmem [shape: bf16[16,256], index: 5, kind: output, shape index: {}]
  %s6 = sld [smem:[#allocation0]]
  $region30: #{block_forward.16} parent=0
    _
  %s8 = ssub.s32 1, %s6
  %s9 = scalar_select 0, %s8, %s6
  // Predicated region
  $region2: #{block_forward.16} parent=0 // pred_check
    _
  $region3: #{block_forward.16} parent=0 // pred_check_branch
    %11 = sbr.rel (0) target = $region5
  $region4: #{block_forward.16} parent=0 // pred_region
    _
  $region5: #{block_forward.16} parent=0 // pred_fallthru
    _
  // Predicated region
  $region6: #{block_forward.16} parent=0 // pred_check
    _
  $region7: #{block_forward.16} parent=0 // pred_check_branch
    %13 = sbr.rel (0) target = $region9
  $region8: #{block_forward.16} parent=0 // pred_region
    _
  $region9: #{block_forward.16} parent=0 // pred_fallthru
    _
  // Predicated region
  $region10: #{block_forward.16} parent=0 // pred_check
    _
  $region11: #{block_forward.16} parent=0 // pred_check_branch
    %15 = sbr.rel (0) target = $region13
  $region12: #{block_forward.16} parent=0 // pred_region
    _
  $region13: #{block_forward.16} parent=0 // pred_fallthru
    _
  // Predicated region
  $region14: #{block_forward.16} parent=0 // pred_check
    _
  $region15: #{block_forward.16} parent=0 // pred_check_branch
    %17 = sbr.rel (0) target = $region17
  $region16: #{block_forward.16} parent=0 // pred_region
    _
  $region17: #{block_forward.16} parent=0 // pred_fallthru
    _
  // Predicated region
  $region18: #{block_forward.16} parent=0 // pred_check
    _
  $region19: #{block_forward.16} parent=0 // pred_check_branch
    %19 = sbr.rel (0) target = $region21
  $region20: #{block_forward.16} parent=0 // pred_region
    _
  $region21: #{block_forward.16} parent=0 // pred_fallthru
    _
  %v21 = vld [vmem:[%s0] sm:$0xff]
  %v22 = vld [vmem:[%s0 + $0x8] sm:$0xff]
  %vm23 = vcmask 523264
  %v24 = vsel %vm23, %v21, 0.0
  %25 = vadd.xlane.f32.xlu0 %v24
  %v26 = vpop.xlane.xlu0 %25
  %v27 = vsel %vm23, %v22, 0.0
  %28 = vadd.xlane.f32.xlu0 %v27
  %v29 = vpop.xlane.xlu0 %28
  %v30 = vrcp.pop 64.0
  %v31 = vmul.f32 %v26, %v30
  %v32 = vmul.f32 %v29, %v30
  %v33 = vsub.f32 %v21, %v31
  %v34 = vsub.f32 %v22, %v32
  %v35 = vmul.f32 %v33, %v33
  %v36 = vmul.f32 %v34, %v34
  %v37 = vsel %vm23, %v35, 0.0
  %38 = vadd.xlane.f32.xlu0 %v37
  %v39 = vpop.xlane.xlu0 %38
  %v40 = vsel %vm23, %v36, 0.0
  %41 = vadd.xlane.f32.xlu0 %v40
  %v42 = vpop.xlane.xlu0 %41
  %v43 = vmul.f32 %v39, %v30
  %v44 = vmul.f32 %v42, %v30
  %v45 = vadd.f32 %v43, 1e-05
  %v46 = vadd.f32 %v44, 1e-05
  %v47 = vrsqrt.pop %v45
  %v48 = vrsqrt.pop %v46
  %v49 = vmul.f32 %v33, %v47
  %v50 = vmul.f32 %v34, %v48
  %v51 = vld [vmem:[%s1] sm:$0x1]
  %v53 = vlaneseq
  %v54 = vshrl.u32 %v53, 7
  %v55 = vsub.s32 0, %v54
  %v56 = vrot.slane %v51, %v55
  %v58 = vmul.f32 %v49, %v56
  %v59 = vmul.f32 %v50, %v56
  %v60 = vld [vmem:[%s2] sm:$0x1]
  %v62 = vlaneseq
  %v63 = vshrl.u32 %v62, 7
  %v64 = vsub.s32 0, %v63
  %v65 = vrot.slane %v60, %v64
  %v67 = vadd.f32 %v58, %v65
  %v68 = vadd.f32 %v59, %v65
  %v69 = vpack.c.bf16 %v68, %v67
  %v70 = vld [vmem:[%s3] sm:$0xff]
  %v71 = vld [vmem:[%s3 + $0x8] sm:$0xff]
  %v72 = vld [vmem:[%s3 + $0x10] sm:$0xff]
  %v73 = vld [vmem:[%s3 + $0x18] sm:$0xff]
  %v74 = vld [vmem:[%s3 + $0x20] sm:$0xff]
  %v75 = vld [vmem:[%s3 + $0x28] sm:$0xff]
  %v76 = vld [vmem:[%s3 + $0x30] sm:$0xff]
  %v77 = vld [vmem:[%s3 + $0x38] sm:$0xff]
  %v78 = vld [vmem:[%s3 + $0x40] sm:$0xff]
  %v79 = vld [vmem:[%s3 + $0x48] sm:$0xff]
  %v80 = vld [vmem:[%s3 + $0x50] sm:$0xff]
  %v81 = vld [vmem:[%s3 + $0x58] sm:$0xff]
  %v82 = vld [vmem:[%s3 + $0x60] sm:$0xff]
  %v83 = vld [vmem:[%s3 + $0x68] sm:$0xff]
  %v84 = vld [vmem:[%s3 + $0x70] sm:$0xff]
  %v85 = vld [vmem:[%s3 + $0x78] sm:$0xff]
  %v86 = vld [vmem:[%s4] sm:$0xf]
  %v88 = vlaneseq
  %v89 = vshrl.u32 %v88, 7
  %v90 = vsub.s32 0, %v89
  %v91 = vrot.slane %v86, %v90
  %v92 = vlaneseq
  %v93 = vshrl.u32 %v92, 7
  %v94 = vsub.s32 1, %v93
  %v95 = vrot.slane %v86, %v94
  %v96 = vlaneseq
  %v97 = vshrl.u32 %v96, 7
  %v98 = vsub.s32 2, %v97
  %v99 = vrot.slane %v86, %v98
  %v100 = vlaneseq
  %v101 = vshrl.u32 %v100, 7
  %v102 = vsub.s32 3, %v101
  %v103 = vrot.slane %v86, %v102
  %v124 = vunpack.c.l.b16 %v70
  %v125 = vunpack.c.h.b16 %v70
  %v126 = vunpack.c.l.b16 %v71
  %v127 = vunpack.c.h.b16 %v71
  %v128 = vunpack.c.l.b16 %v72
  %v129 = vunpack.c.h.b16 %v72
  %v130 = vunpack.c.l.b16 %v73
  %v131 = vunpack.c.h.b16 %v73
  %v132 = vunpack.c.l.b16 %v74
  %v133 = vunpack.c.h.b16 %v74
  %v134 = vunpack.c.l.b16 %v75
  %v135 = vunpack.c.h.b16 %v75
  %v136 = vunpack.c.l.b16 %v76
  %v137 = vunpack.c.h.b16 %v76
  %v138 = vunpack.c.l.b16 %v77
  %v139 = vunpack.c.h.b16 %v77
  %v140 = vunpack.c.l.b16 %v78
  %v141 = vunpack.c.h.b16 %v78
  %v142 = vunpack.c.l.b16 %v79
  %v143 = vunpack.c.h.b16 %v79
  %v144 = vunpack.c.l.b16 %v80
  %v145 = vunpack.c.h.b16 %v80
  %v146 = vunpack.c.l.b16 %v81
  %v147 = vunpack.c.h.b16 %v81
  %v148 = vunpack.c.l.b16 %v82
  %v149 = vunpack.c.h.b16 %v82
  %v150 = vunpack.c.l.b16 %v83
  %v151 = vunpack.c.h.b16 %v83
  %v152 = vunpack.c.l.b16 %v84
  %v153 = vunpack.c.h.b16 %v84
  %v154 = vunpack.c.l.b16 %v85
  %v155 = vunpack.c.h.b16 %v85
  %v156 = vpack.c.b16 %v128, %v124
  %v157 = vpack.c.b16 %v129, %v125
  %v158 = vpack.c.b16 %v130, %v126
  %v159 = vpack.c.b16 %v131, %v127
  %v160 = vpack.c.b16 %v136, %v132
  %v161 = vpack.c.b16 %v137, %v133
  %v162 = vpack.c.b16 %v138, %v134
  %v163 = vpack.c.b16 %v139, %v135
  %v164 = vpack.c.b16 %v144, %v140
  %v165 = vpack.c.b16 %v145, %v141
  %v166 = vpack.c.b16 %v146, %v142
  %v167 = vpack.c.b16 %v147, %v143
  %v168 = vpack.c.b16 %v152, %v148
  %v169 = vpack.c.b16 %v153, %v149
  %v170 = vpack.c.b16 %v154, %v150
  %v171 = vpack.c.b16 %v155, %v151
  %v189 = vsel %vm23, %v69, 0
  %191 = vmatprep.subr.bf16.mxu0 0
  %192 = vmatpush1.bf16.msra.mxu0 0
  %193 = vmatprep.subr.bf16.mxu0 0
  %194 = vmatpush1.bf16.msra.mxu0 0
  %195 = vmatprep.subr.bf16.mxu0 0
  %196 = vmatpush1.bf16.msra.mxu0 0
  %197 = vmatprep.subr.bf16.mxu0 0
  %198 = vmatpush1.bf16.msra.mxu0 0
  %199 = vmatprep.subr.bf16.mxu0 %v169
  %200 = vmatpush1.bf16.msra.mxu0 %v168
  %201 = vmatprep.subr.bf16.mxu0 %v165
  %202 = vmatpush1.bf16.msra.mxu0 %v164
  %203 = vmatprep.subr.bf16.mxu0 %v161
  %204 = vmatpush1.bf16.msra.mxu0 %v160
  %205 = vmatprep.subr.bf16.mxu0 %v157
  %206 = vmatpush1.bf16.msra.mxu0 %v156
  %207 = vmatprep.subr.bf16.mxu0 0
  %208 = vmatpush2.bf16.msra.mxu0 0
  %209 = vmatprep.subr.bf16.mxu0 0
  %210 = vmatpush2.bf16.msra.mxu0 0
  %211 = vmatprep.subr.bf16.mxu0 0
  %212 = vmatpush2.bf16.msra.mxu0 0
  %213 = vmatprep.subr.bf16.mxu0 0
  %214 = vmatpush2.bf16.msra.mxu0 0
  %215 = vmatprep.subr.bf16.mxu0 0
  %216 = vmatpush2.bf16.msra.mxu0 0
  %217 = vmatprep.subr.bf16.mxu0 0
  %218 = vmatpush2.bf16.msra.mxu0 0
  %219 = vmatprep.subr.bf16.mxu0 0
  %220 = vmatpush2.bf16.msra.mxu0 0
  %221 = vmatprep.subr.bf16.mxu0 0
  %222 = vmatpush2.bf16.msra.mxu0 0
  %223 = vmatprep.mubr.bf16.mxu0 0
  %224 = vmatmul.mubr.bf16.gmra.mxu0 %v189
  %v225 = vpop.f32.mrf.mxu0
  %v226 = vadd.f32 %v91, %v225
  %v227 = vpop.f32.mrf.mxu0
  %v228 = vadd.f32 %v95, %v227
  %v229 = vpop.f32.mrf.mxu0
  %v230 = vadd.f32 %v91, %v229
  %v231 = vpop.f32.mrf.mxu0
  %v232 = vadd.f32 %v95, %v231
  %233 = vdwg.mxu0
  %234 = vmatprep.subr.bf16.mxu0 0
  %235 = vmatpush1.bf16.msra.mxu0 0
  %236 = vmatprep.subr.bf16.mxu0 0
  %237 = vmatpush1.bf16.msra.mxu0 0
  %238 = vmatprep.subr.bf16.mxu0 0
  %239 = vmatpush1.bf16.msra.mxu0 0
  %240 = vmatprep.subr.bf16.mxu0 0
  %241 = vmatpush1.bf16.msra.mxu0 0
  %242 = vmatprep.subr.bf16.mxu0 %v171
  %243 = vmatpush1.bf16.msra.mxu0 %v170
  %244 = vmatprep.subr.bf16.mxu0 %v167
  %245 = vmatpush1.bf16.msra.mxu0 %v166
  %246 = vmatprep.subr.bf16.mxu0 %v163
  %247 = vmatpush1.bf16.msra.mxu0 %v162
  %248 = vmatprep.subr.bf16.mxu0 %v159
  %249 = vmatpush1.bf16.msra.mxu0 %v158
  %250 = vmatprep.subr.bf16.mxu0 0
  %251 = vmatpush2.bf16.msra.mxu0 0
  %252 = vmatprep.subr.bf16.mxu0 0
  %253 = vmatpush2.bf16.msra.mxu0 0
  %254 = vmatprep.subr.bf16.mxu0 0
  %255 = vmatpush2.bf16.msra.mxu0 0
  %256 = vmatprep.subr.bf16.mxu0 0
  %257 = vmatpush2.bf16.msra.mxu0 0
  %258 = vmatprep.subr.bf16.mxu0 0
  %259 = vmatpush2.bf16.msra.mxu0 0
  %260 = vmatprep.subr.bf16.mxu0 0
  %261 = vmatpush2.bf16.msra.mxu0 0
  %262 = vmatprep.subr.bf16.mxu0 0
  %263 = vmatpush2.bf16.msra.mxu0 0
  %264 = vmatprep.subr.bf16.mxu0 0
  %265 = vmatpush2.bf16.msra.mxu0 0
  %266 = vmatprep.mubr.bf16.mxu0 0
  %267 = vmatmul.mubr.bf16.gmra.mxu0 %v189
  %v268 = vpop.f32.mrf.mxu0
  %v269 = vadd.f32 %v99, %v268
  %v270 = vpop.f32.mrf.mxu0
  %v271 = vadd.f32 %v103, %v270
  %v272 = vpop.f32.mrf.mxu0
  %v273 = vadd.f32 %v99, %v272
  %v274 = vpop.f32.mrf.mxu0
  %v275 = vadd.f32 %v103, %v274
  %276 = vdwg.mxu0
  %v277 = vmul.f32 %v269, 0.5
  %v278 = vmul.f32 %v271, 0.5
  %v279 = vmul.f32 %v273, 0.5
  %v280 = vmul.f32 %v275, 0.5
  %v281 = vmul.f32 %v269, 0.70710677
  %v282 = vmul.f32 %v271, 0.70710677
  %v283 = vmul.f32 %v273, 0.70710677
  %v284 = vmul.f32 %v275, 0.70710677
  %v285 = verf.f32.pop %v281
  %v286 = verf.f32.pop %v282
  %v287 = verf.f32.pop %v283
  %v288 = verf.f32.pop %v284
  %v289 = vadd.f32 %v285, 1.0
  %v290 = vadd.f32 %v286, 1.0
  %v291 = vadd.f32 %v287, 1.0
  %v292 = vadd.f32 %v288, 1.0
  %v293 = vmul.f32 %v277, %v289
  %v294 = vmul.f32 %v278, %v290
  %v295 = vmul.f32 %v279, %v291
  %v296 = vmul.f32 %v280, %v292
  %v297 = vmul.f32 %v226, %v293
  %v298 = vmul.f32 %v228, %v294
  %v299 = vmul.f32 %v230, %v295
  %v300 = vmul.f32 %v232, %v296
  %v301 = vpack.c.bf16 %v299, %v297
  %v302 = vpack.c.bf16 %v300, %v298
  %v305 = vunpack.c.l.b16 %v301
  %v306 = vunpack.c.l.b16 %v302
  %v307 = vunpack.c.h.b16 %v301
  %v308 = vunpack.c.h.b16 %v302
  %v309 = vpack.c.b16 %v306, %v305
  %v310 = vpack.c.b16 %v308, %v307
  %313 = vst [vmem:[%s5] sm:$0xff] %v309
  %314 = vst [vmem:[%s5 + $0x8] sm:$0xff] %v310
  // Predicated region
  $region22: #{block_forward.16} parent=0 // pred_check
    _
  $region23: #{block_forward.16} parent=0 // pred_check_branch
    %316 = sbr.rel (0) target = $region25
  $region24: #{block_forward.16} parent=0 // pred_region
    _
  $region25: #{block_forward.16} parent=0 // pred_fallthru
    _
  // Predicated region
  $region26: #{block_forward.16} parent=0 // pred_check
    _
  $region27: #{block_forward.16} parent=0 // pred_check_branch
    %318 = sbr.rel (0) target = $region29
  $region28: #{block_forward.16} parent=0 // pred_region
    _
  $region29: #{block_forward.16} parent=0 // pred_fallthru
    _

// kernel: block_forward.17
$region0: #{block_forward.17}
  #allocation0 [shape = 'u32[]', space=smem, size = 0x4, offset = 0x4, fixed_abs, tag = 'smem constant byte address 0x4 - core index']
  #allocation1 [shape = 'u32[144,128]{1,0:T(1,128)}', space=vmem, size = 0x12000, scoped, tag = 'internal scratch']
  %s0 = inlined_call_operand.vmem [shape: bf16[16,256], index: 0, kind: input, shape index: {}]
  %s1 = inlined_call_operand.vmem [shape: bf16[256,64], index: 1, kind: input, shape index: {}]
  %s2 = inlined_call_operand.vmem [shape: f32[1,64], index: 2, kind: input, shape index: {}]
  %s3 = inlined_call_operand.vmem [shape: f32[16,64], index: 3, kind: input, shape index: {}]
  %s4 = inlined_call_operand.hbm [shape: f32[16,64], index: 4, kind: output, shape index: {}]
  %s5 = sld [smem:[#allocation0]]
  $region26: #{block_forward.17} parent=0
    _
  %s7 = ssub.s32 1, %s5
  %s8 = scalar_select 0, %s7, %s5
  $region1: #{block_forward.17} parent=0
    #allocation2 [shape = 'u8[8192]{0}', space=vmem, size = 0x2000, scoped, tag = 'output window, operand 0, single buffered']
    #allocation3 [shape = 's32[1]{0}', space=sflag, size = 0x4, scoped, tag = 'scoped memory for block_forward.17']
    %9 = vsyncpa [#allocation3], 0
    // Predicated region
    $region2: #{block_forward.17} parent=1 // pred_check
      _
    $region3: #{block_forward.17} parent=1 // pred_check_branch
      %11 = sbr.rel (0) target = $region5
    $region4: #{block_forward.17} parent=1 // pred_region
      _
    $region5: #{block_forward.17} parent=1 // pred_fallthru
      _
    // Predicated region
    $region6: #{block_forward.17} parent=1 // pred_check
      _
    $region7: #{block_forward.17} parent=1 // pred_check_branch
      %13 = sbr.rel (0) target = $region9
    $region8: #{block_forward.17} parent=1 // pred_region
      _
    $region9: #{block_forward.17} parent=1 // pred_fallthru
      _
    // Predicated region
    $region10: #{block_forward.17} parent=1 // pred_check
      _
    $region11: #{block_forward.17} parent=1 // pred_check_branch
      %15 = sbr.rel (0) target = $region13
    $region12: #{block_forward.17} parent=1 // pred_region
      _
    $region13: #{block_forward.17} parent=1 // pred_fallthru
      _
    // Predicated region
    $region14: #{block_forward.17} parent=1 // pred_check
      _
    $region15: #{block_forward.17} parent=1 // pred_check_branch
      %17 = sbr.rel (0) target = $region17
    $region16: #{block_forward.17} parent=1 // pred_region
      _
    $region17: #{block_forward.17} parent=1 // pred_fallthru
      _
    %v19 = vld [vmem:[%s0] sm:$0xff]
    %v20 = vld [vmem:[%s0 + $0x8] sm:$0xff]
    %v21 = vld [vmem:[%s1] sm:$0xf]
    %v22 = vld [vmem:[%s1 + $0x4] sm:$0xf]
    %v23 = vld [vmem:[%s1 + $0x8] sm:$0xf]
    %v24 = vld [vmem:[%s1 + $0xc] sm:$0xf]
    %v25 = vld [vmem:[%s1 + $0x10] sm:$0xf]
    %v26 = vld [vmem:[%s1 + $0x14] sm:$0xf]
    %v27 = vld [vmem:[%s1 + $0x18] sm:$0xf]
    %v28 = vld [vmem:[%s1 + $0x1c] sm:$0xf]
    %v29 = vld [vmem:[%s1 + $0x20] sm:$0xf]
    %v30 = vld [vmem:[%s1 + $0x24] sm:$0xf]
    %v31 = vld [vmem:[%s1 + $0x28] sm:$0xf]
    %v32 = vld [vmem:[%s1 + $0x2c] sm:$0xf]
    %v33 = vld [vmem:[%s1 + $0x30] sm:$0xf]
    %v34 = vld [vmem:[%s1 + $0x34] sm:$0xf]
    %v35 = vld [vmem:[%s1 + $0x38] sm:$0xf]
    %v36 = vld [vmem:[%s1 + $0x3c] sm:$0xf]
    %v37 = vld [vmem:[%s1 + $0x40] sm:$0xf]
    %v38 = vld [vmem:[%s1 + $0x44] sm:$0xf]
    %v39 = vld [vmem:[%s1 + $0x48] sm:$0xf]
    %v40 = vld [vmem:[%s1 + $0x4c] sm:$0xf]
    %v41 = vld [vmem:[%s1 + $0x50] sm:$0xf]
    %v42 = vld [vmem:[%s1 + $0x54] sm:$0xf]
    %v43 = vld [vmem:[%s1 + $0x58] sm:$0xf]
    %v44 = vld [vmem:[%s1 + $0x5c] sm:$0xf]
    %v45 = vld [vmem:[%s1 + $0x60] sm:$0xf]
    %v46 = vld [vmem:[%s1 + $0x64] sm:$0xf]
    %v47 = vld [vmem:[%s1 + $0x68] sm:$0xf]
    %v48 = vld [vmem:[%s1 + $0x6c] sm:$0xf]
    %v49 = vld [vmem:[%s1 + $0x70] sm:$0xf]
    %v50 = vld [vmem:[%s1 + $0x74] sm:$0xf]
    %v51 = vld [vmem:[%s1 + $0x78] sm:$0xf]
    %v52 = vld [vmem:[%s1 + $0x7c] sm:$0xf]
    %v53 = vld [vmem:[%s2] sm:$0x1]
    %v55 = vlaneseq
    %v56 = vshrl.u32 %v55, 7
    %v57 = vsub.s32 0, %v56
    %v58 = vrot.slane %v53, %v57
    %v62 = vunpack.c.l.b16 %v19
    %v63 = vunpack.c.h.b16 %v19
    %v64 = vunpack.c.l.b16 %v20
    %v65 = vunpack.c.h.b16 %v20
    %v66 = vpack.c.b16 %v64, %v62
    %v67 = vpack.c.b16 %v65, %v63
    %v102 = vunpack.c.l.b16 %v21
    %v103 = vunpack.c.l.b16 %v22
    %v104 = vunpack.c.l.b16 %v23
    %v105 = vunpack.c.l.b16 %v24
    %v106 = vunpack.c.l.b16 %v25
    %v107 = vunpack.c.l.b16 %v26
    %v108 = vunpack.c.l.b16 %v27
    %v109 = vunpack.c.l.b16 %v28
    %v110 = vunpack.c.l.b16 %v29
    %v111 = vunpack.c.l.b16 %v30
    %v112 = vunpack.c.l.b16 %v31
    %v113 = vunpack.c.l.b16 %v32
    %v114 = vunpack.c.l.b16 %v33
    %v115 = vunpack.c.l.b16 %v34
    %v116 = vunpack.c.l.b16 %v35
    %v117 = vunpack.c.l.b16 %v36
    %v118 = vunpack.c.l.b16 %v37
    %v119 = vunpack.c.l.b16 %v38
    %v120 = vunpack.c.l.b16 %v39
    %v121 = vunpack.c.l.b16 %v40
    %v122 = vunpack.c.l.b16 %v41
    %v123 = vunpack.c.l.b16 %v42
    %v124 = vunpack.c.l.b16 %v43
    %v125 = vunpack.c.l.b16 %v44
    %v126 = vunpack.c.l.b16 %v45
    %v127 = vunpack.c.l.b16 %v46
    %v128 = vunpack.c.l.b16 %v47
    %v129 = vunpack.c.l.b16 %v48
    %v130 = vunpack.c.l.b16 %v49
    %v131 = vunpack.c.l.b16 %v50
    %v132 = vunpack.c.l.b16 %v51
    %v133 = vunpack.c.l.b16 %v52
    %v134 = vpack.c.b16 %v103, %v102
    %v135 = vpack.c.b16 %v105, %v104
    %v136 = vpack.c.b16 %v107, %v106
    %v137 = vpack.c.b16 %v109, %v108
    %v138 = vpack.c.b16 %v111, %v110
    %v139 = vpack.c.b16 %v113, %v112
    %v140 = vpack.c.b16 %v115, %v114
    %v141 = vpack.c.b16 %v117, %v116
    %v142 = vpack.c.b16 %v119, %v118
    %v143 = vpack.c.b16 %v121, %v120
    %v144 = vpack.c.b16 %v123, %v122
    %v145 = vpack.c.b16 %v125, %v124
    %v146 = vpack.c.b16 %v127, %v126
    %v147 = vpack.c.b16 %v129, %v128
    %v148 = vpack.c.b16 %v131, %v130
    %v149 = vpack.c.b16 %v133, %v132
    %166 = vmatprep.subr.bf16.mxu0 0
    %167 = vmatpush1.bf16.msra.mxu0 %v141
    %168 = vmatprep.subr.bf16.mxu0 0
    %169 = vmatpush1.bf16.msra.mxu0 %v140
    %170 = vmatprep.subr.bf16.mxu0 0
    %171 = vmatpush1.bf16.msra.mxu0 %v139
    %172 = vmatprep.subr.bf16.mxu0 0
    %173 = vmatpush1.bf16.msra.mxu0 %v138
    %174 = vmatprep.subr.bf16.mxu0 0
    %175 = vmatpush1.bf16.msra.mxu0 %v137
    %176 = vmatprep.subr.bf16.mxu0 0
    %177 = vmatpush1.bf16.msra.mxu0 %v136
    %178 = vmatprep.subr.bf16.mxu0 0
    %179 = vmatpush1.bf16.msra.mxu0 %v135
    %180 = vmatprep.subr.bf16.mxu0 0
    %181 = vmatpush1.bf16.msra.mxu0 %v134
    %182 = vmatprep.subr.bf16.mxu0 0
    %183 = vmatpush2.bf16.msra.mxu0 %v149
    %184 = vmatprep.subr.bf16.mxu0 0
    %185 = vmatpush2.bf16.msra.mxu0 %v148
    %186 = vmatprep.subr.bf16.mxu0 0
    %187 = vmatpush2.bf16.msra.mxu0 %v147
    %188 = vmatprep.subr.bf16.mxu0 0
    %189 = vmatpush2.bf16.msra.mxu0 %v146
    %190 = vmatprep.subr.bf16.mxu0 0
    %191 = vmatpush2.bf16.msra.mxu0 %v145
    %192 = vmatprep.subr.bf16.mxu0 0
    %193 = vmatpush2.bf16.msra.mxu0 %v144
    %194 = vmatprep.subr.bf16.mxu0 0
    %195 = vmatpush2.bf16.msra.mxu0 %v143
    %196 = vmatprep.subr.bf16.mxu0 0
    %197 = vmatpush2.bf16.msra.mxu0 %v142
    %198 = vmatprep.mubr.bf16.mxu0 %v67
    %199 = vmatmul.mubr.bf16.gmra.mxu0 %v66
    %v200 = vpop.f32.mrf.mxu0
    %v201 = vadd.f32 %v58, %v200
    %v202 = vpop.f32.mrf.mxu0
    %v203 = vpop.f32.mrf.mxu0
    %v204 = vadd.f32 %v58, %v203
    %v205 = vpop.f32.mrf.mxu0
    %206 = vdwg.mxu0
    %v207 = vld [vmem:[%s3] sm:$0xff]
    %v208 = vld [vmem:[%s3 + $0x8] sm:$0xff]
    %v209 = vadd.f32 %v201, %v207
    %v210 = vadd.f32 %v204, %v208
    %vm211 = vcmask 523264
    %212 = vst.msk [vmem:[#allocation2] sm:$0xff] %vm211, %v209
    %213 = vst.msk [vmem:[#allocation2 + $0x8] sm:$0xff] %vm211, %v210
    // Predicated region
    $region18: #{block_forward.17} parent=1 // pred_check
      _
    $region19: #{block_forward.17} parent=1 // pred_check_branch
      %215 = sbr.rel (0) target = $region21
    $region20: #{block_forward.17} parent=1 // pred_region
      %s217 = ssub.s32 256, 256
      %218 = vsyncadd [#allocation3], %s217
      %s219 = sshll.u32 [#allocation2], 4
      %s220 = int_to_ptr.vmem [resolvable:$true] %s219
      %225 = dma.vmem_to_hbm [thread:$0]  %s220, 256, %s4, [#allocation3], 128, 128, 8
    $region21: #{block_forward.17} parent=1 // pred_fallthru
      _
    // Predicated region
    $region22: #{block_forward.17} parent=1 // pred_check
      _
    $region23: #{block_forward.17} parent=1 // pred_check_branch
      %227 = sbr.rel (0) target = $region25
    $region24: #{block_forward.17} parent=1 // pred_region
      %228 = dma.done [#allocation3], 256
    $region25: #{block_forward.17} parent=1 // pred_fallthru
      _
    %229 = vsyncpa [#allocation3], 1

</llo_original>
